<compile_context>
chip_gen: v7x
topology: tpu7x:2x2x1
jax: 0.10.0
libtpu: 0.0.40
codegen_flags: <defaults>
</compile_context>

<pallas_src>
import functools
import math

import jax
import jax.numpy as jnp
from jax import lax
from jax.experimental import pallas as pl
from jax.experimental.pallas import tpu as pltpu

BN_EPS = 1e-5
_TILE_CAP = 4096        # points per tile, per superchunk (<= ~3 MiB double-buffered)


# --------------------------------------------------------------------------
# small helpers
# --------------------------------------------------------------------------
def _round_up(n, m):
    return ((n + m - 1) // m) * m


def _pick_tile(n):
    """Largest lane-dense tile for a per-superchunk point range `n` (mult of 128)."""
    if n <= _TILE_CAP:
        return n
    for t in (4096, 2048, 1024, 512, 256, 128):
        if n % t == 0:
            return t
    return n


def _specs(cin, cout, nsup, tiles_per_sup, tile_n):
    """BlockSpecs for a (B, nsup, tiles_per_sup) grid."""
    act_in = pl.BlockSpec((1, cin, tile_n),
                          lambda b, s, i, t=tiles_per_sup: (b, 0, s * t + i))
    act_out = pl.BlockSpec((1, cout, tile_n),
                           lambda b, s, i, t=tiles_per_sup: (b, 0, s * t + i))
    # Partial-stat accumulator block: one per (batch, superchunk), constant
    # along the (arbitrary) tile axis so it stays VMEM-resident.
    stat = pl.BlockSpec((1, cout, 1),
                        lambda b, s, i, ns=nsup: (b * ns + s, 0, 0))

    def const(shape):
        return pl.BlockSpec(shape, lambda b, s, i, nd=len(shape): (0,) * nd)

    return act_in, act_out, stat, const


def _bn_fold(ssum, ssq, gamma, beta, count):
    """Fold streamed stats into per-channel scale/shift (tiny, plain JAX)."""
    inv = 1.0 / count
    mean = jnp.sum(ssum, axis=0) * inv                      # (C, 1)
    var = jnp.maximum(jnp.sum(ssq, axis=0) * inv - mean * mean, 0.0)
    scale = lax.rsqrt(var + BN_EPS) * gamma
    shift = beta - mean * scale
    return scale, shift


# --------------------------------------------------------------------------
# Kernel 1: conv1 (1x1, no bias) + accumulate BN batch statistics of output
# --------------------------------------------------------------------------
def _conv_stats_kernel(x_ref, w_ref, z_ref, ssum_ref, ssq_ref):
    @pl.when(pl.program_id(2) == 0)
    def _():
        ssum_ref[...] = jnp.zeros_like(ssum_ref)
        ssq_ref[...] = jnp.zeros_like(ssq_ref)

    x = x_ref[0].astype(jnp.bfloat16)                       # (Cin, tn)
    z = jnp.dot(w_ref[...], x, preferred_element_type=jnp.float32)   # (Cout, tn) f32
    z_ref[0] = z.astype(z_ref.dtype)                        # bf16 intermediate
    ssum_ref[0] += jnp.sum(z, axis=1, keepdims=True)        # f32 stats (pre-cast)
    ssq_ref[0] += jnp.sum(z * z, axis=1, keepdims=True)


# --------------------------------------------------------------------------
# Kernel 2/3: BN(prev; precomputed scale/shift) + ReLU + 1x1 conv + stats
# --------------------------------------------------------------------------
def _bn_relu_conv_stats_kernel(mask_info, zp_ref, scale_ref, shift_ref, w_ref,
                               z_ref, ssum_ref, ssq_ref):
    @pl.when(pl.program_id(2) == 0)
    def _():
        ssum_ref[...] = jnp.zeros_like(ssum_ref)
        ssq_ref[...] = jnp.zeros_like(ssq_ref)

    h = jnp.maximum(zp_ref[0].astype(jnp.float32) * scale_ref[...] + shift_ref[...],
                    0.0)                                    # (Cp, tn) f32
    if mask_info is not None:                               # padded-N path only
        n_valid, tile_n, tiles_per_sup = mask_info
        g = pl.program_id(1) * tiles_per_sup + pl.program_id(2)
        lane = lax.broadcasted_iota(jnp.int32, (1, tile_n), 1) + g * tile_n
        h = jnp.where(lane < n_valid, h, 0.0)               # keep stats/output clean

    z = jnp.dot(w_ref[...], h.astype(jnp.bfloat16),
                preferred_element_type=jnp.float32)         # (Cout, tn) f32
    z_ref[0] = z.astype(z_ref.dtype)
    ssum_ref[0] += jnp.sum(z, axis=1, keepdims=True)
    ssq_ref[0] += jnp.sum(z * z, axis=1, keepdims=True)


# --------------------------------------------------------------------------
# Kernel 4: BN(prev) + ReLU + conv4 (with bias) + 2*tanh
# --------------------------------------------------------------------------
def _bn_relu_conv_tanh_kernel(zp_ref, scale_ref, shift_ref, w_ref, b_ref, o_ref):
    h = jnp.maximum(zp_ref[0].astype(jnp.float32) * scale_ref[...] + shift_ref[...],
                    0.0)
    z = jnp.dot(w_ref[...], h.astype(jnp.bfloat16),
                preferred_element_type=jnp.float32)
    o_ref[0] = 2.0 * jnp.tanh(z + b_ref[...])


# --------------------------------------------------------------------------
# pallas_call wrappers
# --------------------------------------------------------------------------
def _conv_stats(x, w_bf16, nsup, tile_n):
    B, cin, n_pad = x.shape
    cout = w_bf16.shape[0]
    tiles_per_sup = (n_pad // nsup) // tile_n
    act_in, act_out, stat, const = _specs(cin, cout, nsup, tiles_per_sup, tile_n)
    return pl.pallas_call(
        _conv_stats_kernel,
        grid=(B, nsup, tiles_per_sup),
        in_specs=[act_in, const(w_bf16.shape)],
        out_specs=[act_out, stat, stat],
        out_shape=[jax.ShapeDtypeStruct((B, cout, n_pad), jnp.bfloat16),
                   jax.ShapeDtypeStruct((B * nsup, cout, 1), jnp.float32),
                   jax.ShapeDtypeStruct((B * nsup, cout, 1), jnp.float32)],
        compiler_params=pltpu.CompilerParams(
            dimension_semantics=("parallel", "parallel", "arbitrary")),
    )(x, w_bf16)


def _bn_relu_conv_stats(z_prev, scale, shift, w_bf16, nsup, tile_n, mask_info):
    B, cp, n_pad = z_prev.shape
    cout = w_bf16.shape[0]
    tiles_per_sup = (n_pad // nsup) // tile_n
    act_in, act_out, stat, const = _specs(cp, cout, nsup, tiles_per_sup, tile_n)
    kernel = functools.partial(_bn_relu_conv_stats_kernel, mask_info)
    return pl.pallas_call(
        kernel,
        grid=(B, nsup, tiles_per_sup),
        in_specs=[act_in, const(scale.shape), const(shift.shape), const(w_bf16.shape)],
        out_specs=[act_out, stat, stat],
        out_shape=[jax.ShapeDtypeStruct((B, cout, n_pad), jnp.bfloat16),
                   jax.ShapeDtypeStruct((B * nsup, cout, 1), jnp.float32),
                   jax.ShapeDtypeStruct((B * nsup, cout, 1), jnp.float32)],
        compiler_params=pltpu.CompilerParams(
            dimension_semantics=("parallel", "parallel", "arbitrary")),
    )(z_prev, scale, shift, w_bf16)


def _bn_relu_conv_tanh(z_prev, scale, shift, w_bf16, b, nsup, tile_n):
    B, cp, n_pad = z_prev.shape
    cout = w_bf16.shape[0]
    tiles_per_sup = (n_pad // nsup) // tile_n
    act_in, act_out, _, const = _specs(cp, cout, nsup, tiles_per_sup, tile_n)
    return pl.pallas_call(
        _bn_relu_conv_tanh_kernel,
        grid=(B, nsup, tiles_per_sup),
        in_specs=[act_in, const(scale.shape), const(shift.shape),
                  const(w_bf16.shape), const(b.shape)],
        out_specs=act_out,
        out_shape=jax.ShapeDtypeStruct((B, cout, n_pad), jnp.float32),
        compiler_params=pltpu.CompilerParams(
            dimension_semantics=("parallel", "parallel", "parallel")),
    )(z_prev, scale, shift, w_bf16, b)


# --------------------------------------------------------------------------
# PointGenCon forward + params
# --------------------------------------------------------------------------
def init_pointgencon_params(key, in_channels):
    c = in_channels
    dims = [(c, c), (c, c // 2), (c // 2, c // 4), (c // 4, 3)]
    keys = jax.random.split(key, 2 * len(dims))
    params = []
    for i, (cin, cout) in enumerate(dims):
        bound = 1.0 / math.sqrt(cin)   # PyTorch Conv1d default init (kernel_size=1)
        w = jax.random.uniform(keys[2 * i], (cout, cin), jnp.float32, -bound, bound)
        b = jax.random.uniform(keys[2 * i + 1], (cout, 1), jnp.float32, -bound, bound)
        layer = {"w": w, "b": b}       # b1..b3 are BN-cancelled (kept for parity)
        if i < 3:                       # conv1..conv3 are followed by BatchNorm1d
            layer["gamma"] = jnp.ones((cout, 1), jnp.float32)
            layer["beta"] = jnp.zeros((cout, 1), jnp.float32)
        params.append(layer)
    return params


def pointgencon_forward(x, params):
    """x: (B, in_channels, N) — same NCW layout as the PyTorch module."""
    B, _, n = x.shape
    n_pad = _round_up(n, 128)
    if n_pad != n:
        x = jnp.pad(x, ((0, 0), (0, 0), (0, n_pad - n)))
    # 2 point super-chunks (extra "parallel" axis) keep both v7x TCs busy at B=1.
    nsup = 2 if (n_pad >= 256 and n_pad % 256 == 0) else 1
    tile_n = _pick_tile(n_pad // nsup)
    tiles_per_sup = (n_pad // nsup) // tile_n
    mask_info = None if n_pad == n else (n, tile_n, tiles_per_sup)
    count = float(B * n)               # padded lanes contribute exactly 0 to stats

    l1, l2, l3, l4 = params
    w1 = l1["w"].astype(jnp.bfloat16)  # cast weights once, outside the kernels
    w2 = l2["w"].astype(jnp.bfloat16)
    w3 = l3["w"].astype(jnp.bfloat16)
    w4 = l4["w"].astype(jnp.bfloat16)

    z1, s1, q1 = _conv_stats(x, w1, nsup, tile_n)
    sc1, sh1 = _bn_fold(s1, q1, l1["gamma"], l1["beta"], count)
    z2, s2, q2 = _bn_relu_conv_stats(z1, sc1, sh1, w2, nsup, tile_n, mask_info)
    sc2, sh2 = _bn_fold(s2, q2, l2["gamma"], l2["beta"], count)
    z3, s3, q3 = _bn_relu_conv_stats(z2, sc2, sh2, w3, nsup, tile_n, mask_info)
    sc3, sh3 = _bn_fold(s3, q3, l3["gamma"], l3["beta"], count)
    out = _bn_relu_conv_tanh(z3, sc3, sh3, w4, l4["b"], nsup, tile_n)
    return out[:, :, :n] if n_pad != n else out


# --------------------------------------------------------------------------
# Pure-JAX reference mirroring the kernel's precision choices
# (bf16 matmul operands, bf16 HBM round-trip of intermediates, f32 BN/tanh;
#  conv1..conv3 bias omitted since BatchNorm cancels it exactly).
# --------------------------------------------------------------------------
def pointgencon_reference(x, params):
    def conv(h, w):
        return jnp.einsum("oc,bcn->bon",
                          w.astype(jnp.bfloat16), h.astype(jnp.bfloat16),
                          preferred_element_type=jnp.float32)

    def bn_relu(z, g, beta):
        m = jnp.mean(z, axis=(0, 2), keepdims=True)
        v = jnp.maximum(jnp.mean(z * z, axis=(0, 2), keepdims=True) - m * m, 0.0)
        scale = lax.rsqrt(v + BN_EPS) * g[None]
        shift = beta[None] - m * scale
        zb = z.astype(jnp.bfloat16).astype(jnp.float32)   # mirror bf16 HBM round-trip
        return jnp.maximum(zb * scale + shift, 0.0)

    l1, l2, l3, l4 = params
    h = bn_relu(conv(x, l1["w"]), l1["gamma"], l1["beta"])
    h = bn_relu(conv(h, l2["w"]), l2["gamma"], l2["beta"])
    h = bn_relu(conv(h, l3["w"]), l3["gamma"], l3["beta"])
    return 2.0 * jnp.tanh(conv(h, l4["w"]) + l4["b"][None])


if __name__ == "__main__":
    key = jax.random.PRNGKey(0)
    k_x, k_p, k_x2 = jax.random.split(key, 3)

    # Small but structurally faithful: channels 64 -> 64 -> 32 -> 16 -> 3.
    B, C_IN, N = 2, 64, 1024
    x = jax.random.normal(k_x, (B, C_IN, N), jnp.float32)   # PyTorch NCW input
    params = init_pointgencon_params(k_p, C_IN)

    fwd = jax.jit(pointgencon_forward)
    out = jax.block_until_ready(fwd(x, params))
    assert out.shape == (B, 3, N), out.shape
    assert bool(jnp.all(jnp.isfinite(out)))
    err = float(jnp.max(jnp.abs(out - pointgencon_reference(x, params))))
    assert err < 5e-2, err

    # Ragged point count: exercises the pad-to-128 + lane-mask path.
    N2 = 1000
    x2 = jax.random.normal(k_x2, (1, C_IN, N2), jnp.float32)
    out2 = jax.block_until_ready(fwd(x2, params))
    assert out2.shape == (1, 3, N2), out2.shape
    err2 = float(jnp.max(jnp.abs(out2 - pointgencon_reference(x2, params))))
    assert err2 < 5e-2, err2

    print("KERNEL_OK")
</pallas_src>

<mosaic_0001>
module attributes {stable_mosaic.version = 11 : i64} {
  func.func @_conv_stats_kernel(%arg0: i32, %arg1: i32, %arg2: i32, %arg3: memref<1x64x512xf32, #tpu.memory_space<vmem>>, %arg4: memref<64x64xbf16, #tpu.memory_space<vmem>>, %arg5: memref<1x64x512xbf16, #tpu.memory_space<vmem>>, %arg6: memref<1x64x1xf32, #tpu.memory_space<vmem>>, %arg7: memref<1x64x1xf32, #tpu.memory_space<vmem>>) attributes {dimension_semantics = [#tpu.dimension_semantics<parallel>, #tpu.dimension_semantics<parallel>, #tpu.dimension_semantics<arbitrary>], iteration_bounds = array<i64: 2, 2, 1>, scalar_prefetch = 0 : i64, scratch_operands = 0 : i64, tpu.core_type = #tpu.core_type<tc>, window_params = [{transform_indices = @transform_0, window_bounds = array<i64: 1, 64, 512>}, {pipeline_mode = #tpu.pipeline_mode<synchronous>, transform_indices = @transform_1, window_bounds = array<i64: 64, 64>}, {transform_indices = @transform_2, window_bounds = array<i64: 1, 64, 512>}, {transform_indices = @transform_3, window_bounds = array<i64: 1, 64, 1>}, {transform_indices = @transform_4, window_bounds = array<i64: 1, 64, 1>}]} {
    %c0_i32 = arith.constant 0 : i32
    %0 = arith.cmpi eq, %arg2, %c0_i32 : i32
    %1 = arith.extui %0 : i1 to i32
    %c0_i32_0 = arith.constant 0 : i32
    %2 = arith.cmpi ne, %1, %c0_i32_0 : i32
    scf.if %2 {
      %cst_22 = arith.constant 0.000000e+00 : f32
      %29 = vector.broadcast %cst_22 : f32 to vector<1x64x1xf32>
      %c0_23 = arith.constant 0 : index
      %c0_24 = arith.constant 0 : index
      %c0_25 = arith.constant 0 : index
      %30 = vector.load %arg6[%c0_23, %c0_24, %c0_25] : memref<1x64x1xf32, #tpu.memory_space<vmem>>, vector<1x64x1xf32>
      tpu.vector_store %arg6[%c0_23, %c0_24, %c0_25], %29 {strides = array<i32>} : memref<1x64x1xf32, #tpu.memory_space<vmem>>, vector<1x64x1xf32>,
      %cst_26 = arith.constant 0.000000e+00 : f32
      %31 = vector.broadcast %cst_26 : f32 to vector<1x64x1xf32>
      %c0_27 = arith.constant 0 : index
      %c0_28 = arith.constant 0 : index
      %c0_29 = arith.constant 0 : index
      %32 = vector.load %arg7[%c0_27, %c0_28, %c0_29] : memref<1x64x1xf32, #tpu.memory_space<vmem>>, vector<1x64x1xf32>
      tpu.vector_store %arg7[%c0_27, %c0_28, %c0_29], %31 {strides = array<i32>} : memref<1x64x1xf32, #tpu.memory_space<vmem>>, vector<1x64x1xf32>,
    } else {
    }
    %c0 = arith.constant 0 : index
    %c0_1 = arith.constant 0 : index
    %c0_2 = arith.constant 0 : index
    %3 = vector.load %arg3[%c0, %c0_1, %c0_2] : memref<1x64x512xf32, #tpu.memory_space<vmem>>, vector<1x64x512xf32>
    %4 = vector.shape_cast %3 : vector<1x64x512xf32> to vector<64x512xf32>
    %5 = arith.truncf %4 : vector<64x512xf32> to vector<64x512xbf16>
    %c0_3 = arith.constant 0 : index
    %c0_4 = arith.constant 0 : index
    %6 = vector.load %arg4[%c0_3, %c0_4] : memref<64x64xbf16, #tpu.memory_space<vmem>>, vector<64x64xbf16>
    %cst = arith.constant dense<0.000000e+00> : vector<64x512xf32>
    %7 = tpu.matmul %6, %5, %cst {dimension_numbers = #tpu.dot_dimension_numbers<[1], [0], [0], [1], [0, 0, 1, 1], [], []>} : vector<64x64xbf16>, vector<64x512xbf16>, vector<64x512xf32> -> vector<64x512xf32>
    %8 = arith.truncf %7 : vector<64x512xf32> to vector<64x512xbf16>
    %c0_5 = arith.constant 0 : index
    %c0_6 = arith.constant 0 : index
    %c0_7 = arith.constant 0 : index
    %9 = vector.load %arg5[%c0_5, %c0_6, %c0_7] : memref<1x64x512xbf16, #tpu.memory_space<vmem>>, vector<1x64x512xbf16>
    %10 = vector.shape_cast %9 : vector<1x64x512xbf16> to vector<64x512xbf16>
    %11 = vector.shape_cast %8 : vector<64x512xbf16> to vector<1x64x512xbf16>
    tpu.vector_store %arg5[%c0_5, %c0_6, %c0_7], %11 {strides = array<i32>} : memref<1x64x512xbf16, #tpu.memory_space<vmem>>, vector<1x64x512xbf16>,
    %c0_8 = arith.constant 0 : index
    %c0_9 = arith.constant 0 : index
    %c0_10 = arith.constant 0 : index
    %12 = vector.load %arg6[%c0_8, %c0_9, %c0_10] : memref<1x64x1xf32, #tpu.memory_space<vmem>>, vector<1x64x1xf32>
    %13 = vector.shape_cast %12 : vector<1x64x1xf32> to vector<64x1xf32>
    %cst_11 = arith.constant dense<0.000000e+00> : vector<64xf32>
    %14 = vector.multi_reduction <add>, %7, %cst_11 [1] : vector<64x512xf32> to vector<64xf32>
    %15 = vector.shape_cast %14 : vector<64xf32> to vector<64x1xf32>
    %16 = arith.addf %13, %15 : vector<64x1xf32>
    %c0_12 = arith.constant 0 : index
    %c0_13 = arith.constant 0 : index
    %c0_14 = arith.constant 0 : index
    %17 = vector.load %arg6[%c0_12, %c0_13, %c0_14] : memref<1x64x1xf32, #tpu.memory_space<vmem>>, vector<1x64x1xf32>
    %18 = vector.shape_cast %17 : vector<1x64x1xf32> to vector<64x1xf32>
    %19 = vector.shape_cast %16 : vector<64x1xf32> to vector<1x64x1xf32>
    tpu.vector_store %arg6[%c0_12, %c0_13, %c0_14], %19 {strides = array<i32>} : memref<1x64x1xf32, #tpu.memory_space<vmem>>, vector<1x64x1xf32>,
    %c0_15 = arith.constant 0 : index
    %c0_16 = arith.constant 0 : index
    %c0_17 = arith.constant 0 : index
    %20 = vector.load %arg7[%c0_15, %c0_16, %c0_17] : memref<1x64x1xf32, #tpu.memory_space<vmem>>, vector<1x64x1xf32>
    %21 = vector.shape_cast %20 : vector<1x64x1xf32> to vector<64x1xf32>
    %22 = arith.mulf %7, %7 : vector<64x512xf32>
    %cst_18 = arith.constant dense<0.000000e+00> : vector<64xf32>
    %23 = vector.multi_reduction <add>, %22, %cst_18 [1] : vector<64x512xf32> to vector<64xf32>
    %24 = vector.shape_cast %23 : vector<64xf32> to vector<64x1xf32>
    %25 = arith.addf %21, %24 : vector<64x1xf32>
    %c0_19 = arith.constant 0 : index
    %c0_20 = arith.constant 0 : index
    %c0_21 = arith.constant 0 : index
    %26 = vector.load %arg7[%c0_19, %c0_20, %c0_21] : memref<1x64x1xf32, #tpu.memory_space<vmem>>, vector<1x64x1xf32>
    %27 = vector.shape_cast %26 : vector<1x64x1xf32> to vector<64x1xf32>
    %28 = vector.shape_cast %25 : vector<64x1xf32> to vector<1x64x1xf32>
    tpu.vector_store %arg7[%c0_19, %c0_20, %c0_21], %28 {strides = array<i32>} : memref<1x64x1xf32, #tpu.memory_space<vmem>>, vector<1x64x1xf32>,
    return
  }
  func.func @transform_0(%arg0: i32, %arg1: i32, %arg2: i32) -> (i32, i32, i32) {
    %c1_i32 = arith.constant 1 : i32
    %0 = arith.muli %arg1, %c1_i32 : i32
    %1 = arith.addi %0, %arg2 : i32
    %c0_i32 = arith.constant 0 : i32
    %c0_i32_0 = arith.constant 0 : i32
    return %arg0, %c0_i32, %1 : i32, i32, i32
  }
  func.func @transform_1(%arg0: i32, %arg1: i32, %arg2: i32) -> (i32, i32) {
    %c0_i32 = arith.constant 0 : i32
    %c0_i32_0 = arith.constant 0 : i32
    %c0_i32_1 = arith.constant 0 : i32
    return %c0_i32, %c0_i32_0 : i32, i32
  }
  func.func @transform_2(%arg0: i32, %arg1: i32, %arg2: i32) -> (i32, i32, i32) {
    %c1_i32 = arith.constant 1 : i32
    %0 = arith.muli %arg1, %c1_i32 : i32
    %1 = arith.addi %0, %arg2 : i32
    %c0_i32 = arith.constant 0 : i32
    %c0_i32_0 = arith.constant 0 : i32
    return %arg0, %c0_i32, %1 : i32, i32, i32
  }
  func.func @transform_3(%arg0: i32, %arg1: i32, %arg2: i32) -> (i32, i32, i32) {
    %c2_i32 = arith.constant 2 : i32
    %0 = arith.muli %arg0, %c2_i32 : i32
    %1 = arith.addi %0, %arg1 : i32
    %c0_i32 = arith.constant 0 : i32
    %c0_i32_0 = arith.constant 0 : i32
    %c0_i32_1 = arith.constant 0 : i32
    return %1, %c0_i32, %c0_i32_0 : i32, i32, i32
  }
  func.func @transform_4(%arg0: i32, %arg1: i32, %arg2: i32) -> (i32, i32, i32) {
    %c2_i32 = arith.constant 2 : i32
    %0 = arith.muli %arg0, %c2_i32 : i32
    %1 = arith.addi %0, %arg1 : i32
    %c0_i32 = arith.constant 0 : i32
    %c0_i32_0 = arith.constant 0 : i32
    %c0_i32_1 = arith.constant 0 : i32
    return %1, %c0_i32, %c0_i32_0 : i32, i32, i32
  }
}

module attributes {stable_mosaic.version = 11 : i64} {
  func.func @_bn_relu_conv_stats_kernel(%arg0: i32, %arg1: i32, %arg2: i32, %arg3: memref<1x64x512xbf16, #tpu.memory_space<vmem>>, %arg4: memref<64x1xf32, #tpu.memory_space<vmem>>, %arg5: memref<64x1xf32, #tpu.memory_space<vmem>>, %arg6: memref<32x64xbf16, #tpu.memory_space<vmem>>, %arg7: memref<1x32x512xbf16, #tpu.memory_space<vmem>>, %arg8: memref<1x32x1xf32, #tpu.memory_space<vmem>>, %arg9: memref<1x32x1xf32, #tpu.memory_space<vmem>>) attributes {dimension_semantics = [#tpu.dimension_semantics<parallel>, #tpu.dimension_semantics<parallel>, #tpu.dimension_semantics<arbitrary>], iteration_bounds = array<i64: 2, 2, 1>, scalar_prefetch = 0 : i64, scratch_operands = 0 : i64, tpu.core_type = #tpu.core_type<tc>, window_params = [{transform_indices = @transform_0, window_bounds = array<i64: 1, 64, 512>}, {pipeline_mode = #tpu.pipeline_mode<synchronous>, transform_indices = @transform_1, window_bounds = array<i64: 64, 1>}, {pipeline_mode = #tpu.pipeline_mode<synchronous>, transform_indices = @transform_2, window_bounds = array<i64: 64, 1>}, {pipeline_mode = #tpu.pipeline_mode<synchronous>, transform_indices = @transform_3, window_bounds = array<i64: 32, 64>}, {transform_indices = @transform_4, window_bounds = array<i64: 1, 32, 512>}, {transform_indices = @transform_5, window_bounds = array<i64: 1, 32, 1>}, {transform_indices = @transform_6, window_bounds = array<i64: 1, 32, 1>}]} {
    %c0_i32 = arith.constant 0 : i32
    %0 = arith.cmpi eq, %arg2, %c0_i32 : i32
    %1 = arith.extui %0 : i1 to i32
    %c0_i32_0 = arith.constant 0 : i32
    %2 = arith.cmpi ne, %1, %c0_i32_0 : i32
    scf.if %2 {
      %cst_27 = arith.constant 0.000000e+00 : f32
      %38 = vector.broadcast %cst_27 : f32 to vector<1x32x1xf32>
      %c0_28 = arith.constant 0 : index
      %c0_29 = arith.constant 0 : index
      %c0_30 = arith.constant 0 : index
      %39 = vector.load %arg8[%c0_28, %c0_29, %c0_30] : memref<1x32x1xf32, #tpu.memory_space<vmem>>, vector<1x32x1xf32>
      tpu.vector_store %arg8[%c0_28, %c0_29, %c0_30], %38 {strides = array<i32>} : memref<1x32x1xf32, #tpu.memory_space<vmem>>, vector<1x32x1xf32>,
      %cst_31 = arith.constant 0.000000e+00 : f32
      %40 = vector.broadcast %cst_31 : f32 to vector<1x32x1xf32>
      %c0_32 = arith.constant 0 : index
      %c0_33 = arith.constant 0 : index
      %c0_34 = arith.constant 0 : index
      %41 = vector.load %arg9[%c0_32, %c0_33, %c0_34] : memref<1x32x1xf32, #tpu.memory_space<vmem>>, vector<1x32x1xf32>
      tpu.vector_store %arg9[%c0_32, %c0_33, %c0_34], %40 {strides = array<i32>} : memref<1x32x1xf32, #tpu.memory_space<vmem>>, vector<1x32x1xf32>,
    } else {
    }
    %c0 = arith.constant 0 : index
    %c0_1 = arith.constant 0 : index
    %c0_2 = arith.constant 0 : index
    %3 = vector.load %arg3[%c0, %c0_1, %c0_2] : memref<1x64x512xbf16, #tpu.memory_space<vmem>>, vector<1x64x512xbf16>
    %4 = vector.shape_cast %3 : vector<1x64x512xbf16> to vector<64x512xbf16>
    %5 = arith.extf %4 : vector<64x512xbf16> to vector<64x512xf32>
    %c0_3 = arith.constant 0 : index
    %c0_4 = arith.constant 0 : index
    %6 = vector.load %arg4[%c0_3, %c0_4] : memref<64x1xf32, #tpu.memory_space<vmem>>, vector<64x1xf32>
    %7 = vector.broadcast %6 : vector<64x1xf32> to vector<64x512xf32>
    %8 = arith.mulf %5, %7 : vector<64x512xf32>
    %c0_5 = arith.constant 0 : index
    %c0_6 = arith.constant 0 : index
    %9 = vector.load %arg5[%c0_5, %c0_6] : memref<64x1xf32, #tpu.memory_space<vmem>>, vector<64x1xf32>
    %10 = vector.broadcast %9 : vector<64x1xf32> to vector<64x512xf32>
    %11 = arith.addf %8, %10 : vector<64x512xf32>
    %cst = arith.constant 0.000000e+00 : f32
    %12 = vector.broadcast %cst : f32 to vector<64x512xf32>
    %13 = arith.maximumf %11, %12 : vector<64x512xf32>
    %c0_7 = arith.constant 0 : index
    %c0_8 = arith.constant 0 : index
    %14 = vector.load %arg6[%c0_7, %c0_8] : memref<32x64xbf16, #tpu.memory_space<vmem>>, vector<32x64xbf16>
    %15 = arith.truncf %13 : vector<64x512xf32> to vector<64x512xbf16>
    %cst_9 = arith.constant dense<0.000000e+00> : vector<32x512xf32>
    %16 = tpu.matmul %14, %15, %cst_9 {dimension_numbers = #tpu.dot_dimension_numbers<[1], [0], [0], [1], [0, 0, 1, 1], [], []>} : vector<32x64xbf16>, vector<64x512xbf16>, vector<32x512xf32> -> vector<32x512xf32>
    %17 = arith.truncf %16 : vector<32x512xf32> to vector<32x512xbf16>
    %c0_10 = arith.constant 0 : index
    %c0_11 = arith.constant 0 : index
    %c0_12 = arith.constant 0 : index
    %18 = vector.load %arg7[%c0_10, %c0_11, %c0_12] : memref<1x32x512xbf16, #tpu.memory_space<vmem>>, vector<1x32x512xbf16>
    %19 = vector.shape_cast %18 : vector<1x32x512xbf16> to vector<32x512xbf16>
    %20 = vector.shape_cast %17 : vector<32x512xbf16> to vector<1x32x512xbf16>
    tpu.vector_store %arg7[%c0_10, %c0_11, %c0_12], %20 {strides = array<i32>} : memref<1x32x512xbf16, #tpu.memory_space<vmem>>, vector<1x32x512xbf16>,
    %c0_13 = arith.constant 0 : index
    %c0_14 = arith.constant 0 : index
    %c0_15 = arith.constant 0 : index
    %21 = vector.load %arg8[%c0_13, %c0_14, %c0_15] : memref<1x32x1xf32, #tpu.memory_space<vmem>>, vector<1x32x1xf32>
    %22 = vector.shape_cast %21 : vector<1x32x1xf32> to vector<32x1xf32>
    %cst_16 = arith.constant dense<0.000000e+00> : vector<32xf32>
    %23 = vector.multi_reduction <add>, %16, %cst_16 [1] : vector<32x512xf32> to vector<32xf32>
    %24 = vector.shape_cast %23 : vector<32xf32> to vector<32x1xf32>
    %25 = arith.addf %22, %24 : vector<32x1xf32>
    %c0_17 = arith.constant 0 : index
    %c0_18 = arith.constant 0 : index
    %c0_19 = arith.constant 0 : index
    %26 = vector.load %arg8[%c0_17, %c0_18, %c0_19] : memref<1x32x1xf32, #tpu.memory_space<vmem>>, vector<1x32x1xf32>
    %27 = vector.shape_cast %26 : vector<1x32x1xf32> to vector<32x1xf32>
    %28 = vector.shape_cast %25 : vector<32x1xf32> to vector<1x32x1xf32>
    tpu.vector_store %arg8[%c0_17, %c0_18, %c0_19], %28 {strides = array<i32>} : memref<1x32x1xf32, #tpu.memory_space<vmem>>, vector<1x32x1xf32>,
    %c0_20 = arith.constant 0 : index
    %c0_21 = arith.constant 0 : index
    %c0_22 = arith.constant 0 : index
    %29 = vector.load %arg9[%c0_20, %c0_21, %c0_22] : memref<1x32x1xf32, #tpu.memory_space<vmem>>, vector<1x32x1xf32>
    %30 = vector.shape_cast %29 : vector<1x32x1xf32> to vector<32x1xf32>
    %31 = arith.mulf %16, %16 : vector<32x512xf32>
    %cst_23 = arith.constant dense<0.000000e+00> : vector<32xf32>
    %32 = vector.multi_reduction <add>, %31, %cst_23 [1] : vector<32x512xf32> to vector<32xf32>
    %33 = vector.shape_cast %32 : vector<32xf32> to vector<32x1xf32>
    %34 = arith.addf %30, %33 : vector<32x1xf32>
    %c0_24 = arith.constant 0 : index
    %c0_25 = arith.constant 0 : index
    %c0_26 = arith.constant 0 : index
    %35 = vector.load %arg9[%c0_24, %c0_25, %c0_26] : memref<1x32x1xf32, #tpu.memory_space<vmem>>, vector<1x32x1xf32>
    %36 = vector.shape_cast %35 : vector<1x32x1xf32> to vector<32x1xf32>
    %37 = vector.shape_cast %34 : vector<32x1xf32> to vector<1x32x1xf32>
    tpu.vector_store %arg9[%c0_24, %c0_25, %c0_26], %37 {strides = array<i32>} : memref<1x32x1xf32, #tpu.memory_space<vmem>>, vector<1x32x1xf32>,
    return
  }
  func.func @transform_0(%arg0: i32, %arg1: i32, %arg2: i32) -> (i32, i32, i32) {
    %c1_i32 = arith.constant 1 : i32
    %0 = arith.muli %arg1, %c1_i32 : i32
    %1 = arith.addi %0, %arg2 : i32
    %c0_i32 = arith.constant 0 : i32
    %c0_i32_0 = arith.constant 0 : i32
    return %arg0, %c0_i32, %1 : i32, i32, i32
  }
  func.func @transform_1(%arg0: i32, %arg1: i32, %arg2: i32) -> (i32, i32) {
    %c0_i32 = arith.constant 0 : i32
    %c0_i32_0 = arith.constant 0 : i32
    %c0_i32_1 = arith.constant 0 : i32
    return %c0_i32, %c0_i32_0 : i32, i32
  }
  func.func @transform_2(%arg0: i32, %arg1: i32, %arg2: i32) -> (i32, i32) {
    %c0_i32 = arith.constant 0 : i32
    %c0_i32_0 = arith.constant 0 : i32
    %c0_i32_1 = arith.constant 0 : i32
    return %c0_i32, %c0_i32_0 : i32, i32
  }
  func.func @transform_3(%arg0: i32, %arg1: i32, %arg2: i32) -> (i32, i32) {
    %c0_i32 = arith.constant 0 : i32
    %c0_i32_0 = arith.constant 0 : i32
    %c0_i32_1 = arith.constant 0 : i32
    return %c0_i32, %c0_i32_0 : i32, i32
  }
  func.func @transform_4(%arg0: i32, %arg1: i32, %arg2: i32) -> (i32, i32, i32) {
    %c1_i32 = arith.constant 1 : i32
    %0 = arith.muli %arg1, %c1_i32 : i32
    %1 = arith.addi %0, %arg2 : i32
    %c0_i32 = arith.constant 0 : i32
    %c0_i32_0 = arith.constant 0 : i32
    return %arg0, %c0_i32, %1 : i32, i32, i32
  }
  func.func @transform_5(%arg0: i32, %arg1: i32, %arg2: i32) -> (i32, i32, i32) {
    %c2_i32 = arith.constant 2 : i32
    %0 = arith.muli %arg0, %c2_i32 : i32
    %1 = arith.addi %0, %arg1 : i32
    %c0_i32 = arith.constant 0 : i32
    %c0_i32_0 = arith.constant 0 : i32
    %c0_i32_1 = arith.constant 0 : i32
    return %1, %c0_i32, %c0_i32_0 : i32, i32, i32
  }
  func.func @transform_6(%arg0: i32, %arg1: i32, %arg2: i32) -> (i32, i32, i32) {
    %c2_i32 = arith.constant 2 : i32
    %0 = arith.muli %arg0, %c2_i32 : i32
    %1 = arith.addi %0, %arg1 : i32
    %c0_i32 = arith.constant 0 : i32
    %c0_i32_0 = arith.constant 0 : i32
    %c0_i32_1 = arith.constant 0 : i32
    return %1, %c0_i32, %c0_i32_0 : i32, i32, i32
  }
}

module attributes {stable_mosaic.version = 11 : i64} {
  func.func @_bn_relu_conv_stats_kernel(%arg0: i32, %arg1: i32, %arg2: i32, %arg3: memref<1x32x512xbf16, #tpu.memory_space<vmem>>, %arg4: memref<32x1xf32, #tpu.memory_space<vmem>>, %arg5: memref<32x1xf32, #tpu.memory_space<vmem>>, %arg6: memref<16x32xbf16, #tpu.memory_space<vmem>>, %arg7: memref<1x16x512xbf16, #tpu.memory_space<vmem>>, %arg8: memref<1x16x1xf32, #tpu.memory_space<vmem>>, %arg9: memref<1x16x1xf32, #tpu.memory_space<vmem>>) attributes {dimension_semantics = [#tpu.dimension_semantics<parallel>, #tpu.dimension_semantics<parallel>, #tpu.dimension_semantics<arbitrary>], iteration_bounds = array<i64: 2, 2, 1>, scalar_prefetch = 0 : i64, scratch_operands = 0 : i64, tpu.core_type = #tpu.core_type<tc>, window_params = [{transform_indices = @transform_0, window_bounds = array<i64: 1, 32, 512>}, {pipeline_mode = #tpu.pipeline_mode<synchronous>, transform_indices = @transform_1, window_bounds = array<i64: 32, 1>}, {pipeline_mode = #tpu.pipeline_mode<synchronous>, transform_indices = @transform_2, window_bounds = array<i64: 32, 1>}, {pipeline_mode = #tpu.pipeline_mode<synchronous>, transform_indices = @transform_3, window_bounds = array<i64: 16, 32>}, {transform_indices = @transform_4, window_bounds = array<i64: 1, 16, 512>}, {transform_indices = @transform_5, window_bounds = array<i64: 1, 16, 1>}, {transform_indices = @transform_6, window_bounds = array<i64: 1, 16, 1>}]} {
    %c0_i32 = arith.constant 0 : i32
    %0 = arith.cmpi eq, %arg2, %c0_i32 : i32
    %1 = arith.extui %0 : i1 to i32
    %c0_i32_0 = arith.constant 0 : i32
    %2 = arith.cmpi ne, %1, %c0_i32_0 : i32
    scf.if %2 {
      %cst_27 = arith.constant 0.000000e+00 : f32
      %38 = vector.broadcast %cst_27 : f32 to vector<1x16x1xf32>
      %c0_28 = arith.constant 0 : index
      %c0_29 = arith.constant 0 : index
      %c0_30 = arith.constant 0 : index
      %39 = vector.load %arg8[%c0_28, %c0_29, %c0_30] : memref<1x16x1xf32, #tpu.memory_space<vmem>>, vector<1x16x1xf32>
      tpu.vector_store %arg8[%c0_28, %c0_29, %c0_30], %38 {strides = array<i32>} : memref<1x16x1xf32, #tpu.memory_space<vmem>>, vector<1x16x1xf32>,
      %cst_31 = arith.constant 0.000000e+00 : f32
      %40 = vector.broadcast %cst_31 : f32 to vector<1x16x1xf32>
      %c0_32 = arith.constant 0 : index
      %c0_33 = arith.constant 0 : index
      %c0_34 = arith.constant 0 : index
      %41 = vector.load %arg9[%c0_32, %c0_33, %c0_34] : memref<1x16x1xf32, #tpu.memory_space<vmem>>, vector<1x16x1xf32>
      tpu.vector_store %arg9[%c0_32, %c0_33, %c0_34], %40 {strides = array<i32>} : memref<1x16x1xf32, #tpu.memory_space<vmem>>, vector<1x16x1xf32>,
    } else {
    }
    %c0 = arith.constant 0 : index
    %c0_1 = arith.constant 0 : index
    %c0_2 = arith.constant 0 : index
    %3 = vector.load %arg3[%c0, %c0_1, %c0_2] : memref<1x32x512xbf16, #tpu.memory_space<vmem>>, vector<1x32x512xbf16>
    %4 = vector.shape_cast %3 : vector<1x32x512xbf16> to vector<32x512xbf16>
    %5 = arith.extf %4 : vector<32x512xbf16> to vector<32x512xf32>
    %c0_3 = arith.constant 0 : index
    %c0_4 = arith.constant 0 : index
    %6 = vector.load %arg4[%c0_3, %c0_4] : memref<32x1xf32, #tpu.memory_space<vmem>>, vector<32x1xf32>
    %7 = vector.broadcast %6 : vector<32x1xf32> to vector<32x512xf32>
    %8 = arith.mulf %5, %7 : vector<32x512xf32>
    %c0_5 = arith.constant 0 : index
    %c0_6 = arith.constant 0 : index
    %9 = vector.load %arg5[%c0_5, %c0_6] : memref<32x1xf32, #tpu.memory_space<vmem>>, vector<32x1xf32>
    %10 = vector.broadcast %9 : vector<32x1xf32> to vector<32x512xf32>
    %11 = arith.addf %8, %10 : vector<32x512xf32>
    %cst = arith.constant 0.000000e+00 : f32
    %12 = vector.broadcast %cst : f32 to vector<32x512xf32>
    %13 = arith.maximumf %11, %12 : vector<32x512xf32>
    %c0_7 = arith.constant 0 : index
    %c0_8 = arith.constant 0 : index
    %14 = vector.load %arg6[%c0_7, %c0_8] : memref<16x32xbf16, #tpu.memory_space<vmem>>, vector<16x32xbf16>
    %15 = arith.truncf %13 : vector<32x512xf32> to vector<32x512xbf16>
    %cst_9 = arith.constant dense<0.000000e+00> : vector<16x512xf32>
    %16 = tpu.matmul %14, %15, %cst_9 {dimension_numbers = #tpu.dot_dimension_numbers<[1], [0], [0], [1], [0, 0, 1, 1], [], []>} : vector<16x32xbf16>, vector<32x512xbf16>, vector<16x512xf32> -> vector<16x512xf32>
    %17 = arith.truncf %16 : vector<16x512xf32> to vector<16x512xbf16>
    %c0_10 = arith.constant 0 : index
    %c0_11 = arith.constant 0 : index
    %c0_12 = arith.constant 0 : index
    %18 = vector.load %arg7[%c0_10, %c0_11, %c0_12] : memref<1x16x512xbf16, #tpu.memory_space<vmem>>, vector<1x16x512xbf16>
    %19 = vector.shape_cast %18 : vector<1x16x512xbf16> to vector<16x512xbf16>
    %20 = vector.shape_cast %17 : vector<16x512xbf16> to vector<1x16x512xbf16>
    tpu.vector_store %arg7[%c0_10, %c0_11, %c0_12], %20 {strides = array<i32>} : memref<1x16x512xbf16, #tpu.memory_space<vmem>>, vector<1x16x512xbf16>,
    %c0_13 = arith.constant 0 : index
    %c0_14 = arith.constant 0 : index
    %c0_15 = arith.constant 0 : index
    %21 = vector.load %arg8[%c0_13, %c0_14, %c0_15] : memref<1x16x1xf32, #tpu.memory_space<vmem>>, vector<1x16x1xf32>
    %22 = vector.shape_cast %21 : vector<1x16x1xf32> to vector<16x1xf32>
    %cst_16 = arith.constant dense<0.000000e+00> : vector<16xf32>
    %23 = vector.multi_reduction <add>, %16, %cst_16 [1] : vector<16x512xf32> to vector<16xf32>
    %24 = vector.shape_cast %23 : vector<16xf32> to vector<16x1xf32>
    %25 = arith.addf %22, %24 : vector<16x1xf32>
    %c0_17 = arith.constant 0 : index
    %c0_18 = arith.constant 0 : index
    %c0_19 = arith.constant 0 : index
    %26 = vector.load %arg8[%c0_17, %c0_18, %c0_19] : memref<1x16x1xf32, #tpu.memory_space<vmem>>, vector<1x16x1xf32>
    %27 = vector.shape_cast %26 : vector<1x16x1xf32> to vector<16x1xf32>
    %28 = vector.shape_cast %25 : vector<16x1xf32> to vector<1x16x1xf32>
    tpu.vector_store %arg8[%c0_17, %c0_18, %c0_19], %28 {strides = array<i32>} : memref<1x16x1xf32, #tpu.memory_space<vmem>>, vector<1x16x1xf32>,
    %c0_20 = arith.constant 0 : index
    %c0_21 = arith.constant 0 : index
    %c0_22 = arith.constant 0 : index
    %29 = vector.load %arg9[%c0_20, %c0_21, %c0_22] : memref<1x16x1xf32, #tpu.memory_space<vmem>>, vector<1x16x1xf32>
    %30 = vector.shape_cast %29 : vector<1x16x1xf32> to vector<16x1xf32>
    %31 = arith.mulf %16, %16 : vector<16x512xf32>
    %cst_23 = arith.constant dense<0.000000e+00> : vector<16xf32>
    %32 = vector.multi_reduction <add>, %31, %cst_23 [1] : vector<16x512xf32> to vector<16xf32>
    %33 = vector.shape_cast %32 : vector<16xf32> to vector<16x1xf32>
    %34 = arith.addf %30, %33 : vector<16x1xf32>
    %c0_24 = arith.constant 0 : index
    %c0_25 = arith.constant 0 : index
    %c0_26 = arith.constant 0 : index
    %35 = vector.load %arg9[%c0_24, %c0_25, %c0_26] : memref<1x16x1xf32, #tpu.memory_space<vmem>>, vector<1x16x1xf32>
    %36 = vector.shape_cast %35 : vector<1x16x1xf32> to vector<16x1xf32>
    %37 = vector.shape_cast %34 : vector<16x1xf32> to vector<1x16x1xf32>
    tpu.vector_store %arg9[%c0_24, %c0_25, %c0_26], %37 {strides = array<i32>} : memref<1x16x1xf32, #tpu.memory_space<vmem>>, vector<1x16x1xf32>,
    return
  }
  func.func @transform_0(%arg0: i32, %arg1: i32, %arg2: i32) -> (i32, i32, i32) {
    %c1_i32 = arith.constant 1 : i32
    %0 = arith.muli %arg1, %c1_i32 : i32
    %1 = arith.addi %0, %arg2 : i32
    %c0_i32 = arith.constant 0 : i32
    %c0_i32_0 = arith.constant 0 : i32
    return %arg0, %c0_i32, %1 : i32, i32, i32
  }
  func.func @transform_1(%arg0: i32, %arg1: i32, %arg2: i32) -> (i32, i32) {
    %c0_i32 = arith.constant 0 : i32
    %c0_i32_0 = arith.constant 0 : i32
    %c0_i32_1 = arith.constant 0 : i32
    return %c0_i32, %c0_i32_0 : i32, i32
  }
  func.func @transform_2(%arg0: i32, %arg1: i32, %arg2: i32) -> (i32, i32) {
    %c0_i32 = arith.constant 0 : i32
    %c0_i32_0 = arith.constant 0 : i32
    %c0_i32_1 = arith.constant 0 : i32
    return %c0_i32, %c0_i32_0 : i32, i32
  }
  func.func @transform_3(%arg0: i32, %arg1: i32, %arg2: i32) -> (i32, i32) {
    %c0_i32 = arith.constant 0 : i32
    %c0_i32_0 = arith.constant 0 : i32
    %c0_i32_1 = arith.constant 0 : i32
    return %c0_i32, %c0_i32_0 : i32, i32
  }
  func.func @transform_4(%arg0: i32, %arg1: i32, %arg2: i32) -> (i32, i32, i32) {
    %c1_i32 = arith.constant 1 : i32
    %0 = arith.muli %arg1, %c1_i32 : i32
    %1 = arith.addi %0, %arg2 : i32
    %c0_i32 = arith.constant 0 : i32
    %c0_i32_0 = arith.constant 0 : i32
    return %arg0, %c0_i32, %1 : i32, i32, i32
  }
  func.func @transform_5(%arg0: i32, %arg1: i32, %arg2: i32) -> (i32, i32, i32) {
    %c2_i32 = arith.constant 2 : i32
    %0 = arith.muli %arg0, %c2_i32 : i32
    %1 = arith.addi %0, %arg1 : i32
    %c0_i32 = arith.constant 0 : i32
    %c0_i32_0 = arith.constant 0 : i32
    %c0_i32_1 = arith.constant 0 : i32
    return %1, %c0_i32, %c0_i32_0 : i32, i32, i32
  }
  func.func @transform_6(%arg0: i32, %arg1: i32, %arg2: i32) -> (i32, i32, i32) {
    %c2_i32 = arith.constant 2 : i32
    %0 = arith.muli %arg0, %c2_i32 : i32
    %1 = arith.addi %0, %arg1 : i32
    %c0_i32 = arith.constant 0 : i32
    %c0_i32_0 = arith.constant 0 : i32
    %c0_i32_1 = arith.constant 0 : i32
    return %1, %c0_i32, %c0_i32_0 : i32, i32, i32
  }
}

module attributes {stable_mosaic.version = 11 : i64} {
  func.func @_bn_relu_conv_tanh_kernel(%arg0: i32, %arg1: i32, %arg2: i32, %arg3: memref<1x16x512xbf16, #tpu.memory_space<vmem>>, %arg4: memref<16x1xf32, #tpu.memory_space<vmem>>, %arg5: memref<16x1xf32, #tpu.memory_space<vmem>>, %arg6: memref<3x16xbf16, #tpu.memory_space<vmem>>, %arg7: memref<3x1xf32, #tpu.memory_space<vmem>>, %arg8: memref<1x3x512xf32, #tpu.memory_space<vmem>>) attributes {dimension_semantics = [#tpu.dimension_semantics<parallel>, #tpu.dimension_semantics<parallel>, #tpu.dimension_semantics<parallel>], iteration_bounds = array<i64: 2, 2, 1>, scalar_prefetch = 0 : i64, scratch_operands = 0 : i64, tpu.core_type = #tpu.core_type<tc>, window_params = [{transform_indices = @transform_0, window_bounds = array<i64: 1, 16, 512>}, {pipeline_mode = #tpu.pipeline_mode<synchronous>, transform_indices = @transform_1, window_bounds = array<i64: 16, 1>}, {pipeline_mode = #tpu.pipeline_mode<synchronous>, transform_indices = @transform_2, window_bounds = array<i64: 16, 1>}, {pipeline_mode = #tpu.pipeline_mode<synchronous>, transform_indices = @transform_3, window_bounds = array<i64: 3, 16>}, {pipeline_mode = #tpu.pipeline_mode<synchronous>, transform_indices = @transform_4, window_bounds = array<i64: 3, 1>}, {transform_indices = @transform_5, window_bounds = array<i64: 1, 3, 512>}]} {
    %c0 = arith.constant 0 : index
    %c0_0 = arith.constant 0 : index
    %c0_1 = arith.constant 0 : index
    %0 = vector.load %arg3[%c0, %c0_0, %c0_1] : memref<1x16x512xbf16, #tpu.memory_space<vmem>>, vector<1x16x512xbf16>
    %1 = vector.shape_cast %0 : vector<1x16x512xbf16> to vector<16x512xbf16>
    %2 = arith.extf %1 : vector<16x512xbf16> to vector<16x512xf32>
    %c0_2 = arith.constant 0 : index
    %c0_3 = arith.constant 0 : index
    %3 = vector.load %arg4[%c0_2, %c0_3] : memref<16x1xf32, #tpu.memory_space<vmem>>, vector<16x1xf32>
    %4 = vector.broadcast %3 : vector<16x1xf32> to vector<16x512xf32>
    %5 = arith.mulf %2, %4 : vector<16x512xf32>
    %c0_4 = arith.constant 0 : index
    %c0_5 = arith.constant 0 : index
    %6 = vector.load %arg5[%c0_4, %c0_5] : memref<16x1xf32, #tpu.memory_space<vmem>>, vector<16x1xf32>
    %7 = vector.broadcast %6 : vector<16x1xf32> to vector<16x512xf32>
    %8 = arith.addf %5, %7 : vector<16x512xf32>
    %cst = arith.constant 0.000000e+00 : f32
    %9 = vector.broadcast %cst : f32 to vector<16x512xf32>
    %10 = arith.maximumf %8, %9 : vector<16x512xf32>
    %c0_6 = arith.constant 0 : index
    %c0_7 = arith.constant 0 : index
    %11 = vector.load %arg6[%c0_6, %c0_7] : memref<3x16xbf16, #tpu.memory_space<vmem>>, vector<3x16xbf16>
    %12 = arith.truncf %10 : vector<16x512xf32> to vector<16x512xbf16>
    %cst_8 = arith.constant dense<0.000000e+00> : vector<3x512xf32>
    %13 = tpu.matmul %11, %12, %cst_8 {dimension_numbers = #tpu.dot_dimension_numbers<[1], [0], [0], [1], [0, 0, 1, 1], [], []>} : vector<3x16xbf16>, vector<16x512xbf16>, vector<3x512xf32> -> vector<3x512xf32>
    %c0_9 = arith.constant 0 : index
    %c0_10 = arith.constant 0 : index
    %14 = vector.load %arg7[%c0_9, %c0_10] : memref<3x1xf32, #tpu.memory_space<vmem>>, vector<3x1xf32>
    %15 = vector.broadcast %14 : vector<3x1xf32> to vector<3x512xf32>
    %16 = arith.addf %13, %15 : vector<3x512xf32>
    %17 = math.tanh %16 : vector<3x512xf32>
    %cst_11 = arith.constant 2.000000e+00 : f32
    %18 = vector.broadcast %cst_11 : f32 to vector<3x512xf32>
    %19 = arith.mulf %18, %17 : vector<3x512xf32>
    %c0_12 = arith.constant 0 : index
    %c0_13 = arith.constant 0 : index
    %c0_14 = arith.constant 0 : index
    %20 = vector.load %arg8[%c0_12, %c0_13, %c0_14] : memref<1x3x512xf32, #tpu.memory_space<vmem>>, vector<1x3x512xf32>
    %21 = vector.shape_cast %20 : vector<1x3x512xf32> to vector<3x512xf32>
    %22 = vector.shape_cast %19 : vector<3x512xf32> to vector<1x3x512xf32>
    tpu.vector_store %arg8[%c0_12, %c0_13, %c0_14], %22 {strides = array<i32>} : memref<1x3x512xf32, #tpu.memory_space<vmem>>, vector<1x3x512xf32>,
    return
  }
  func.func @transform_0(%arg0: i32, %arg1: i32, %arg2: i32) -> (i32, i32, i32) {
    %c1_i32 = arith.constant 1 : i32
    %0 = arith.muli %arg1, %c1_i32 : i32
    %1 = arith.addi %0, %arg2 : i32
    %c0_i32 = arith.constant 0 : i32
    %c0_i32_0 = arith.constant 0 : i32
    return %arg0, %c0_i32, %1 : i32, i32, i32
  }
  func.func @transform_1(%arg0: i32, %arg1: i32, %arg2: i32) -> (i32, i32) {
    %c0_i32 = arith.constant 0 : i32
    %c0_i32_0 = arith.constant 0 : i32
    %c0_i32_1 = arith.constant 0 : i32
    return %c0_i32, %c0_i32_0 : i32, i32
  }
  func.func @transform_2(%arg0: i32, %arg1: i32, %arg2: i32) -> (i32, i32) {
    %c0_i32 = arith.constant 0 : i32
    %c0_i32_0 = arith.constant 0 : i32
    %c0_i32_1 = arith.constant 0 : i32
    return %c0_i32, %c0_i32_0 : i32, i32
  }
  func.func @transform_3(%arg0: i32, %arg1: i32, %arg2: i32) -> (i32, i32) {
    %c0_i32 = arith.constant 0 : i32
    %c0_i32_0 = arith.constant 0 : i32
    %c0_i32_1 = arith.constant 0 : i32
    return %c0_i32, %c0_i32_0 : i32, i32
  }
  func.func @transform_4(%arg0: i32, %arg1: i32, %arg2: i32) -> (i32, i32) {
    %c0_i32 = arith.constant 0 : i32
    %c0_i32_0 = arith.constant 0 : i32
    %c0_i32_1 = arith.constant 0 : i32
    return %c0_i32, %c0_i32_0 : i32, i32
  }
  func.func @transform_5(%arg0: i32, %arg1: i32, %arg2: i32) -> (i32, i32, i32) {
    %c1_i32 = arith.constant 1 : i32
    %0 = arith.muli %arg1, %c1_i32 : i32
    %1 = arith.addi %0, %arg2 : i32
    %c0_i32 = arith.constant 0 : i32
    %c0_i32_0 = arith.constant 0 : i32
    return %arg0, %c0_i32, %1 : i32, i32, i32
  }
}

</mosaic_0001>

<llo_original>
// kernel: pointgencon_forward.6
$region0: #{pointgencon_forward.6}
  #allocation0 [shape = 'u32[]', space=smem, size = 0x4, offset = 0x4, fixed_abs, tag = 'smem constant byte address 0x4 - core index']
  #allocation1 [shape = 'u32[144,128]{1,0:T(1,128)}', space=vmem, size = 0x12000, scoped, tag = 'internal scratch']
  %s0 = inlined_call_operand.vmem [shape: bf16[2,32,1024], index: 0, kind: input, shape index: {}]
  %s1 = inlined_call_operand.vmem [shape: f32[32,1], index: 1, kind: input, shape index: {}]
  %s2 = inlined_call_operand.vmem [shape: f32[32,1], index: 2, kind: input, shape index: {}]
  %s3 = inlined_call_operand.vmem [shape: bf16[16,32], index: 3, kind: input, shape index: {}]
  %s4 = inlined_call_operand.vmem [shape: bf16[2,16,1024], index: 4, kind: output, shape index: {0}]
  %s5 = inlined_call_operand.vmem [shape: f32[4,16,1], index: 5, kind: output, shape index: {1}]
  %s6 = inlined_call_operand.vmem [shape: f32[4,16,1], index: 6, kind: output, shape index: {2}]
  %7 = xla_tuple %s4, %s5, %s6
  %s8 = sld [smem:[#allocation0]]
  $region111: #{pointgencon_forward.6} parent=0
    _
  %s10 = ssub.s32 1, %s8
  %s11 = scalar_select 0, %s10, %s8
  $region1: #{pointgencon_forward.6} parent=0
    #allocation2 [shape = 'u8[65536]{0}', space=vmem, size = 0x10000, scoped, tag = 'input window, operand 0']
    #allocation3 [shape = 'u8[32768]{0}', space=vmem, size = 0x8000, scoped, tag = 'output window, operand 0']
    loop: start=0, step=1, limit=6
    $region2: #{pointgencon_forward.6} parent=1 // loop_pre_header
      _
    $region3: #{pointgencon_forward.6} parent=1 // loop_header
      %s13 = sphi 0, %s17
      %p14 = scmp.ge.s32.totalorder %s13, 6
      %s20 = sphi 0, %s39
      %s21 = sphi 0, %s35
      %s22 = sphi 0, %s31
      %s23 = sphi 0, %s20
      %s24 = sphi 0, %s21
      %s25 = sphi 0, %s22
      %s26 = sphi 0, %s23
      %s27 = sphi 0, %s24
      %s28 = sphi 0, %s25
      %s46 = sphi 0, %s48
      %s49 = sphi 0, %s46
      %s50 = sphi 0, %s49
      %s66 = sphi 0, %s50
      %s70 = sphi 0, %s70
      %s72 = sphi 0, %s70
      %s73 = sphi 0, %s72
      %s87 = sphi 0, %s73
      %s91 = sphi 0, %s91
      %s93 = sphi 0, %s91
      %s94 = sphi 0, %s93
      %s108 = sphi 0, %s94
      %s112 = sphi 0, %s112
      %s114 = sphi 0, %s112
      %s115 = sphi 0, %s114
      %s129 = sphi 0, %s115
      %s139 = sphi 0, %s141
      %s142 = sphi 0, %s139
      %s143 = sphi 0, %s142
      %s159 = sphi 0, %s143
      %s169 = sphi 0, %s171
      %s172 = sphi 0, %s169
      %s173 = sphi 0, %s172
      %s189 = sphi 0, %s173
      %s199 = sphi 0, %s201
      %s202 = sphi 0, %s199
      %s203 = sphi 0, %s202
      %s219 = sphi 0, %s203
    $region4: #{pointgencon_forward.6} parent=1 // loop_header_branch
      %16 = sbr.rel (%p14) target = $region8
    $region5: #{pointgencon_forward.6} parent=1 // loop_body
      %s18 = ssub.s32 %s13, 1
      %s19 = ssub.s32 %s13, 2
      %s29 = sadd.s32 1, %s22
      %p30 = scmp.ge.s32.totalorder %s29, 1
      %s31 = scalar_select %p30, 0, %s29
      %s32 = sadd.s32 1, %s21
      %s33 = scalar_select %p30, %s32, %s21
      %p34 = scmp.ge.s32.totalorder %s33, 2
      %s35 = scalar_select %p34, 0, %s33
      %s36 = sadd.s32 1, %s20
      %s37 = scalar_select %p34, %s36, %s20
      %p38 = scmp.ge.s32.totalorder %s37, 2
      %s39 = scalar_select %p38, 0, %s37
      %s40 = sadd.s32 %s21, %s22
      %s41 = sadd.s32 %s35, %s31
      %s42 = ssub.s32 %s20, %s39
      %s43 = ssub.s32 %s40, %s41
      %s44 = sor.u32 %s42, %s43
      %p45 = scmp.eq.s32.totalorder %s44, 0
      %s47 = sadd.s32 %s46, 1
      %s48 = scalar_select %p45, %s46, %s47
      %p51 = pneg %p45
      %p52 = scmp.eq.s32.totalorder %s13, 3
      %p53 = por %p51, %p52
      %p54 = scmp.ne.s32.totalorder %s46, %s49
      %p55 = scmp.eq.s32.totalorder %s13, 0
      %p56 = por %p54, %p55
      %p57 = scmp.ne.s32.totalorder %s46, %s49
      %p58 = scmp.eq.s32.totalorder %s18, 3
      %p59 = por %p57, %p58
      %p60 = scmp.ne.s32.totalorder %s49, %s50
      %p61 = scmp.eq.s32.totalorder %s18, 0
      %p62 = por %p60, %p61
      %p63 = scmp.ne.s32.totalorder %s49, %s50
      %p64 = scmp.eq.s32.totalorder %s19, 3
      %p65 = por %p63, %p64
      %p67 = scmp.ne.s32.totalorder %s50, %s66
      %p68 = scmp.eq.s32.totalorder %s19, 0
      %p69 = por %p67, %p68
      %s71 = sadd.s32 %s70, 1
      %p74 = scmp.eq.s32.totalorder %s13, 3
      %p75 = scmp.ne.s32.totalorder %s70, %s72
      %p76 = scmp.eq.s32.totalorder %s13, 0
      %p77 = por %p75, %p76
      %p78 = scmp.ne.s32.totalorder %s70, %s72
      %p79 = scmp.eq.s32.totalorder %s18, 3
      %p80 = por %p78, %p79
      %p81 = scmp.ne.s32.totalorder %s72, %s73
      %p82 = scmp.eq.s32.totalorder %s18, 0
      %p83 = por %p81, %p82
      %p84 = scmp.ne.s32.totalorder %s72, %s73
      %p85 = scmp.eq.s32.totalorder %s19, 3
      %p86 = por %p84, %p85
      %p88 = scmp.ne.s32.totalorder %s73, %s87
      %p89 = scmp.eq.s32.totalorder %s19, 0
      %p90 = por %p88, %p89
      %s92 = sadd.s32 %s91, 1
      %p95 = scmp.eq.s32.totalorder %s13, 3
      %p96 = scmp.ne.s32.totalorder %s91, %s93
      %p97 = scmp.eq.s32.totalorder %s13, 0
      %p98 = por %p96, %p97
      %p99 = scmp.ne.s32.totalorder %s91, %s93
      %p100 = scmp.eq.s32.totalorder %s18, 3
      %p101 = por %p99, %p100
      %p102 = scmp.ne.s32.totalorder %s93, %s94
      %p103 = scmp.eq.s32.totalorder %s18, 0
      %p104 = por %p102, %p103
      %p105 = scmp.ne.s32.totalorder %s93, %s94
      %p106 = scmp.eq.s32.totalorder %s19, 3
      %p107 = por %p105, %p106
      %p109 = scmp.ne.s32.totalorder %s94, %s108
      %p110 = scmp.eq.s32.totalorder %s19, 0
      %p111 = por %p109, %p110
      %s113 = sadd.s32 %s112, 1
      %p116 = scmp.eq.s32.totalorder %s13, 3
      %p117 = scmp.ne.s32.totalorder %s112, %s114
      %p118 = scmp.eq.s32.totalorder %s13, 0
      %p119 = por %p117, %p118
      %p120 = scmp.ne.s32.totalorder %s112, %s114
      %p121 = scmp.eq.s32.totalorder %s18, 3
      %p122 = por %p120, %p121
      %p123 = scmp.ne.s32.totalorder %s114, %s115
      %p124 = scmp.eq.s32.totalorder %s18, 0
      %p125 = por %p123, %p124
      %p126 = scmp.ne.s32.totalorder %s114, %s115
      %p127 = scmp.eq.s32.totalorder %s19, 3
      %p128 = por %p126, %p127
      %p130 = scmp.ne.s32.totalorder %s115, %s129
      %p131 = scmp.eq.s32.totalorder %s19, 0
      %p132 = por %p130, %p131
      %s133 = sadd.s32 %s21, %s22
      %s134 = sadd.s32 %s35, %s31
      %s135 = ssub.s32 %s20, %s39
      %s136 = ssub.s32 %s133, %s134
      %s137 = sor.u32 %s135, %s136
      %p138 = scmp.eq.s32.totalorder %s137, 0
      %s140 = sadd.s32 %s139, 1
      %s141 = scalar_select %p138, %s139, %s140
      %p144 = pneg %p138
      %p145 = scmp.eq.s32.totalorder %s13, 3
      %p146 = por %p144, %p145
      %p147 = scmp.ne.s32.totalorder %s139, %s142
      %p148 = scmp.eq.s32.totalorder %s13, 0
      %p149 = por %p147, %p148
      %p150 = scmp.ne.s32.totalorder %s139, %s142
      %p151 = scmp.eq.s32.totalorder %s18, 3
      %p152 = por %p150, %p151
      %p153 = scmp.ne.s32.totalorder %s142, %s143
      %p154 = scmp.eq.s32.totalorder %s18, 0
      %p155 = por %p153, %p154
      %p156 = scmp.ne.s32.totalorder %s142, %s143
      %p157 = scmp.eq.s32.totalorder %s19, 3
      %p158 = por %p156, %p157
      %p160 = scmp.ne.s32.totalorder %s143, %s159
      %p161 = scmp.eq.s32.totalorder %s19, 0
      %p162 = por %p160, %p161
      %s163 = smul.u32 %s20, 2
      %s164 = sadd.s32 %s163, %s21
      %s165 = smul.u32 %s39, 2
      %s166 = sadd.s32 %s165, %s35
      %s167 = ssub.s32 %s164, %s166
      %p168 = scmp.eq.s32.totalorder %s167, 0
      %s170 = sadd.s32 %s169, 1
      %s171 = scalar_select %p168, %s169, %s170
      %p174 = pneg %p168
      %p175 = scmp.eq.s32.totalorder %s13, 3
      %p176 = por %p174, %p175
      %p177 = scmp.ne.s32.totalorder %s169, %s172
      %p178 = scmp.eq.s32.totalorder %s13, 0
      %p179 = por %p177, %p178
      %p180 = scmp.ne.s32.totalorder %s169, %s172
      %p181 = scmp.eq.s32.totalorder %s18, 3
      %p182 = por %p180, %p181
      %p183 = scmp.ne.s32.totalorder %s172, %s173
      %p184 = scmp.eq.s32.totalorder %s18, 0
      %p185 = por %p183, %p184
      %p186 = scmp.ne.s32.totalorder %s172, %s173
      %p187 = scmp.eq.s32.totalorder %s19, 3
      %p188 = por %p186, %p187
      %p190 = scmp.ne.s32.totalorder %s173, %s189
      %p191 = scmp.eq.s32.totalorder %s19, 0
      %p192 = por %p190, %p191
      %s193 = smul.u32 %s20, 2
      %s194 = sadd.s32 %s193, %s21
      %s195 = smul.u32 %s39, 2
      %s196 = sadd.s32 %s195, %s35
      %s197 = ssub.s32 %s194, %s196
      %p198 = scmp.eq.s32.totalorder %s197, 0
      %s200 = sadd.s32 %s199, 1
      %s201 = scalar_select %p198, %s199, %s200
      %p204 = pneg %p198
      %p205 = scmp.eq.s32.totalorder %s13, 3
      %p206 = por %p204, %p205
      %p207 = scmp.ne.s32.totalorder %s199, %s202
      %p208 = scmp.eq.s32.totalorder %s13, 0
      %p209 = por %p207, %p208
      %p210 = scmp.ne.s32.totalorder %s199, %s202
      %p211 = scmp.eq.s32.totalorder %s18, 3
      %p212 = por %p210, %p211
      %p213 = scmp.ne.s32.totalorder %s202, %s203
      %p214 = scmp.eq.s32.totalorder %s18, 0
      %p215 = por %p213, %p214
      %p216 = scmp.ne.s32.totalorder %s202, %s203
      %p217 = scmp.eq.s32.totalorder %s19, 3
      %p218 = por %p216, %p217
      %p220 = scmp.ne.s32.totalorder %s203, %s219
      %p221 = scmp.eq.s32.totalorder %s19, 0
      %p222 = por %p220, %p221
      %p223 = scmp.le.s32.totalorder 1, %s13
      %p224 = scmp.lt.s32.totalorder %s13, 5
      %p225 = pnand %p223, %p224
      %p226 = pneg %p225
      // Predicated region
      $region9: #{pointgencon_forward.6} parent=5 // pred_check
        _
      $region10: #{pointgencon_forward.6} parent=5 // pred_check_branch
        %228 = sbr.rel (%p225) target = $region12
      $region11: #{pointgencon_forward.6} parent=5 // pred_region
        %s229 = ssub.s32 %s13, 1
        // Predicated region
        $region13: #{pointgencon_forward.6} parent=11 // pred_check
          %p230 = pneg %p83
        $region14: #{pointgencon_forward.6} parent=11 // pred_check_branch
          %232 = sbr.rel (%p230) target = $region16
        $region15: #{pointgencon_forward.6} parent=11 // pred_region
          _
        $region16: #{pointgencon_forward.6} parent=11 // pred_fallthru
          _
        // Predicated region
        $region17: #{pointgencon_forward.6} parent=11 // pred_check
          %p233 = pneg %p104
        $region18: #{pointgencon_forward.6} parent=11 // pred_check_branch
          %235 = sbr.rel (%p233) target = $region20
        $region19: #{pointgencon_forward.6} parent=11 // pred_region
          _
        $region20: #{pointgencon_forward.6} parent=11 // pred_fallthru
          _
        // Predicated region
        $region21: #{pointgencon_forward.6} parent=11 // pred_check
          %p236 = pneg %p125
        $region22: #{pointgencon_forward.6} parent=11 // pred_check_branch
          %238 = sbr.rel (%p236) target = $region24
        $region23: #{pointgencon_forward.6} parent=11 // pred_region
          _
        $region24: #{pointgencon_forward.6} parent=11 // pred_fallthru
          _
      $region12: #{pointgencon_forward.6} parent=5 // pred_fallthru
        _
      %p239 = scmp.lt.s32.totalorder %s13, 4
      // Predicated region
      $region25: #{pointgencon_forward.6} parent=5 // pred_check
        %p240 = pneg %p239
      $region26: #{pointgencon_forward.6} parent=5 // pred_check_branch
        %242 = sbr.rel (%p240) target = $region28
      $region27: #{pointgencon_forward.6} parent=5 // pred_region
        // Predicated region
        $region29: #{pointgencon_forward.6} parent=27 // pred_check
          %p243 = pneg %p56
        $region30: #{pointgencon_forward.6} parent=27 // pred_check_branch
          %245 = sbr.rel (%p243) target = $region32
        $region31: #{pointgencon_forward.6} parent=27 // pred_region
          %s246 = sand.u32 %s46, 1
          %s247 = sand.u32 %s46, 1
          %s248 = smul.addr %s247, 64
          %s249 = scalar_lea.vmem [#allocation2], %s248
          %s250 = sadd.s32 %s21, %s22
          %s251 = smul.u32 4, %s250
          %s252 = smul.addr %s20, 32
          %s253 = sadd.s32 %s251, %s252
          %s254 = smul.addr %s253, 4
          %s255 = scalar_lea.vmem %s0, %s254
          // Predicated region
          $region33: #{pointgencon_forward.6} parent=31 // pred_check
            _
          $region34: #{pointgencon_forward.6} parent=31 // pred_check_branch
            %257 = sbr.rel (0) target = $region36
          $region35: #{pointgencon_forward.6} parent=31 // pred_region
            // Predicated region
            $region37: #{pointgencon_forward.6} parent=35 // pred_check
              _
            $region38: #{pointgencon_forward.6} parent=35 // pred_check_branch
              %259 = sbr.rel (0) target = $region40
            $region39: #{pointgencon_forward.6} parent=35 // pred_region
              loop: start=0, step=1, limit=1
              $region41: #{pointgencon_forward.6} parent=39 // loop_pre_header
                _
              $region42: #{pointgencon_forward.6} parent=39 // loop_header
                %s261 = sphi 0, %s265
                %p262 = scmp.ge.s32.totalorder %s261, 1
                %s266 = sphi %s255, %s255
                %s267 = sphi %s249, %s249
              $region43: #{pointgencon_forward.6} parent=39 // loop_header_branch
                %264 = sbr.rel (%p262) target = $region47
              $region44: #{pointgencon_forward.6} parent=39 // loop_body
                %v268 = vld [vmem:[%s266] sm:$0xff]
                %269 = vst [vmem:[%s267] sm:$0xff] %v268
                %v270 = vld [vmem:[%s266 + $0x8] sm:$0xff]
                %271 = vst [vmem:[%s267 + $0x8] sm:$0xff] %v270
                %v272 = vld [vmem:[%s266 + $0x20] sm:$0xff]
                %273 = vst [vmem:[%s267 + $0x10] sm:$0xff] %v272
                %v274 = vld [vmem:[%s266 + $0x28] sm:$0xff]
                %275 = vst [vmem:[%s267 + $0x18] sm:$0xff] %v274
                %v276 = vld [vmem:[%s266 + $0x40] sm:$0xff]
                %277 = vst [vmem:[%s267 + $0x20] sm:$0xff] %v276
                %v278 = vld [vmem:[%s266 + $0x48] sm:$0xff]
                %279 = vst [vmem:[%s267 + $0x28] sm:$0xff] %v278
                %v280 = vld [vmem:[%s266 + $0x60] sm:$0xff]
                %281 = vst [vmem:[%s267 + $0x30] sm:$0xff] %v280
                %v282 = vld [vmem:[%s266 + $0x68] sm:$0xff]
                %283 = vst [vmem:[%s267 + $0x38] sm:$0xff] %v282
              $region45: #{pointgencon_forward.6} parent=39 // loop_footer
                %s265 = sadd.s32 1, %s261
              $region46: #{pointgencon_forward.6} parent=39 // loop_footer_branch
                %260 = sbr.rel target = $region42
              $region47: #{pointgencon_forward.6} parent=39 // loop_exit
                _
            $region40: #{pointgencon_forward.6} parent=35 // pred_fallthru
              _
            // Predicated region
            $region48: #{pointgencon_forward.6} parent=35 // pred_check
              _
            $region49: #{pointgencon_forward.6} parent=35 // pred_check_branch
              %285 = sbr.rel target = $region51
            $region50: #{pointgencon_forward.6} parent=35 // pred_region
              _
            $region51: #{pointgencon_forward.6} parent=35 // pred_fallthru
              _
          $region36: #{pointgencon_forward.6} parent=31 // pred_fallthru
            _
          %286 = vnop
        $region32: #{pointgencon_forward.6} parent=27 // pred_fallthru
          _
      $region28: #{pointgencon_forward.6} parent=5 // pred_fallthru
        _
      %p287 = scmp.le.s32.totalorder 1, %s13
      %p288 = scmp.lt.s32.totalorder %s13, 5
      %p289 = pnand %p287, %p288
      %p290 = pneg %p289
      // Predicated region
      $region52: #{pointgencon_forward.6} parent=5 // pred_check
        _
      $region53: #{pointgencon_forward.6} parent=5 // pred_check_branch
        %292 = sbr.rel (%p289) target = $region55
      $region54: #{pointgencon_forward.6} parent=5 // pred_region
        %s293 = ssub.s32 %s13, 1
        %s294 = sand.u32 %s49, 1
        %s295 = sand.u32 %s49, 1
        %s296 = smul.addr %s295, 64
        %s297 = scalar_lea.vmem [#allocation2], %s296
        // Predicated region
        $region56: #{pointgencon_forward.6} parent=54 // pred_check
          %p298 = pneg %p62
        $region57: #{pointgencon_forward.6} parent=54 // pred_check_branch
          %300 = sbr.rel (%p298) target = $region59
        $region58: #{pointgencon_forward.6} parent=54 // pred_region
          _
        $region59: #{pointgencon_forward.6} parent=54 // pred_fallthru
          _
        %s301 = sand.u32 %s49, 1
        %s302 = sand.u32 %s49, 1
        %s303 = smul.addr %s302, 64
        %s304 = scalar_lea.vmem [#allocation2], %s303
        %p305 = pneg %p62
        %p306 = pneg %p59
        %p307 = pneg %p83
        %p308 = pneg %p80
        %p309 = pneg %p104
        %p310 = pneg %p101
        %p311 = pneg %p125
        %p312 = pneg %p122
        %p313 = pneg %p155
        %p314 = pneg %p152
        %s315 = sand.u32 %s142, 1
        %s316 = sand.u32 %s142, 1
        %s317 = smul.addr %s316, 32
        %s318 = scalar_lea.vmem [#allocation3], %s317
        %p319 = pneg %p185
        %p320 = pneg %p182
        %s321 = smul.u32 %s23, 2
        %s322 = sadd.s32 %s321, %s24
        %p323 = scmp.lt.s32.totalorder %s322, 3
        %s324 = scalar_select %p323, %s322, 3
        %s325 = smul.addr %s324, 2
        %s326 = smul.addr %s325, 8
        %s327 = scalar_lea.vmem %s5, %s326
        %p328 = pneg %p215
        %p329 = pneg %p212
        %s330 = smul.u32 %s23, 2
        %s331 = sadd.s32 %s330, %s24
        %p332 = scmp.lt.s32.totalorder %s331, 3
        %s333 = scalar_select %p332, %s331, 3
        %s334 = smul.addr %s333, 2
        %s335 = smul.addr %s334, 8
        %s336 = scalar_lea.vmem %s6, %s335
        %s337 = sadd.s32 %s24, %s25
        %s338 = smul.u32 4, %s337
        %s339 = sadd.s32 %s24, %s25
        %s340 = smul.u32 4, %s339
        %s341 = smul.u32 %s23, 2
        %s342 = sadd.s32 %s341, %s24
        %p343 = scmp.lt.s32.totalorder %s342, 3
        %s344 = scalar_select %p343, %s342, 3
        %s345 = smul.addr %s344, 2
        %s346 = smul.addr %s345, 8
        %s347 = scalar_lea.vmem %s5, %s346
        %s348 = smul.u32 %s23, 2
        %s349 = sadd.s32 %s348, %s24
        %s350 = smul.u32 %s23, 2
        %s351 = sadd.s32 %s350, %s24
        %p352 = scmp.lt.s32.totalorder %s351, 3
        %s353 = scalar_select %p352, %s351, 3
        %s354 = smul.addr %s353, 2
        %s355 = smul.addr %s354, 8
        %s356 = scalar_lea.vmem %s6, %s355
        %s357 = smul.u32 %s23, 2
        %s358 = sadd.s32 %s357, %s24
        %p360 = scmp.eq.s32.totalorder %s25, 0
        // Predicated region
        $region60: #{pointgencon_forward.6} parent=54 // pred_check
          %p361 = pneg %p360
        $region61: #{pointgencon_forward.6} parent=54 // pred_check_branch
          %363 = sbr.rel (%p361) target = $region63
        $region62: #{pointgencon_forward.6} parent=54 // pred_region
          %vm364 = vcmask 7168
          %365 = vst.msk [vmem:[%s347] sm:$0xff] %vm364, 0.0
          %366 = vst.msk [vmem:[%s347 + $0x8] sm:$0xff] %vm364, 0.0
          %367 = vst.msk [vmem:[%s356] sm:$0xff] %vm364, 0.0
          %368 = vst.msk [vmem:[%s356 + $0x8] sm:$0xff] %vm364, 0.0
        $region63: #{pointgencon_forward.6} parent=54 // pred_fallthru
          _
        %v369 = vld [vmem:[%s297] sm:$0xff]
        %v370 = vld [vmem:[%s297 + $0x8] sm:$0xff]
        %v371 = vld [vmem:[%s297 + $0x10] sm:$0xff]
        %v372 = vld [vmem:[%s297 + $0x18] sm:$0xff]
        %v373 = vld [vmem:[%s297 + $0x20] sm:$0xff]
        %v374 = vld [vmem:[%s297 + $0x28] sm:$0xff]
        %v375 = vld [vmem:[%s297 + $0x30] sm:$0xff]
        %v376 = vld [vmem:[%s297 + $0x38] sm:$0xff]
        %v377 = vunpack.c.l.bf16 %v369
        %v378 = vunpack.c.h.bf16 %v369
        %v379 = vunpack.c.l.bf16 %v370
        %v380 = vunpack.c.h.bf16 %v370
        %v381 = vunpack.c.l.bf16 %v371
        %v382 = vunpack.c.h.bf16 %v371
        %v383 = vunpack.c.l.bf16 %v372
        %v384 = vunpack.c.h.bf16 %v372
        %v385 = vunpack.c.l.bf16 %v373
        %v386 = vunpack.c.h.bf16 %v373
        %v387 = vunpack.c.l.bf16 %v374
        %v388 = vunpack.c.h.bf16 %v374
        %v389 = vunpack.c.l.bf16 %v375
        %v390 = vunpack.c.h.bf16 %v375
        %v391 = vunpack.c.l.bf16 %v376
        %v392 = vunpack.c.h.bf16 %v376
        %v393 = vld [vmem:[%s1] sm:$0xff]
        %v394 = vld [vmem:[%s1 + $0x8] sm:$0xff]
        %v395 = vld [vmem:[%s1 + $0x10] sm:$0xff]
        %v396 = vld [vmem:[%s1 + $0x18] sm:$0xff]
        %398 = vset.pattern.permute.xlu0 0
        %399 = vperm.xlu0 %398, %v393
        %v400 = vpop.permute.xlu0 %399
        %403 = vset.pattern.permute.xlu0 0
        %404 = vperm.xlu0 %403, %v394
        %v405 = vpop.permute.xlu0 %404
        %408 = vset.pattern.permute.xlu0 0
        %409 = vperm.xlu0 %408, %v395
        %v410 = vpop.permute.xlu0 %409
        %413 = vset.pattern.permute.xlu0 0
        %414 = vperm.xlu0 %413, %v396
        %v415 = vpop.permute.xlu0 %414
        %v417 = vmul.f32 %v377, %v400
        %v418 = vmul.f32 %v378, %v400
        %v419 = vmul.f32 %v379, %v400
        %v420 = vmul.f32 %v380, %v400
        %v421 = vmul.f32 %v381, %v405
        %v422 = vmul.f32 %v382, %v405
        %v423 = vmul.f32 %v383, %v405
        %v424 = vmul.f32 %v384, %v405
        %v425 = vmul.f32 %v385, %v410
        %v426 = vmul.f32 %v386, %v410
        %v427 = vmul.f32 %v387, %v410
        %v428 = vmul.f32 %v388, %v410
        %v429 = vmul.f32 %v389, %v415
        %v430 = vmul.f32 %v390, %v415
        %v431 = vmul.f32 %v391, %v415
        %v432 = vmul.f32 %v392, %v415
        %v433 = vld [vmem:[%s2] sm:$0xff]
        %v434 = vld [vmem:[%s2 + $0x8] sm:$0xff]
        %v435 = vld [vmem:[%s2 + $0x10] sm:$0xff]
        %v436 = vld [vmem:[%s2 + $0x18] sm:$0xff]
        %438 = vset.pattern.permute.xlu0 0
        %439 = vperm.xlu0 %438, %v433
        %v440 = vpop.permute.xlu0 %439
        %443 = vset.pattern.permute.xlu0 0
        %444 = vperm.xlu0 %443, %v434
        %v445 = vpop.permute.xlu0 %444
        %448 = vset.pattern.permute.xlu0 0
        %449 = vperm.xlu0 %448, %v435
        %v450 = vpop.permute.xlu0 %449
        %453 = vset.pattern.permute.xlu0 0
        %454 = vperm.xlu0 %453, %v436
        %v455 = vpop.permute.xlu0 %454
        %v457 = vadd.f32 %v417, %v440
        %v458 = vadd.f32 %v418, %v440
        %v459 = vadd.f32 %v419, %v440
        %v460 = vadd.f32 %v420, %v440
        %v461 = vadd.f32 %v421, %v445
        %v462 = vadd.f32 %v422, %v445
        %v463 = vadd.f32 %v423, %v445
        %v464 = vadd.f32 %v424, %v445
        %v465 = vadd.f32 %v425, %v450
        %v466 = vadd.f32 %v426, %v450
        %v467 = vadd.f32 %v427, %v450
        %v468 = vadd.f32 %v428, %v450
        %v469 = vadd.f32 %v429, %v455
        %v470 = vadd.f32 %v430, %v455
        %v471 = vadd.f32 %v431, %v455
        %v472 = vadd.f32 %v432, %v455
        %v473 = vmax.f32 %v457, 0.0
        %v474 = vmax.f32 %v458, 0.0
        %v475 = vmax.f32 %v459, 0.0
        %v476 = vmax.f32 %v460, 0.0
        %v477 = vmax.f32 %v461, 0.0
        %v478 = vmax.f32 %v462, 0.0
        %v479 = vmax.f32 %v463, 0.0
        %v480 = vmax.f32 %v464, 0.0
        %v481 = vmax.f32 %v465, 0.0
        %v482 = vmax.f32 %v466, 0.0
        %v483 = vmax.f32 %v467, 0.0
        %v484 = vmax.f32 %v468, 0.0
        %v485 = vmax.f32 %v469, 0.0
        %v486 = vmax.f32 %v470, 0.0
        %v487 = vmax.f32 %v471, 0.0
        %v488 = vmax.f32 %v472, 0.0
        %v489 = vld [vmem:[%s3] sm:$0xf]
        %v490 = vld [vmem:[%s3 + $0x4] sm:$0xf]
        %v491 = vpack.c.bf16 %v477, %v473
        %v492 = vpack.c.bf16 %v478, %v474
        %v493 = vpack.c.bf16 %v479, %v475
        %v494 = vpack.c.bf16 %v480, %v476
        %v495 = vpack.c.bf16 %v485, %v481
        %v496 = vpack.c.bf16 %v486, %v482
        %v497 = vpack.c.bf16 %v487, %v483
        %v498 = vpack.c.bf16 %v488, %v484
        %v501 = vunpack.c.l.b16 %v489
        %v502 = vunpack.c.l.b16 %v490
        %v503 = vpack.c.b16 %v502, %v501
        %vm504 = vcmask 261120
        %v506 = vsel %vm504, %v503, 0
        %508 = vmatprep.subr.bf16.mxu0 %v492
        %509 = vmatpush1.bf16.msra.mxu0 %v491
        %510 = vmatprep.subr.bf16.mxu0 %v496
        %511 = vmatpush1.bf16.msra.mxu0 %v495
        %512 = vmatprep.subr.bf16.mxu0 0
        %513 = vmatpush1.bf16.msra.mxu0 0
        %514 = vmatprep.subr.bf16.mxu0 0
        %515 = vmatpush1.bf16.msra.mxu0 0
        %516 = vmatprep.subr.bf16.mxu0 0
        %517 = vmatpush1.bf16.msra.mxu0 0
        %518 = vmatprep.subr.bf16.mxu0 0
        %519 = vmatpush1.bf16.msra.mxu0 0
        %520 = vmatprep.subr.bf16.mxu0 0
        %521 = vmatpush1.bf16.msra.mxu0 0
        %522 = vmatprep.subr.bf16.mxu0 0
        %523 = vmatpush1.bf16.msra.mxu0 0
        %524 = vmatprep.subr.bf16.mxu0 0
        %525 = vmatpush1.bf16.msra.mxu0 0
        %526 = vmatprep.subr.bf16.mxu0 0
        %527 = vmatpush1.bf16.msra.mxu0 0
        %528 = vmatprep.subr.bf16.mxu0 0
        %529 = vmatpush1.bf16.msra.mxu0 0
        %530 = vmatprep.subr.bf16.mxu0 0
        %531 = vmatpush1.bf16.msra.mxu0 0
        %532 = vmatprep.subr.bf16.mxu0 0
        %533 = vmatpush1.bf16.msra.mxu0 0
        %534 = vmatprep.subr.bf16.mxu0 0
        %535 = vmatpush1.bf16.msra.mxu0 0
        %536 = vmatprep.subr.bf16.mxu0 0
        %537 = vmatpush1.bf16.msra.mxu0 0
        %538 = vmatprep.subr.bf16.mxu0 0
        %539 = vmatpush1.bf16.msra.mxu0 0
        %540 = vmatprep.mubr.bf16.mxu0 0
        %541 = vmatmul.mubr.bf16.gmra.mrb[0].mxu0 %v506
        %v542 = vpop.f32.mrb[0].mxu0
        %v543 = vadd.f32 0.0, %v542
        %v544 = vpop.f32.mrb[0].mxu0
        %v545 = vadd.f32 0.0, %v544
        %v546 = vpop.f32.mrb[0].mxu0
        %v547 = vadd.f32 0.0, %v546
        %v548 = vpop.f32.mrb[0].mxu0
        %v549 = vadd.f32 0.0, %v548
        %550 = vdwg.mxu0
        %551 = vmatprep.subr.bf16.mxu0 %v494
        %552 = vmatpush1.bf16.msra.mxu0 %v493
        %553 = vmatprep.subr.bf16.mxu0 %v498
        %554 = vmatpush1.bf16.msra.mxu0 %v497
        %555 = vmatprep.subr.bf16.mxu0 0
        %556 = vmatpush1.bf16.msra.mxu0 0
        %557 = vmatprep.subr.bf16.mxu0 0
        %558 = vmatpush1.bf16.msra.mxu0 0
        %559 = vmatprep.subr.bf16.mxu0 0
        %560 = vmatpush1.bf16.msra.mxu0 0
        %561 = vmatprep.subr.bf16.mxu0 0
        %562 = vmatpush1.bf16.msra.mxu0 0
        %563 = vmatprep.subr.bf16.mxu0 0
        %564 = vmatpush1.bf16.msra.mxu0 0
        %565 = vmatprep.subr.bf16.mxu0 0
        %566 = vmatpush1.bf16.msra.mxu0 0
        %567 = vmatprep.subr.bf16.mxu0 0
        %568 = vmatpush1.bf16.msra.mxu0 0
        %569 = vmatprep.subr.bf16.mxu0 0
        %570 = vmatpush1.bf16.msra.mxu0 0
        %571 = vmatprep.subr.bf16.mxu0 0
        %572 = vmatpush1.bf16.msra.mxu0 0
        %573 = vmatprep.subr.bf16.mxu0 0
        %574 = vmatpush1.bf16.msra.mxu0 0
        %575 = vmatprep.subr.bf16.mxu0 0
        %576 = vmatpush1.bf16.msra.mxu0 0
        %577 = vmatprep.subr.bf16.mxu0 0
        %578 = vmatpush1.bf16.msra.mxu0 0
        %579 = vmatprep.subr.bf16.mxu0 0
        %580 = vmatpush1.bf16.msra.mxu0 0
        %581 = vmatprep.subr.bf16.mxu0 0
        %582 = vmatpush1.bf16.msra.mxu0 0
        %583 = vmatprep.mubr.bf16.mxu0 0
        %584 = vmatmul.mubr.bf16.gmra.mrb[0].mxu0 %v506
        %v585 = vpop.f32.mrb[0].mxu0
        %v586 = vadd.f32 0.0, %v585
        %v587 = vpop.f32.mrb[0].mxu0
        %v588 = vadd.f32 0.0, %v587
        %v589 = vpop.f32.mrb[0].mxu0
        %v590 = vadd.f32 0.0, %v589
        %v591 = vpop.f32.mrb[0].mxu0
        %v592 = vadd.f32 0.0, %v591
        %593 = vdwg.mxu0
        %v594 = vpack.c.bf16 %v547, %v543
        %v595 = vpack.c.bf16 %v549, %v545
        %v596 = vpack.c.bf16 %v590, %v586
        %v597 = vpack.c.bf16 %v592, %v588
        %v602 = vunpack.c.l.b16 %v594
        %v603 = vunpack.c.l.b16 %v595
        %v604 = vunpack.c.l.b16 %v596
        %v605 = vunpack.c.l.b16 %v597
        %v606 = vunpack.c.h.b16 %v594
        %v607 = vunpack.c.h.b16 %v595
        %v608 = vunpack.c.h.b16 %v596
        %v609 = vunpack.c.h.b16 %v597
        %v610 = vpack.c.b16 %v603, %v602
        %v611 = vpack.c.b16 %v605, %v604
        %v612 = vpack.c.b16 %v607, %v606
        %v613 = vpack.c.b16 %v609, %v608
        %618 = vst [vmem:[%s318] sm:$0xff] %v610
        %619 = vst [vmem:[%s318 + $0x8] sm:$0xff] %v611
        %620 = vst [vmem:[%s318 + $0x10] sm:$0xff] %v612
        %621 = vst [vmem:[%s318 + $0x18] sm:$0xff] %v613
        %v622 = vld [vmem:[%s347] sm:$0xff]
        %v623 = vld [vmem:[%s347 + $0x8] sm:$0xff]
        %v624 = vadd.f32 %v543, %v545
        %v625 = vadd.f32 %v624, %v586
        %v626 = vadd.f32 %v625, %v588
        %627 = vadd.xlane.f32.xlu0 %v626
        %v628 = vpop.xlane.xlu0 %627
        %v629 = vadd.f32 %v547, %v549
        %v630 = vadd.f32 %v629, %v590
        %v631 = vadd.f32 %v630, %v592
        %632 = vadd.xlane.f32.xlu0 %v631
        %v633 = vpop.xlane.xlu0 %632
        %v634 = vadd.f32 %v622, %v628
        %v635 = vadd.f32 %v623, %v633
        %vm636 = vcmask 7168
        %637 = vst.msk [vmem:[%s347] sm:$0xff] %vm636, %v634
        %638 = vst.msk [vmem:[%s347 + $0x8] sm:$0xff] %vm636, %v635
        %v639 = vld [vmem:[%s356] sm:$0xff]
        %v640 = vld [vmem:[%s356 + $0x8] sm:$0xff]
        %v641 = vmul.f32 %v543, %v543
        %v642 = vmul.f32 %v545, %v545
        %v643 = vmul.f32 %v586, %v586
        %v644 = vmul.f32 %v588, %v588
        %v645 = vmul.f32 %v547, %v547
        %v646 = vmul.f32 %v549, %v549
        %v647 = vmul.f32 %v590, %v590
        %v648 = vmul.f32 %v592, %v592
        %v649 = vadd.f32 %v641, %v642
        %v650 = vadd.f32 %v649, %v643
        %v651 = vadd.f32 %v650, %v644
        %652 = vadd.xlane.f32.xlu0 %v651
        %v653 = vpop.xlane.xlu0 %652
        %v654 = vadd.f32 %v645, %v646
        %v655 = vadd.f32 %v654, %v647
        %v656 = vadd.f32 %v655, %v648
        %657 = vadd.xlane.f32.xlu0 %v656
        %v658 = vpop.xlane.xlu0 %657
        %v659 = vadd.f32 %v639, %v653
        %v660 = vadd.f32 %v640, %v658
        %661 = vst.msk [vmem:[%s356] sm:$0xff] %vm636, %v659
        %662 = vst.msk [vmem:[%s356 + $0x8] sm:$0xff] %vm636, %v660
        %s663 = sand.u32 %s142, 1
        %s664 = sand.u32 %s142, 1
        %s665 = smul.addr %s664, 32
        %s666 = scalar_lea.vmem [#allocation3], %s665
        %s667 = smul.u32 %s23, 2
        %s668 = sadd.s32 %s667, %s24
        %p669 = scmp.lt.s32.totalorder %s668, 3
        %s670 = scalar_select %p669, %s668, 3
        %s671 = smul.addr %s670, 2
        %s672 = smul.addr %s671, 8
        %s673 = scalar_lea.vmem %s5, %s672
        %s674 = smul.u32 %s23, 2
        %s675 = sadd.s32 %s674, %s24
        %p676 = scmp.lt.s32.totalorder %s675, 3
        %s677 = scalar_select %p676, %s675, 3
        %s678 = smul.addr %s677, 2
        %s679 = smul.addr %s678, 8
        %s680 = scalar_lea.vmem %s6, %s679
        // Predicated region
        $region64: #{pointgencon_forward.6} parent=54 // pred_check
          %p681 = pneg %p152
        $region65: #{pointgencon_forward.6} parent=54 // pred_check_branch
          %683 = sbr.rel (%p681) target = $region67
        $region66: #{pointgencon_forward.6} parent=54 // pred_region
          %s684 = sadd.s32 %s24, %s25
          %s685 = smul.u32 4, %s684
          %s686 = smul.addr %s23, 16
          %s687 = sadd.s32 %s685, %s686
          %s688 = smul.addr %s687, 4
          %s689 = scalar_lea.vmem %s4, %s688
          // Predicated region
          $region68: #{pointgencon_forward.6} parent=66 // pred_check
            _
          $region69: #{pointgencon_forward.6} parent=66 // pred_check_branch
            %691 = sbr.rel (0) target = $region71
          $region70: #{pointgencon_forward.6} parent=66 // pred_region
            // Predicated region
            $region72: #{pointgencon_forward.6} parent=70 // pred_check
              _
            $region73: #{pointgencon_forward.6} parent=70 // pred_check_branch
              %693 = sbr.rel (0) target = $region75
            $region74: #{pointgencon_forward.6} parent=70 // pred_region
              loop: start=0, step=1, limit=1
              $region76: #{pointgencon_forward.6} parent=74 // loop_pre_header
                _
              $region77: #{pointgencon_forward.6} parent=74 // loop_header
                %s695 = sphi 0, %s699
                %p696 = scmp.ge.s32.totalorder %s695, 1
                %s700 = sphi %s666, %s666
                %s701 = sphi %s689, %s689
              $region78: #{pointgencon_forward.6} parent=74 // loop_header_branch
                %698 = sbr.rel (%p696) target = $region82
              $region79: #{pointgencon_forward.6} parent=74 // loop_body
                %v702 = vld [vmem:[%s700] sm:$0xff]
                %703 = vst [vmem:[%s701] sm:$0xff] %v702
                %v704 = vld [vmem:[%s700 + $0x8] sm:$0xff]
                %705 = vst [vmem:[%s701 + $0x8] sm:$0xff] %v704
                %v706 = vld [vmem:[%s700 + $0x10] sm:$0xff]
                %707 = vst [vmem:[%s701 + $0x20] sm:$0xff] %v706
                %v708 = vld [vmem:[%s700 + $0x18] sm:$0xff]
                %709 = vst [vmem:[%s701 + $0x28] sm:$0xff] %v708
              $region80: #{pointgencon_forward.6} parent=74 // loop_footer
                %s699 = sadd.s32 1, %s695
              $region81: #{pointgencon_forward.6} parent=74 // loop_footer_branch
                %694 = sbr.rel target = $region77
              $region82: #{pointgencon_forward.6} parent=74 // loop_exit
                _
            $region75: #{pointgencon_forward.6} parent=70 // pred_fallthru
              _
            // Predicated region
            $region83: #{pointgencon_forward.6} parent=70 // pred_check
              _
            $region84: #{pointgencon_forward.6} parent=70 // pred_check_branch
              %711 = sbr.rel target = $region86
            $region85: #{pointgencon_forward.6} parent=70 // pred_region
              _
            $region86: #{pointgencon_forward.6} parent=70 // pred_fallthru
              _
          $region71: #{pointgencon_forward.6} parent=66 // pred_fallthru
            _
          %712 = vnop
        $region67: #{pointgencon_forward.6} parent=54 // pred_fallthru
          _
        // Predicated region
        $region87: #{pointgencon_forward.6} parent=54 // pred_check
          %p713 = pneg %p182
        $region88: #{pointgencon_forward.6} parent=54 // pred_check_branch
          %715 = sbr.rel (%p713) target = $region90
        $region89: #{pointgencon_forward.6} parent=54 // pred_region
          %s716 = smul.u32 %s23, 2
          %s717 = sadd.s32 %s716, %s24
        $region90: #{pointgencon_forward.6} parent=54 // pred_fallthru
          _
        // Predicated region
        $region91: #{pointgencon_forward.6} parent=54 // pred_check
          %p718 = pneg %p212
        $region92: #{pointgencon_forward.6} parent=54 // pred_check_branch
          %720 = sbr.rel (%p718) target = $region94
        $region93: #{pointgencon_forward.6} parent=54 // pred_region
          %s721 = smul.u32 %s23, 2
          %s722 = sadd.s32 %s721, %s24
        $region94: #{pointgencon_forward.6} parent=54 // pred_fallthru
          _
      $region55: #{pointgencon_forward.6} parent=5 // pred_fallthru
        _
      %p723 = scmp.le.s32.totalorder 2, %s13
      // Predicated region
      $region95: #{pointgencon_forward.6} parent=5 // pred_check
        %p724 = pneg %p723
      $region96: #{pointgencon_forward.6} parent=5 // pred_check_branch
        %726 = sbr.rel (%p724) target = $region98
      $region97: #{pointgencon_forward.6} parent=5 // pred_region
        %s727 = ssub.s32 %s13, 2
        // Predicated region
        $region99: #{pointgencon_forward.6} parent=97 // pred_check
          %p728 = pneg %p158
        $region100: #{pointgencon_forward.6} parent=97 // pred_check_branch
          %730 = sbr.rel (%p728) target = $region102
        $region101: #{pointgencon_forward.6} parent=97 // pred_region
          %s731 = sand.u32 %s143, 1
          %s732 = sand.u32 %s143, 1
          %s733 = smul.addr %s732, 32
          %s734 = scalar_lea.vmem [#allocation3], %s733
        $region102: #{pointgencon_forward.6} parent=97 // pred_fallthru
          _
        // Predicated region
        $region103: #{pointgencon_forward.6} parent=97 // pred_check
          %p735 = pneg %p188
        $region104: #{pointgencon_forward.6} parent=97 // pred_check_branch
          %737 = sbr.rel (%p735) target = $region106
        $region105: #{pointgencon_forward.6} parent=97 // pred_region
          %s738 = smul.u32 %s26, 2
          %s739 = sadd.s32 %s738, %s27
          %p740 = scmp.lt.s32.totalorder %s739, 3
          %s741 = scalar_select %p740, %s739, 3
          %s742 = smul.addr %s741, 2
          %s743 = smul.addr %s742, 8
          %s744 = scalar_lea.vmem %s5, %s743
        $region106: #{pointgencon_forward.6} parent=97 // pred_fallthru
          _
        // Predicated region
        $region107: #{pointgencon_forward.6} parent=97 // pred_check
          %p745 = pneg %p218
        $region108: #{pointgencon_forward.6} parent=97 // pred_check_branch
          %747 = sbr.rel (%p745) target = $region110
        $region109: #{pointgencon_forward.6} parent=97 // pred_region
          %s748 = smul.u32 %s26, 2
          %s749 = sadd.s32 %s748, %s27
          %p750 = scmp.lt.s32.totalorder %s749, 3
          %s751 = scalar_select %p750, %s749, 3
          %s752 = smul.addr %s751, 2
          %s753 = smul.addr %s752, 8
          %s754 = scalar_lea.vmem %s6, %s753
        $region110: #{pointgencon_forward.6} parent=97 // pred_fallthru
          _
      $region98: #{pointgencon_forward.6} parent=5 // pred_fallthru
        _
    $region6: #{pointgencon_forward.6} parent=1 // loop_footer
      %s17 = sadd.s32 1, %s13
    $region7: #{pointgencon_forward.6} parent=1 // loop_footer_branch
      %12 = sbr.rel target = $region3
    $region8: #{pointgencon_forward.6} parent=1 // loop_exit
      _

// kernel: pointgencon_forward.4
$region0: #{pointgencon_forward.4}
  #allocation0 [shape = 'u32[]', space=smem, size = 0x4, offset = 0x4, fixed_abs, tag = 'smem constant byte address 0x4 - core index']
  #allocation1 [shape = 'u32[144,128]{1,0:T(1,128)}', space=vmem, size = 0x12000, scoped, tag = 'internal scratch']
  %s0 = inlined_call_operand.hbm [shape: f32[2,64,1024], index: 0, kind: input, shape index: {}]
  %s1 = inlined_call_operand.vmem [shape: bf16[64,64], index: 1, kind: input, shape index: {}]
  %s2 = inlined_call_operand.vmem [shape: bf16[2,64,1024], index: 2, kind: output, shape index: {0}]
  %s3 = inlined_call_operand.vmem [shape: f32[4,64,1], index: 3, kind: output, shape index: {1}]
  %s4 = inlined_call_operand.vmem [shape: f32[4,64,1], index: 4, kind: output, shape index: {2}]
  %5 = xla_tuple %s2, %s3, %s4
  %s6 = sld [smem:[#allocation0]]
  $region84: #{pointgencon_forward.4} parent=0
    _
  %s8 = ssub.s32 1, %s6
  %s9 = scalar_select 0, %s8, %s6
  $region1: #{pointgencon_forward.4} parent=0
    #allocation2 [shape = 'u8[262144]{0}', space=vmem, size = 0x40000, scoped, tag = 'input window, operand 0']
    #allocation3 [shape = 's32[2]{0}', space=sflag, size = 0x8, scoped, tag = 'scoped memory for pointgencon_forward.4']
    #allocation4 [shape = 'u8[131072]{0}', space=vmem, size = 0x20000, scoped, tag = 'output window, operand 0']
    %10 = vsyncpa [#allocation3], 0
    %s11 = scalar_lea.sflag [#allocation3], 1
    %12 = vsyncpa %s11, 0
    loop: start=0, step=1, limit=6
    $region2: #{pointgencon_forward.4} parent=1 // loop_pre_header
      _
    $region3: #{pointgencon_forward.4} parent=1 // loop_header
      %s14 = sphi 0, %s18
      %p15 = scmp.ge.s32.totalorder %s14, 6
      %s21 = sphi 0, %s40
      %s22 = sphi 0, %s36
      %s23 = sphi 0, %s32
      %s24 = sphi 0, %s21
      %s25 = sphi 0, %s22
      %s26 = sphi 0, %s23
      %s27 = sphi 0, %s24
      %s28 = sphi 0, %s25
      %s29 = sphi 0, %s26
      %s47 = sphi 0, %s49
      %s50 = sphi 0, %s47
      %s51 = sphi 0, %s50
      %s67 = sphi 0, %s51
      %s71 = sphi 0, %s71
      %s73 = sphi 0, %s71
      %s74 = sphi 0, %s73
      %s88 = sphi 0, %s74
      %s98 = sphi 0, %s100
      %s101 = sphi 0, %s98
      %s102 = sphi 0, %s101
      %s118 = sphi 0, %s102
      %s128 = sphi 0, %s130
      %s131 = sphi 0, %s128
      %s132 = sphi 0, %s131
      %s148 = sphi 0, %s132
      %s158 = sphi 0, %s160
      %s161 = sphi 0, %s158
      %s162 = sphi 0, %s161
      %s178 = sphi 0, %s162
    $region4: #{pointgencon_forward.4} parent=1 // loop_header_branch
      %17 = sbr.rel (%p15) target = $region8
    $region5: #{pointgencon_forward.4} parent=1 // loop_body
      %s19 = ssub.s32 %s14, 1
      %s20 = ssub.s32 %s14, 2
      %s30 = sadd.s32 1, %s23
      %p31 = scmp.ge.s32.totalorder %s30, 1
      %s32 = scalar_select %p31, 0, %s30
      %s33 = sadd.s32 1, %s22
      %s34 = scalar_select %p31, %s33, %s22
      %p35 = scmp.ge.s32.totalorder %s34, 2
      %s36 = scalar_select %p35, 0, %s34
      %s37 = sadd.s32 1, %s21
      %s38 = scalar_select %p35, %s37, %s21
      %p39 = scmp.ge.s32.totalorder %s38, 2
      %s40 = scalar_select %p39, 0, %s38
      %s41 = sadd.s32 %s22, %s23
      %s42 = sadd.s32 %s36, %s32
      %s43 = ssub.s32 %s21, %s40
      %s44 = ssub.s32 %s41, %s42
      %s45 = sor.u32 %s43, %s44
      %p46 = scmp.eq.s32.totalorder %s45, 0
      %s48 = sadd.s32 %s47, 1
      %s49 = scalar_select %p46, %s47, %s48
      %p52 = pneg %p46
      %p53 = scmp.eq.s32.totalorder %s14, 3
      %p54 = por %p52, %p53
      %p55 = scmp.ne.s32.totalorder %s47, %s50
      %p56 = scmp.eq.s32.totalorder %s14, 0
      %p57 = por %p55, %p56
      %p58 = scmp.ne.s32.totalorder %s47, %s50
      %p59 = scmp.eq.s32.totalorder %s19, 3
      %p60 = por %p58, %p59
      %p61 = scmp.ne.s32.totalorder %s50, %s51
      %p62 = scmp.eq.s32.totalorder %s19, 0
      %p63 = por %p61, %p62
      %p64 = scmp.ne.s32.totalorder %s50, %s51
      %p65 = scmp.eq.s32.totalorder %s20, 3
      %p66 = por %p64, %p65
      %p68 = scmp.ne.s32.totalorder %s51, %s67
      %p69 = scmp.eq.s32.totalorder %s20, 0
      %p70 = por %p68, %p69
      %s72 = sadd.s32 %s71, 1
      %p75 = scmp.eq.s32.totalorder %s14, 3
      %p76 = scmp.ne.s32.totalorder %s71, %s73
      %p77 = scmp.eq.s32.totalorder %s14, 0
      %p78 = por %p76, %p77
      %p79 = scmp.ne.s32.totalorder %s71, %s73
      %p80 = scmp.eq.s32.totalorder %s19, 3
      %p81 = por %p79, %p80
      %p82 = scmp.ne.s32.totalorder %s73, %s74
      %p83 = scmp.eq.s32.totalorder %s19, 0
      %p84 = por %p82, %p83
      %p85 = scmp.ne.s32.totalorder %s73, %s74
      %p86 = scmp.eq.s32.totalorder %s20, 3
      %p87 = por %p85, %p86
      %p89 = scmp.ne.s32.totalorder %s74, %s88
      %p90 = scmp.eq.s32.totalorder %s20, 0
      %p91 = por %p89, %p90
      %s92 = sadd.s32 %s22, %s23
      %s93 = sadd.s32 %s36, %s32
      %s94 = ssub.s32 %s21, %s40
      %s95 = ssub.s32 %s92, %s93
      %s96 = sor.u32 %s94, %s95
      %p97 = scmp.eq.s32.totalorder %s96, 0
      %s99 = sadd.s32 %s98, 1
      %s100 = scalar_select %p97, %s98, %s99
      %p103 = pneg %p97
      %p104 = scmp.eq.s32.totalorder %s14, 3
      %p105 = por %p103, %p104
      %p106 = scmp.ne.s32.totalorder %s98, %s101
      %p107 = scmp.eq.s32.totalorder %s14, 0
      %p108 = por %p106, %p107
      %p109 = scmp.ne.s32.totalorder %s98, %s101
      %p110 = scmp.eq.s32.totalorder %s19, 3
      %p111 = por %p109, %p110
      %p112 = scmp.ne.s32.totalorder %s101, %s102
      %p113 = scmp.eq.s32.totalorder %s19, 0
      %p114 = por %p112, %p113
      %p115 = scmp.ne.s32.totalorder %s101, %s102
      %p116 = scmp.eq.s32.totalorder %s20, 3
      %p117 = por %p115, %p116
      %p119 = scmp.ne.s32.totalorder %s102, %s118
      %p120 = scmp.eq.s32.totalorder %s20, 0
      %p121 = por %p119, %p120
      %s122 = smul.u32 %s21, 2
      %s123 = sadd.s32 %s122, %s22
      %s124 = smul.u32 %s40, 2
      %s125 = sadd.s32 %s124, %s36
      %s126 = ssub.s32 %s123, %s125
      %p127 = scmp.eq.s32.totalorder %s126, 0
      %s129 = sadd.s32 %s128, 1
      %s130 = scalar_select %p127, %s128, %s129
      %p133 = pneg %p127
      %p134 = scmp.eq.s32.totalorder %s14, 3
      %p135 = por %p133, %p134
      %p136 = scmp.ne.s32.totalorder %s128, %s131
      %p137 = scmp.eq.s32.totalorder %s14, 0
      %p138 = por %p136, %p137
      %p139 = scmp.ne.s32.totalorder %s128, %s131
      %p140 = scmp.eq.s32.totalorder %s19, 3
      %p141 = por %p139, %p140
      %p142 = scmp.ne.s32.totalorder %s131, %s132
      %p143 = scmp.eq.s32.totalorder %s19, 0
      %p144 = por %p142, %p143
      %p145 = scmp.ne.s32.totalorder %s131, %s132
      %p146 = scmp.eq.s32.totalorder %s20, 3
      %p147 = por %p145, %p146
      %p149 = scmp.ne.s32.totalorder %s132, %s148
      %p150 = scmp.eq.s32.totalorder %s20, 0
      %p151 = por %p149, %p150
      %s152 = smul.u32 %s21, 2
      %s153 = sadd.s32 %s152, %s22
      %s154 = smul.u32 %s40, 2
      %s155 = sadd.s32 %s154, %s36
      %s156 = ssub.s32 %s153, %s155
      %p157 = scmp.eq.s32.totalorder %s156, 0
      %s159 = sadd.s32 %s158, 1
      %s160 = scalar_select %p157, %s158, %s159
      %p163 = pneg %p157
      %p164 = scmp.eq.s32.totalorder %s14, 3
      %p165 = por %p163, %p164
      %p166 = scmp.ne.s32.totalorder %s158, %s161
      %p167 = scmp.eq.s32.totalorder %s14, 0
      %p168 = por %p166, %p167
      %p169 = scmp.ne.s32.totalorder %s158, %s161
      %p170 = scmp.eq.s32.totalorder %s19, 3
      %p171 = por %p169, %p170
      %p172 = scmp.ne.s32.totalorder %s161, %s162
      %p173 = scmp.eq.s32.totalorder %s19, 0
      %p174 = por %p172, %p173
      %p175 = scmp.ne.s32.totalorder %s161, %s162
      %p176 = scmp.eq.s32.totalorder %s20, 3
      %p177 = por %p175, %p176
      %p179 = scmp.ne.s32.totalorder %s162, %s178
      %p180 = scmp.eq.s32.totalorder %s20, 0
      %p181 = por %p179, %p180
      %p182 = scmp.le.s32.totalorder 1, %s14
      %p183 = scmp.lt.s32.totalorder %s14, 5
      %p184 = pnand %p182, %p183
      %p185 = pneg %p184
      // Predicated region
      $region9: #{pointgencon_forward.4} parent=5 // pred_check
        _
      $region10: #{pointgencon_forward.4} parent=5 // pred_check_branch
        %187 = sbr.rel (%p184) target = $region12
      $region11: #{pointgencon_forward.4} parent=5 // pred_region
        %s188 = ssub.s32 %s14, 1
        // Predicated region
        $region13: #{pointgencon_forward.4} parent=11 // pred_check
          %p189 = pneg %p84
        $region14: #{pointgencon_forward.4} parent=11 // pred_check_branch
          %191 = sbr.rel (%p189) target = $region16
        $region15: #{pointgencon_forward.4} parent=11 // pred_region
          _
        $region16: #{pointgencon_forward.4} parent=11 // pred_fallthru
          _
      $region12: #{pointgencon_forward.4} parent=5 // pred_fallthru
        _
      %p192 = scmp.lt.s32.totalorder %s14, 4
      // Predicated region
      $region17: #{pointgencon_forward.4} parent=5 // pred_check
        %p193 = pneg %p192
      $region18: #{pointgencon_forward.4} parent=5 // pred_check_branch
        %195 = sbr.rel (%p193) target = $region20
      $region19: #{pointgencon_forward.4} parent=5 // pred_region
        // Predicated region
        $region21: #{pointgencon_forward.4} parent=19 // pred_check
          %p196 = pneg %p57
        $region22: #{pointgencon_forward.4} parent=19 // pred_check_branch
          %198 = sbr.rel (%p196) target = $region24
        $region23: #{pointgencon_forward.4} parent=19 // pred_region
          %s199 = sand.u32 %s47, 1
          %s200 = scalar_lea.sflag [#allocation3], %s199
          %s201 = sand.u32 %s47, 1
          %s202 = smul.addr %s201, 256
          %s203 = scalar_lea.vmem [#allocation2], %s202
          %s204 = sadd.s32 %s22, %s23
          %s205 = smul.u32 4, %s204
          %s207 = ssub.s32 4096, 4096
          %208 = vsyncadd %s200, %s207
          %s209 = smul.addr %s21, 64
          %s210 = sadd.s32 %s205, %s209
          %s211 = smul.addr %s210, 128
          %s212 = scalar_lea.hbm %s0, %s211
          %s213 = sshll.u32 %s203, 4
          %s214 = int_to_ptr.vmem [resolvable:$true] %s213
          %219 = dma.hbm_to_vmem [thread:$0]  %s212, 4096, %s214, %s200, 1024, 512, 32
        $region24: #{pointgencon_forward.4} parent=19 // pred_fallthru
          _
      $region20: #{pointgencon_forward.4} parent=5 // pred_fallthru
        _
      %p220 = scmp.le.s32.totalorder 1, %s14
      %p221 = scmp.lt.s32.totalorder %s14, 5
      %p222 = pnand %p220, %p221
      %p223 = pneg %p222
      // Predicated region
      $region25: #{pointgencon_forward.4} parent=5 // pred_check
        _
      $region26: #{pointgencon_forward.4} parent=5 // pred_check_branch
        %225 = sbr.rel (%p222) target = $region28
      $region27: #{pointgencon_forward.4} parent=5 // pred_region
        %s226 = ssub.s32 %s14, 1
        %s227 = sand.u32 %s50, 1
        %s228 = scalar_lea.sflag [#allocation3], %s227
        %s229 = sand.u32 %s50, 1
        %s230 = smul.addr %s229, 256
        %s231 = scalar_lea.vmem [#allocation2], %s230
        // Predicated region
        $region29: #{pointgencon_forward.4} parent=27 // pred_check
          %p232 = pneg %p63
        $region30: #{pointgencon_forward.4} parent=27 // pred_check_branch
          %234 = sbr.rel (%p232) target = $region32
        $region31: #{pointgencon_forward.4} parent=27 // pred_region
          %235 = dma.done %s228, 4096
        $region32: #{pointgencon_forward.4} parent=27 // pred_fallthru
          _
        %s236 = sand.u32 %s50, 1
        %s237 = scalar_lea.sflag [#allocation3], %s236
        %s238 = sand.u32 %s50, 1
        %s239 = smul.addr %s238, 256
        %s240 = scalar_lea.vmem [#allocation2], %s239
        %p241 = pneg %p63
        %p242 = pneg %p60
        %p243 = pneg %p84
        %p244 = pneg %p81
        %p245 = pneg %p114
        %p246 = pneg %p111
        %s247 = sand.u32 %s101, 1
        %s248 = sand.u32 %s101, 1
        %s249 = smul.addr %s248, 128
        %s250 = scalar_lea.vmem [#allocation4], %s249
        %p251 = pneg %p144
        %p252 = pneg %p141
        %s253 = smul.u32 %s24, 2
        %s254 = sadd.s32 %s253, %s25
        %p255 = scmp.lt.s32.totalorder %s254, 3
        %s256 = scalar_select %p255, %s254, 3
        %s257 = smul.addr %s256, 8
        %s258 = smul.addr %s257, 8
        %s259 = scalar_lea.vmem %s3, %s258
        %p260 = pneg %p174
        %p261 = pneg %p171
        %s262 = smul.u32 %s24, 2
        %s263 = sadd.s32 %s262, %s25
        %p264 = scmp.lt.s32.totalorder %s263, 3
        %s265 = scalar_select %p264, %s263, 3
        %s266 = smul.addr %s265, 8
        %s267 = smul.addr %s266, 8
        %s268 = scalar_lea.vmem %s4, %s267
        %s269 = sadd.s32 %s25, %s26
        %s270 = smul.u32 4, %s269
        %s271 = sadd.s32 %s25, %s26
        %s272 = smul.u32 4, %s271
        %s273 = smul.u32 %s24, 2
        %s274 = sadd.s32 %s273, %s25
        %p275 = scmp.lt.s32.totalorder %s274, 3
        %s276 = scalar_select %p275, %s274, 3
        %s277 = smul.addr %s276, 8
        %s278 = smul.addr %s277, 8
        %s279 = scalar_lea.vmem %s3, %s278
        %s280 = smul.u32 %s24, 2
        %s281 = sadd.s32 %s280, %s25
        %s282 = smul.u32 %s24, 2
        %s283 = sadd.s32 %s282, %s25
        %p284 = scmp.lt.s32.totalorder %s283, 3
        %s285 = scalar_select %p284, %s283, 3
        %s286 = smul.addr %s285, 8
        %s287 = smul.addr %s286, 8
        %s288 = scalar_lea.vmem %s4, %s287
        %s289 = smul.u32 %s24, 2
        %s290 = sadd.s32 %s289, %s25
        %p292 = scmp.eq.s32.totalorder %s26, 0
        // Predicated region
        $region33: #{pointgencon_forward.4} parent=27 // pred_check
          %p293 = pneg %p292
        $region34: #{pointgencon_forward.4} parent=27 // pred_check_branch
          %295 = sbr.rel (%p293) target = $region36
        $region35: #{pointgencon_forward.4} parent=27 // pred_region
          %vm296 = vcmask 7168
          %297 = vst.msk [vmem:[%s279] sm:$0xff] %vm296, 0.0
          %298 = vst.msk [vmem:[%s279 + $0x8] sm:$0xff] %vm296, 0.0
          %299 = vst.msk [vmem:[%s279 + $0x10] sm:$0xff] %vm296, 0.0
          %300 = vst.msk [vmem:[%s279 + $0x18] sm:$0xff] %vm296, 0.0
          %301 = vst.msk [vmem:[%s279 + $0x20] sm:$0xff] %vm296, 0.0
          %302 = vst.msk [vmem:[%s279 + $0x28] sm:$0xff] %vm296, 0.0
          %303 = vst.msk [vmem:[%s279 + $0x30] sm:$0xff] %vm296, 0.0
          %304 = vst.msk [vmem:[%s279 + $0x38] sm:$0xff] %vm296, 0.0
          %305 = vst.msk [vmem:[%s288] sm:$0xff] %vm296, 0.0
          %306 = vst.msk [vmem:[%s288 + $0x8] sm:$0xff] %vm296, 0.0
          %307 = vst.msk [vmem:[%s288 + $0x10] sm:$0xff] %vm296, 0.0
          %308 = vst.msk [vmem:[%s288 + $0x18] sm:$0xff] %vm296, 0.0
          %309 = vst.msk [vmem:[%s288 + $0x20] sm:$0xff] %vm296, 0.0
          %310 = vst.msk [vmem:[%s288 + $0x28] sm:$0xff] %vm296, 0.0
          %311 = vst.msk [vmem:[%s288 + $0x30] sm:$0xff] %vm296, 0.0
          %312 = vst.msk [vmem:[%s288 + $0x38] sm:$0xff] %vm296, 0.0
        $region36: #{pointgencon_forward.4} parent=27 // pred_fallthru
          _
        %v313 = vld [vmem:[%s231] sm:$0xff]
        %v314 = vld [vmem:[%s231 + $0x8] sm:$0xff]
        %v315 = vld [vmem:[%s231 + $0x10] sm:$0xff]
        %v316 = vld [vmem:[%s231 + $0x18] sm:$0xff]
        %v317 = vld [vmem:[%s231 + $0x20] sm:$0xff]
        %v318 = vld [vmem:[%s231 + $0x28] sm:$0xff]
        %v319 = vld [vmem:[%s231 + $0x30] sm:$0xff]
        %v320 = vld [vmem:[%s231 + $0x38] sm:$0xff]
        %v321 = vld [vmem:[%s231 + $0x40] sm:$0xff]
        %v322 = vld [vmem:[%s231 + $0x48] sm:$0xff]
        %v323 = vld [vmem:[%s231 + $0x50] sm:$0xff]
        %v324 = vld [vmem:[%s231 + $0x58] sm:$0xff]
        %v325 = vld [vmem:[%s231 + $0x60] sm:$0xff]
        %v326 = vld [vmem:[%s231 + $0x68] sm:$0xff]
        %v327 = vld [vmem:[%s231 + $0x70] sm:$0xff]
        %v328 = vld [vmem:[%s231 + $0x78] sm:$0xff]
        %v329 = vld [vmem:[%s231 + $0x80] sm:$0xff]
        %v330 = vld [vmem:[%s231 + $0x88] sm:$0xff]
        %v331 = vld [vmem:[%s231 + $0x90] sm:$0xff]
        %v332 = vld [vmem:[%s231 + $0x98] sm:$0xff]
        %v333 = vld [vmem:[%s231 + $0xa0] sm:$0xff]
        %v334 = vld [vmem:[%s231 + $0xa8] sm:$0xff]
        %v335 = vld [vmem:[%s231 + $0xb0] sm:$0xff]
        %v336 = vld [vmem:[%s231 + $0xb8] sm:$0xff]
        %v337 = vld [vmem:[%s231 + $0xc0] sm:$0xff]
        %v338 = vld [vmem:[%s231 + $0xc8] sm:$0xff]
        %v339 = vld [vmem:[%s231 + $0xd0] sm:$0xff]
        %v340 = vld [vmem:[%s231 + $0xd8] sm:$0xff]
        %v341 = vld [vmem:[%s231 + $0xe0] sm:$0xff]
        %v342 = vld [vmem:[%s231 + $0xe8] sm:$0xff]
        %v343 = vld [vmem:[%s231 + $0xf0] sm:$0xff]
        %v344 = vld [vmem:[%s231 + $0xf8] sm:$0xff]
        %v345 = vpack.c.bf16 %v317, %v313
        %v346 = vpack.c.bf16 %v318, %v314
        %v347 = vpack.c.bf16 %v319, %v315
        %v348 = vpack.c.bf16 %v320, %v316
        %v349 = vpack.c.bf16 %v325, %v321
        %v350 = vpack.c.bf16 %v326, %v322
        %v351 = vpack.c.bf16 %v327, %v323
        %v352 = vpack.c.bf16 %v328, %v324
        %v353 = vpack.c.bf16 %v333, %v329
        %v354 = vpack.c.bf16 %v334, %v330
        %v355 = vpack.c.bf16 %v335, %v331
        %v356 = vpack.c.bf16 %v336, %v332
        %v357 = vpack.c.bf16 %v341, %v337
        %v358 = vpack.c.bf16 %v342, %v338
        %v359 = vpack.c.bf16 %v343, %v339
        %v360 = vpack.c.bf16 %v344, %v340
        %v361 = vld [vmem:[%s1] sm:$0xf]
        %v362 = vld [vmem:[%s1 + $0x4] sm:$0xf]
        %v363 = vld [vmem:[%s1 + $0x8] sm:$0xf]
        %v364 = vld [vmem:[%s1 + $0xc] sm:$0xf]
        %v365 = vld [vmem:[%s1 + $0x10] sm:$0xf]
        %v366 = vld [vmem:[%s1 + $0x14] sm:$0xf]
        %v367 = vld [vmem:[%s1 + $0x18] sm:$0xf]
        %v368 = vld [vmem:[%s1 + $0x1c] sm:$0xf]
        %v377 = vunpack.c.l.b16 %v361
        %v378 = vunpack.c.l.b16 %v362
        %v379 = vunpack.c.l.b16 %v363
        %v380 = vunpack.c.l.b16 %v364
        %v381 = vunpack.c.l.b16 %v365
        %v382 = vunpack.c.l.b16 %v366
        %v383 = vunpack.c.l.b16 %v367
        %v384 = vunpack.c.l.b16 %v368
        %v385 = vpack.c.b16 %v378, %v377
        %v386 = vpack.c.b16 %v380, %v379
        %v387 = vpack.c.b16 %v382, %v381
        %v388 = vpack.c.b16 %v384, %v383
        %vm389 = vcmask 523264
        %v391 = vsel %vm389, %v385, 0
        %v394 = vsel %vm389, %v386, 0
        %v397 = vsel %vm389, %v387, 0
        %v400 = vsel %vm389, %v388, 0
        %402 = vmatprep.subr.bf16.mxu0 %v346
        %403 = vmatpush1.bf16.msra.mxu0 %v345
        %404 = vmatprep.subr.bf16.mxu0 %v350
        %405 = vmatpush1.bf16.msra.mxu0 %v349
        %406 = vmatprep.subr.bf16.mxu0 %v354
        %407 = vmatpush1.bf16.msra.mxu0 %v353
        %408 = vmatprep.subr.bf16.mxu0 %v358
        %409 = vmatpush1.bf16.msra.mxu0 %v357
        %410 = vmatprep.subr.bf16.mxu0 0
        %411 = vmatpush1.bf16.msra.mxu0 0
        %412 = vmatprep.subr.bf16.mxu0 0
        %413 = vmatpush1.bf16.msra.mxu0 0
        %414 = vmatprep.subr.bf16.mxu0 0
        %415 = vmatpush1.bf16.msra.mxu0 0
        %416 = vmatprep.subr.bf16.mxu0 0
        %417 = vmatpush1.bf16.msra.mxu0 0
        %418 = vmatprep.subr.bf16.mxu0 0
        %419 = vmatpush1.bf16.msra.mxu0 0
        %420 = vmatprep.subr.bf16.mxu0 0
        %421 = vmatpush1.bf16.msra.mxu0 0
        %422 = vmatprep.subr.bf16.mxu0 0
        %423 = vmatpush1.bf16.msra.mxu0 0
        %424 = vmatprep.subr.bf16.mxu0 0
        %425 = vmatpush1.bf16.msra.mxu0 0
        %426 = vmatprep.subr.bf16.mxu0 0
        %427 = vmatpush1.bf16.msra.mxu0 0
        %428 = vmatprep.subr.bf16.mxu0 0
        %429 = vmatpush1.bf16.msra.mxu0 0
        %430 = vmatprep.subr.bf16.mxu0 0
        %431 = vmatpush1.bf16.msra.mxu0 0
        %432 = vmatprep.subr.bf16.mxu0 0
        %433 = vmatpush1.bf16.msra.mxu0 0
        %434 = vmatprep.mubr.bf16.mxu0 0
        %435 = vmatmul.mubr.bf16.gmra.mrb[0].mxu0 %v391
        %v436 = vpop.f32.mrb[0].mxu0
        %v437 = vadd.f32 0.0, %v436
        %v438 = vpop.f32.mrb[0].mxu0
        %v439 = vadd.f32 0.0, %v438
        %v440 = vpop.f32.mrb[0].mxu0
        %v441 = vadd.f32 0.0, %v440
        %v442 = vpop.f32.mrb[0].mxu0
        %v443 = vadd.f32 0.0, %v442
        %444 = vmatprep.mubr.bf16.mxu0 0
        %445 = vmatmul.mubr.bf16.gmra.mrb[0].mxu0 %v394
        %v446 = vpop.f32.mrb[0].mxu0
        %v447 = vadd.f32 0.0, %v446
        %v448 = vpop.f32.mrb[0].mxu0
        %v449 = vadd.f32 0.0, %v448
        %v450 = vpop.f32.mrb[0].mxu0
        %v451 = vadd.f32 0.0, %v450
        %v452 = vpop.f32.mrb[0].mxu0
        %v453 = vadd.f32 0.0, %v452
        %454 = vmatprep.mubr.bf16.mxu0 0
        %455 = vmatmul.mubr.bf16.gmra.mrb[0].mxu0 %v397
        %v456 = vpop.f32.mrb[0].mxu0
        %v457 = vadd.f32 0.0, %v456
        %v458 = vpop.f32.mrb[0].mxu0
        %v459 = vadd.f32 0.0, %v458
        %v460 = vpop.f32.mrb[0].mxu0
        %v461 = vadd.f32 0.0, %v460
        %v462 = vpop.f32.mrb[0].mxu0
        %v463 = vadd.f32 0.0, %v462
        %464 = vmatprep.mubr.bf16.mxu0 0
        %465 = vmatmul.mubr.bf16.gmra.mrb[0].mxu0 %v400
        %v466 = vpop.f32.mrb[0].mxu0
        %v467 = vadd.f32 0.0, %v466
        %v468 = vpop.f32.mrb[0].mxu0
        %v469 = vadd.f32 0.0, %v468
        %v470 = vpop.f32.mrb[0].mxu0
        %v471 = vadd.f32 0.0, %v470
        %v472 = vpop.f32.mrb[0].mxu0
        %v473 = vadd.f32 0.0, %v472
        %474 = vdwg.mxu0
        %475 = vmatprep.subr.bf16.mxu0 %v348
        %476 = vmatpush1.bf16.msra.mxu0 %v347
        %477 = vmatprep.subr.bf16.mxu0 %v352
        %478 = vmatpush1.bf16.msra.mxu0 %v351
        %479 = vmatprep.subr.bf16.mxu0 %v356
        %480 = vmatpush1.bf16.msra.mxu0 %v355
        %481 = vmatprep.subr.bf16.mxu0 %v360
        %482 = vmatpush1.bf16.msra.mxu0 %v359
        %483 = vmatprep.subr.bf16.mxu0 0
        %484 = vmatpush1.bf16.msra.mxu0 0
        %485 = vmatprep.subr.bf16.mxu0 0
        %486 = vmatpush1.bf16.msra.mxu0 0
        %487 = vmatprep.subr.bf16.mxu0 0
        %488 = vmatpush1.bf16.msra.mxu0 0
        %489 = vmatprep.subr.bf16.mxu0 0
        %490 = vmatpush1.bf16.msra.mxu0 0
        %491 = vmatprep.subr.bf16.mxu0 0
        %492 = vmatpush1.bf16.msra.mxu0 0
        %493 = vmatprep.subr.bf16.mxu0 0
        %494 = vmatpush1.bf16.msra.mxu0 0
        %495 = vmatprep.subr.bf16.mxu0 0
        %496 = vmatpush1.bf16.msra.mxu0 0
        %497 = vmatprep.subr.bf16.mxu0 0
        %498 = vmatpush1.bf16.msra.mxu0 0
        %499 = vmatprep.subr.bf16.mxu0 0
        %500 = vmatpush1.bf16.msra.mxu0 0
        %501 = vmatprep.subr.bf16.mxu0 0
        %502 = vmatpush1.bf16.msra.mxu0 0
        %503 = vmatprep.subr.bf16.mxu0 0
        %504 = vmatpush1.bf16.msra.mxu0 0
        %505 = vmatprep.subr.bf16.mxu0 0
        %506 = vmatpush1.bf16.msra.mxu0 0
        %507 = vmatprep.mubr.bf16.mxu0 0
        %508 = vmatmul.mubr.bf16.gmra.mrb[0].mxu0 %v391
        %v509 = vpop.f32.mrb[0].mxu0
        %v510 = vadd.f32 0.0, %v509
        %v511 = vpop.f32.mrb[0].mxu0
        %v512 = vadd.f32 0.0, %v511
        %v513 = vpop.f32.mrb[0].mxu0
        %v514 = vadd.f32 0.0, %v513
        %v515 = vpop.f32.mrb[0].mxu0
        %v516 = vadd.f32 0.0, %v515
        %517 = vmatprep.mubr.bf16.mxu0 0
        %518 = vmatmul.mubr.bf16.gmra.mrb[0].mxu0 %v394
        %v519 = vpop.f32.mrb[0].mxu0
        %v520 = vadd.f32 0.0, %v519
        %v521 = vpop.f32.mrb[0].mxu0
        %v522 = vadd.f32 0.0, %v521
        %v523 = vpop.f32.mrb[0].mxu0
        %v524 = vadd.f32 0.0, %v523
        %v525 = vpop.f32.mrb[0].mxu0
        %v526 = vadd.f32 0.0, %v525
        %527 = vmatprep.mubr.bf16.mxu0 0
        %528 = vmatmul.mubr.bf16.gmra.mrb[0].mxu0 %v397
        %v529 = vpop.f32.mrb[0].mxu0
        %v530 = vadd.f32 0.0, %v529
        %v531 = vpop.f32.mrb[0].mxu0
        %v532 = vadd.f32 0.0, %v531
        %v533 = vpop.f32.mrb[0].mxu0
        %v534 = vadd.f32 0.0, %v533
        %v535 = vpop.f32.mrb[0].mxu0
        %v536 = vadd.f32 0.0, %v535
        %537 = vmatprep.mubr.bf16.mxu0 0
        %538 = vmatmul.mubr.bf16.gmra.mrb[0].mxu0 %v400
        %v539 = vpop.f32.mrb[0].mxu0
        %v540 = vadd.f32 0.0, %v539
        %v541 = vpop.f32.mrb[0].mxu0
        %v542 = vadd.f32 0.0, %v541
        %v543 = vpop.f32.mrb[0].mxu0
        %v544 = vadd.f32 0.0, %v543
        %v545 = vpop.f32.mrb[0].mxu0
        %v546 = vadd.f32 0.0, %v545
        %547 = vdwg.mxu0
        %v548 = vpack.c.bf16 %v441, %v437
        %v549 = vpack.c.bf16 %v443, %v439
        %v550 = vpack.c.bf16 %v514, %v510
        %v551 = vpack.c.bf16 %v516, %v512
        %v552 = vpack.c.bf16 %v451, %v447
        %v553 = vpack.c.bf16 %v453, %v449
        %v554 = vpack.c.bf16 %v524, %v520
        %v555 = vpack.c.bf16 %v526, %v522
        %v556 = vpack.c.bf16 %v461, %v457
        %v557 = vpack.c.bf16 %v463, %v459
        %v558 = vpack.c.bf16 %v534, %v530
        %v559 = vpack.c.bf16 %v536, %v532
        %v560 = vpack.c.bf16 %v471, %v467
        %v561 = vpack.c.bf16 %v473, %v469
        %v562 = vpack.c.bf16 %v544, %v540
        %v563 = vpack.c.bf16 %v546, %v542
        %v580 = vunpack.c.l.b16 %v548
        %v581 = vunpack.c.l.b16 %v549
        %v582 = vunpack.c.l.b16 %v550
        %v583 = vunpack.c.l.b16 %v551
        %v584 = vunpack.c.h.b16 %v548
        %v585 = vunpack.c.h.b16 %v549
        %v586 = vunpack.c.h.b16 %v550
        %v587 = vunpack.c.h.b16 %v551
        %v588 = vunpack.c.l.b16 %v552
        %v589 = vunpack.c.l.b16 %v553
        %v590 = vunpack.c.l.b16 %v554
        %v591 = vunpack.c.l.b16 %v555
        %v592 = vunpack.c.h.b16 %v552
        %v593 = vunpack.c.h.b16 %v553
        %v594 = vunpack.c.h.b16 %v554
        %v595 = vunpack.c.h.b16 %v555
        %v596 = vunpack.c.l.b16 %v556
        %v597 = vunpack.c.l.b16 %v557
        %v598 = vunpack.c.l.b16 %v558
        %v599 = vunpack.c.l.b16 %v559
        %v600 = vunpack.c.h.b16 %v556
        %v601 = vunpack.c.h.b16 %v557
        %v602 = vunpack.c.h.b16 %v558
        %v603 = vunpack.c.h.b16 %v559
        %v604 = vunpack.c.l.b16 %v560
        %v605 = vunpack.c.l.b16 %v561
        %v606 = vunpack.c.l.b16 %v562
        %v607 = vunpack.c.l.b16 %v563
        %v608 = vunpack.c.h.b16 %v560
        %v609 = vunpack.c.h.b16 %v561
        %v610 = vunpack.c.h.b16 %v562
        %v611 = vunpack.c.h.b16 %v563
        %v612 = vpack.c.b16 %v581, %v580
        %v613 = vpack.c.b16 %v583, %v582
        %v614 = vpack.c.b16 %v585, %v584
        %v615 = vpack.c.b16 %v587, %v586
        %v616 = vpack.c.b16 %v589, %v588
        %v617 = vpack.c.b16 %v591, %v590
        %v618 = vpack.c.b16 %v593, %v592
        %v619 = vpack.c.b16 %v595, %v594
        %v620 = vpack.c.b16 %v597, %v596
        %v621 = vpack.c.b16 %v599, %v598
        %v622 = vpack.c.b16 %v601, %v600
        %v623 = vpack.c.b16 %v603, %v602
        %v624 = vpack.c.b16 %v605, %v604
        %v625 = vpack.c.b16 %v607, %v606
        %v626 = vpack.c.b16 %v609, %v608
        %v627 = vpack.c.b16 %v611, %v610
        %644 = vst [vmem:[%s250] sm:$0xff] %v612
        %645 = vst [vmem:[%s250 + $0x8] sm:$0xff] %v613
        %646 = vst [vmem:[%s250 + $0x10] sm:$0xff] %v614
        %647 = vst [vmem:[%s250 + $0x18] sm:$0xff] %v615
        %648 = vst [vmem:[%s250 + $0x20] sm:$0xff] %v616
        %649 = vst [vmem:[%s250 + $0x28] sm:$0xff] %v617
        %650 = vst [vmem:[%s250 + $0x30] sm:$0xff] %v618
        %651 = vst [vmem:[%s250 + $0x38] sm:$0xff] %v619
        %652 = vst [vmem:[%s250 + $0x40] sm:$0xff] %v620
        %653 = vst [vmem:[%s250 + $0x48] sm:$0xff] %v621
        %654 = vst [vmem:[%s250 + $0x50] sm:$0xff] %v622
        %655 = vst [vmem:[%s250 + $0x58] sm:$0xff] %v623
        %656 = vst [vmem:[%s250 + $0x60] sm:$0xff] %v624
        %657 = vst [vmem:[%s250 + $0x68] sm:$0xff] %v625
        %658 = vst [vmem:[%s250 + $0x70] sm:$0xff] %v626
        %659 = vst [vmem:[%s250 + $0x78] sm:$0xff] %v627
        %v660 = vld [vmem:[%s279] sm:$0xff]
        %v661 = vld [vmem:[%s279 + $0x8] sm:$0xff]
        %v662 = vld [vmem:[%s279 + $0x10] sm:$0xff]
        %v663 = vld [vmem:[%s279 + $0x18] sm:$0xff]
        %v664 = vld [vmem:[%s279 + $0x20] sm:$0xff]
        %v665 = vld [vmem:[%s279 + $0x28] sm:$0xff]
        %v666 = vld [vmem:[%s279 + $0x30] sm:$0xff]
        %v667 = vld [vmem:[%s279 + $0x38] sm:$0xff]
        %v668 = vadd.f32 %v437, %v439
        %v669 = vadd.f32 %v668, %v510
        %v670 = vadd.f32 %v669, %v512
        %671 = vadd.xlane.f32.xlu0 %v670
        %v672 = vpop.xlane.xlu0 %671
        %v673 = vadd.f32 %v441, %v443
        %v674 = vadd.f32 %v673, %v514
        %v675 = vadd.f32 %v674, %v516
        %676 = vadd.xlane.f32.xlu0 %v675
        %v677 = vpop.xlane.xlu0 %676
        %v678 = vadd.f32 %v447, %v449
        %v679 = vadd.f32 %v678, %v520
        %v680 = vadd.f32 %v679, %v522
        %681 = vadd.xlane.f32.xlu0 %v680
        %v682 = vpop.xlane.xlu0 %681
        %v683 = vadd.f32 %v451, %v453
        %v684 = vadd.f32 %v683, %v524
        %v685 = vadd.f32 %v684, %v526
        %686 = vadd.xlane.f32.xlu0 %v685
        %v687 = vpop.xlane.xlu0 %686
        %v688 = vadd.f32 %v457, %v459
        %v689 = vadd.f32 %v688, %v530
        %v690 = vadd.f32 %v689, %v532
        %691 = vadd.xlane.f32.xlu0 %v690
        %v692 = vpop.xlane.xlu0 %691
        %v693 = vadd.f32 %v461, %v463
        %v694 = vadd.f32 %v693, %v534
        %v695 = vadd.f32 %v694, %v536
        %696 = vadd.xlane.f32.xlu0 %v695
        %v697 = vpop.xlane.xlu0 %696
        %v698 = vadd.f32 %v467, %v469
        %v699 = vadd.f32 %v698, %v540
        %v700 = vadd.f32 %v699, %v542
        %701 = vadd.xlane.f32.xlu0 %v700
        %v702 = vpop.xlane.xlu0 %701
        %v703 = vadd.f32 %v471, %v473
        %v704 = vadd.f32 %v703, %v544
        %v705 = vadd.f32 %v704, %v546
        %706 = vadd.xlane.f32.xlu0 %v705
        %v707 = vpop.xlane.xlu0 %706
        %v708 = vadd.f32 %v660, %v672
        %v709 = vadd.f32 %v661, %v677
        %v710 = vadd.f32 %v662, %v682
        %v711 = vadd.f32 %v663, %v687
        %v712 = vadd.f32 %v664, %v692
        %v713 = vadd.f32 %v665, %v697
        %v714 = vadd.f32 %v666, %v702
        %v715 = vadd.f32 %v667, %v707
        %vm716 = vcmask 7168
        %717 = vst.msk [vmem:[%s279] sm:$0xff] %vm716, %v708
        %718 = vst.msk [vmem:[%s279 + $0x8] sm:$0xff] %vm716, %v709
        %719 = vst.msk [vmem:[%s279 + $0x10] sm:$0xff] %vm716, %v710
        %720 = vst.msk [vmem:[%s279 + $0x18] sm:$0xff] %vm716, %v711
        %721 = vst.msk [vmem:[%s279 + $0x20] sm:$0xff] %vm716, %v712
        %722 = vst.msk [vmem:[%s279 + $0x28] sm:$0xff] %vm716, %v713
        %723 = vst.msk [vmem:[%s279 + $0x30] sm:$0xff] %vm716, %v714
        %724 = vst.msk [vmem:[%s279 + $0x38] sm:$0xff] %vm716, %v715
        %v725 = vld [vmem:[%s288] sm:$0xff]
        %v726 = vld [vmem:[%s288 + $0x8] sm:$0xff]
        %v727 = vld [vmem:[%s288 + $0x10] sm:$0xff]
        %v728 = vld [vmem:[%s288 + $0x18] sm:$0xff]
        %v729 = vld [vmem:[%s288 + $0x20] sm:$0xff]
        %v730 = vld [vmem:[%s288 + $0x28] sm:$0xff]
        %v731 = vld [vmem:[%s288 + $0x30] sm:$0xff]
        %v732 = vld [vmem:[%s288 + $0x38] sm:$0xff]
        %v733 = vmul.f32 %v437, %v437
        %v734 = vmul.f32 %v439, %v439
        %v735 = vmul.f32 %v510, %v510
        %v736 = vmul.f32 %v512, %v512
        %v737 = vmul.f32 %v441, %v441
        %v738 = vmul.f32 %v443, %v443
        %v739 = vmul.f32 %v514, %v514
        %v740 = vmul.f32 %v516, %v516
        %v741 = vmul.f32 %v447, %v447
        %v742 = vmul.f32 %v449, %v449
        %v743 = vmul.f32 %v520, %v520
        %v744 = vmul.f32 %v522, %v522
        %v745 = vmul.f32 %v451, %v451
        %v746 = vmul.f32 %v453, %v453
        %v747 = vmul.f32 %v524, %v524
        %v748 = vmul.f32 %v526, %v526
        %v749 = vmul.f32 %v457, %v457
        %v750 = vmul.f32 %v459, %v459
        %v751 = vmul.f32 %v530, %v530
        %v752 = vmul.f32 %v532, %v532
        %v753 = vmul.f32 %v461, %v461
        %v754 = vmul.f32 %v463, %v463
        %v755 = vmul.f32 %v534, %v534
        %v756 = vmul.f32 %v536, %v536
        %v757 = vmul.f32 %v467, %v467
        %v758 = vmul.f32 %v469, %v469
        %v759 = vmul.f32 %v540, %v540
        %v760 = vmul.f32 %v542, %v542
        %v761 = vmul.f32 %v471, %v471
        %v762 = vmul.f32 %v473, %v473
        %v763 = vmul.f32 %v544, %v544
        %v764 = vmul.f32 %v546, %v546
        %v765 = vadd.f32 %v733, %v734
        %v766 = vadd.f32 %v765, %v735
        %v767 = vadd.f32 %v766, %v736
        %768 = vadd.xlane.f32.xlu0 %v767
        %v769 = vpop.xlane.xlu0 %768
        %v770 = vadd.f32 %v737, %v738
        %v771 = vadd.f32 %v770, %v739
        %v772 = vadd.f32 %v771, %v740
        %773 = vadd.xlane.f32.xlu0 %v772
        %v774 = vpop.xlane.xlu0 %773
        %v775 = vadd.f32 %v741, %v742
        %v776 = vadd.f32 %v775, %v743
        %v777 = vadd.f32 %v776, %v744
        %778 = vadd.xlane.f32.xlu0 %v777
        %v779 = vpop.xlane.xlu0 %778
        %v780 = vadd.f32 %v745, %v746
        %v781 = vadd.f32 %v780, %v747
        %v782 = vadd.f32 %v781, %v748
        %783 = vadd.xlane.f32.xlu0 %v782
        %v784 = vpop.xlane.xlu0 %783
        %v785 = vadd.f32 %v749, %v750
        %v786 = vadd.f32 %v785, %v751
        %v787 = vadd.f32 %v786, %v752
        %788 = vadd.xlane.f32.xlu0 %v787
        %v789 = vpop.xlane.xlu0 %788
        %v790 = vadd.f32 %v753, %v754
        %v791 = vadd.f32 %v790, %v755
        %v792 = vadd.f32 %v791, %v756
        %793 = vadd.xlane.f32.xlu0 %v792
        %v794 = vpop.xlane.xlu0 %793
        %v795 = vadd.f32 %v757, %v758
        %v796 = vadd.f32 %v795, %v759
        %v797 = vadd.f32 %v796, %v760
        %798 = vadd.xlane.f32.xlu0 %v797
        %v799 = vpop.xlane.xlu0 %798
        %v800 = vadd.f32 %v761, %v762
        %v801 = vadd.f32 %v800, %v763
        %v802 = vadd.f32 %v801, %v764
        %803 = vadd.xlane.f32.xlu0 %v802
        %v804 = vpop.xlane.xlu0 %803
        %v805 = vadd.f32 %v725, %v769
        %v806 = vadd.f32 %v726, %v774
        %v807 = vadd.f32 %v727, %v779
        %v808 = vadd.f32 %v728, %v784
        %v809 = vadd.f32 %v729, %v789
        %v810 = vadd.f32 %v730, %v794
        %v811 = vadd.f32 %v731, %v799
        %v812 = vadd.f32 %v732, %v804
        %813 = vst.msk [vmem:[%s288] sm:$0xff] %vm716, %v805
        %814 = vst.msk [vmem:[%s288 + $0x8] sm:$0xff] %vm716, %v806
        %815 = vst.msk [vmem:[%s288 + $0x10] sm:$0xff] %vm716, %v807
        %816 = vst.msk [vmem:[%s288 + $0x18] sm:$0xff] %vm716, %v808
        %817 = vst.msk [vmem:[%s288 + $0x20] sm:$0xff] %vm716, %v809
        %818 = vst.msk [vmem:[%s288 + $0x28] sm:$0xff] %vm716, %v810
        %819 = vst.msk [vmem:[%s288 + $0x30] sm:$0xff] %vm716, %v811
        %820 = vst.msk [vmem:[%s288 + $0x38] sm:$0xff] %vm716, %v812
        %s821 = sand.u32 %s101, 1
        %s822 = sand.u32 %s101, 1
        %s823 = smul.addr %s822, 128
        %s824 = scalar_lea.vmem [#allocation4], %s823
        %s825 = smul.u32 %s24, 2
        %s826 = sadd.s32 %s825, %s25
        %p827 = scmp.lt.s32.totalorder %s826, 3
        %s828 = scalar_select %p827, %s826, 3
        %s829 = smul.addr %s828, 8
        %s830 = smul.addr %s829, 8
        %s831 = scalar_lea.vmem %s3, %s830
        %s832 = smul.u32 %s24, 2
        %s833 = sadd.s32 %s832, %s25
        %p834 = scmp.lt.s32.totalorder %s833, 3
        %s835 = scalar_select %p834, %s833, 3
        %s836 = smul.addr %s835, 8
        %s837 = smul.addr %s836, 8
        %s838 = scalar_lea.vmem %s4, %s837
        // Predicated region
        $region37: #{pointgencon_forward.4} parent=27 // pred_check
          %p839 = pneg %p111
        $region38: #{pointgencon_forward.4} parent=27 // pred_check_branch
          %841 = sbr.rel (%p839) target = $region40
        $region39: #{pointgencon_forward.4} parent=27 // pred_region
          %s842 = sadd.s32 %s25, %s26
          %s843 = smul.u32 4, %s842
          %s844 = smul.addr %s24, 64
          %s845 = sadd.s32 %s843, %s844
          %s846 = smul.addr %s845, 4
          %s847 = scalar_lea.vmem %s2, %s846
          // Predicated region
          $region41: #{pointgencon_forward.4} parent=39 // pred_check
            _
          $region42: #{pointgencon_forward.4} parent=39 // pred_check_branch
            %849 = sbr.rel (0) target = $region44
          $region43: #{pointgencon_forward.4} parent=39 // pred_region
            // Predicated region
            $region45: #{pointgencon_forward.4} parent=43 // pred_check
              _
            $region46: #{pointgencon_forward.4} parent=43 // pred_check_branch
              %851 = sbr.rel (0) target = $region48
            $region47: #{pointgencon_forward.4} parent=43 // pred_region
              loop: start=0, step=1, limit=1
              $region49: #{pointgencon_forward.4} parent=47 // loop_pre_header
                _
              $region50: #{pointgencon_forward.4} parent=47 // loop_header
                %s853 = sphi 0, %s857
                %p854 = scmp.ge.s32.totalorder %s853, 1
                %s858 = sphi %s824, %s824
                %s859 = sphi %s847, %s847
              $region51: #{pointgencon_forward.4} parent=47 // loop_header_branch
                %856 = sbr.rel (%p854) target = $region55
              $region52: #{pointgencon_forward.4} parent=47 // loop_body
                %v860 = vld [vmem:[%s858] sm:$0xff]
                %861 = vst [vmem:[%s859] sm:$0xff] %v860
                %v862 = vld [vmem:[%s858 + $0x8] sm:$0xff]
                %863 = vst [vmem:[%s859 + $0x8] sm:$0xff] %v862
                %v864 = vld [vmem:[%s858 + $0x10] sm:$0xff]
                %865 = vst [vmem:[%s859 + $0x20] sm:$0xff] %v864
                %v866 = vld [vmem:[%s858 + $0x18] sm:$0xff]
                %867 = vst [vmem:[%s859 + $0x28] sm:$0xff] %v866
                %v868 = vld [vmem:[%s858 + $0x20] sm:$0xff]
                %869 = vst [vmem:[%s859 + $0x40] sm:$0xff] %v868
                %v870 = vld [vmem:[%s858 + $0x28] sm:$0xff]
                %871 = vst [vmem:[%s859 + $0x48] sm:$0xff] %v870
                %v872 = vld [vmem:[%s858 + $0x30] sm:$0xff]
                %873 = vst [vmem:[%s859 + $0x60] sm:$0xff] %v872
                %v874 = vld [vmem:[%s858 + $0x38] sm:$0xff]
                %875 = vst [vmem:[%s859 + $0x68] sm:$0xff] %v874
                %v876 = vld [vmem:[%s858 + $0x40] sm:$0xff]
                %877 = vst [vmem:[%s859 + $0x80] sm:$0xff] %v876
                %v878 = vld [vmem:[%s858 + $0x48] sm:$0xff]
                %879 = vst [vmem:[%s859 + $0x88] sm:$0xff] %v878
                %v880 = vld [vmem:[%s858 + $0x50] sm:$0xff]
                %881 = vst [vmem:[%s859 + $0xa0] sm:$0xff] %v880
                %v882 = vld [vmem:[%s858 + $0x58] sm:$0xff]
                %883 = vst [vmem:[%s859 + $0xa8] sm:$0xff] %v882
                %v884 = vld [vmem:[%s858 + $0x60] sm:$0xff]
                %885 = vst [vmem:[%s859 + $0xc0] sm:$0xff] %v884
                %v886 = vld [vmem:[%s858 + $0x68] sm:$0xff]
                %887 = vst [vmem:[%s859 + $0xc8] sm:$0xff] %v886
                %v888 = vld [vmem:[%s858 + $0x70] sm:$0xff]
                %889 = vst [vmem:[%s859 + $0xe0] sm:$0xff] %v888
                %v890 = vld [vmem:[%s858 + $0x78] sm:$0xff]
                %891 = vst [vmem:[%s859 + $0xe8] sm:$0xff] %v890
              $region53: #{pointgencon_forward.4} parent=47 // loop_footer
                %s857 = sadd.s32 1, %s853
              $region54: #{pointgencon_forward.4} parent=47 // loop_footer_branch
                %852 = sbr.rel target = $region50
              $region55: #{pointgencon_forward.4} parent=47 // loop_exit
                _
            $region48: #{pointgencon_forward.4} parent=43 // pred_fallthru
              _
            // Predicated region
            $region56: #{pointgencon_forward.4} parent=43 // pred_check
              _
            $region57: #{pointgencon_forward.4} parent=43 // pred_check_branch
              %893 = sbr.rel target = $region59
            $region58: #{pointgencon_forward.4} parent=43 // pred_region
              _
            $region59: #{pointgencon_forward.4} parent=43 // pred_fallthru
              _
          $region44: #{pointgencon_forward.4} parent=39 // pred_fallthru
            _
          %894 = vnop
        $region40: #{pointgencon_forward.4} parent=27 // pred_fallthru
          _
        // Predicated region
        $region60: #{pointgencon_forward.4} parent=27 // pred_check
          %p895 = pneg %p141
        $region61: #{pointgencon_forward.4} parent=27 // pred_check_branch
          %897 = sbr.rel (%p895) target = $region63
        $region62: #{pointgencon_forward.4} parent=27 // pred_region
          %s898 = smul.u32 %s24, 2
          %s899 = sadd.s32 %s898, %s25
        $region63: #{pointgencon_forward.4} parent=27 // pred_fallthru
          _
        // Predicated region
        $region64: #{pointgencon_forward.4} parent=27 // pred_check
          %p900 = pneg %p171
        $region65: #{pointgencon_forward.4} parent=27 // pred_check_branch
          %902 = sbr.rel (%p900) target = $region67
        $region66: #{pointgencon_forward.4} parent=27 // pred_region
          %s903 = smul.u32 %s24, 2
          %s904 = sadd.s32 %s903, %s25
        $region67: #{pointgencon_forward.4} parent=27 // pred_fallthru
          _
      $region28: #{pointgencon_forward.4} parent=5 // pred_fallthru
        _
      %p905 = scmp.le.s32.totalorder 2, %s14
      // Predicated region
      $region68: #{pointgencon_forward.4} parent=5 // pred_check
        %p906 = pneg %p905
      $region69: #{pointgencon_forward.4} parent=5 // pred_check_branch
        %908 = sbr.rel (%p906) target = $region71
      $region70: #{pointgencon_forward.4} parent=5 // pred_region
        %s909 = ssub.s32 %s14, 2
        // Predicated region
        $region72: #{pointgencon_forward.4} parent=70 // pred_check
          %p910 = pneg %p117
        $region73: #{pointgencon_forward.4} parent=70 // pred_check_branch
          %912 = sbr.rel (%p910) target = $region75
        $region74: #{pointgencon_forward.4} parent=70 // pred_region
          %s913 = sand.u32 %s102, 1
          %s914 = sand.u32 %s102, 1
          %s915 = smul.addr %s914, 128
          %s916 = scalar_lea.vmem [#allocation4], %s915
        $region75: #{pointgencon_forward.4} parent=70 // pred_fallthru
          _
        // Predicated region
        $region76: #{pointgencon_forward.4} parent=70 // pred_check
          %p917 = pneg %p147
        $region77: #{pointgencon_forward.4} parent=70 // pred_check_branch
          %919 = sbr.rel (%p917) target = $region79
        $region78: #{pointgencon_forward.4} parent=70 // pred_region
          %s920 = smul.u32 %s27, 2
          %s921 = sadd.s32 %s920, %s28
          %p922 = scmp.lt.s32.totalorder %s921, 3
          %s923 = scalar_select %p922, %s921, 3
          %s924 = smul.addr %s923, 8
          %s925 = smul.addr %s924, 8
          %s926 = scalar_lea.vmem %s3, %s925
        $region79: #{pointgencon_forward.4} parent=70 // pred_fallthru
          _
        // Predicated region
        $region80: #{pointgencon_forward.4} parent=70 // pred_check
          %p927 = pneg %p177
        $region81: #{pointgencon_forward.4} parent=70 // pred_check_branch
          %929 = sbr.rel (%p927) target = $region83
        $region82: #{pointgencon_forward.4} parent=70 // pred_region
          %s930 = smul.u32 %s27, 2
          %s931 = sadd.s32 %s930, %s28
          %p932 = scmp.lt.s32.totalorder %s931, 3
          %s933 = scalar_select %p932, %s931, 3
          %s934 = smul.addr %s933, 8
          %s935 = smul.addr %s934, 8
          %s936 = scalar_lea.vmem %s4, %s935
        $region83: #{pointgencon_forward.4} parent=70 // pred_fallthru
          _
      $region71: #{pointgencon_forward.4} parent=5 // pred_fallthru
        _
    $region6: #{pointgencon_forward.4} parent=1 // loop_footer
      %s18 = sadd.s32 1, %s14
    $region7: #{pointgencon_forward.4} parent=1 // loop_footer_branch
      %13 = sbr.rel target = $region3
    $region8: #{pointgencon_forward.4} parent=1 // loop_exit
      _
    %937 = vsyncpa [#allocation3], 1
    %s938 = scalar_lea.sflag [#allocation3], 1
    %939 = vsyncpa %s938, 1

// kernel: pointgencon_forward.5
$region0: #{pointgencon_forward.5}
  #allocation0 [shape = 'u32[]', space=smem, size = 0x4, offset = 0x4, fixed_abs, tag = 'smem constant byte address 0x4 - core index']
  #allocation1 [shape = 'u32[144,128]{1,0:T(1,128)}', space=vmem, size = 0x12000, scoped, tag = 'internal scratch']
  %s0 = inlined_call_operand.vmem [shape: bf16[2,64,1024], index: 0, kind: input, shape index: {}]
  %s1 = inlined_call_operand.vmem [shape: f32[64,1], index: 1, kind: input, shape index: {}]
  %s2 = inlined_call_operand.vmem [shape: f32[64,1], index: 2, kind: input, shape index: {}]
  %s3 = inlined_call_operand.vmem [shape: bf16[32,64], index: 3, kind: input, shape index: {}]
  %s4 = inlined_call_operand.vmem [shape: bf16[2,32,1024], index: 4, kind: output, shape index: {0}]
  %s5 = inlined_call_operand.vmem [shape: f32[4,32,1], index: 5, kind: output, shape index: {1}]
  %s6 = inlined_call_operand.vmem [shape: f32[4,32,1], index: 6, kind: output, shape index: {2}]
  %7 = xla_tuple %s4, %s5, %s6
  %s8 = sld [smem:[#allocation0]]
  $region111: #{pointgencon_forward.5} parent=0
    _
  %s10 = ssub.s32 1, %s8
  %s11 = scalar_select 0, %s10, %s8
  $region1: #{pointgencon_forward.5} parent=0
    #allocation2 [shape = 'u8[131072]{0}', space=vmem, size = 0x20000, scoped, tag = 'input window, operand 0']
    #allocation3 [shape = 'u8[65536]{0}', space=vmem, size = 0x10000, scoped, tag = 'output window, operand 0']
    loop: start=0, step=1, limit=6
    $region2: #{pointgencon_forward.5} parent=1 // loop_pre_header
      _
    $region3: #{pointgencon_forward.5} parent=1 // loop_header
      %s13 = sphi 0, %s17
      %p14 = scmp.ge.s32.totalorder %s13, 6
      %s20 = sphi 0, %s39
      %s21 = sphi 0, %s35
      %s22 = sphi 0, %s31
      %s23 = sphi 0, %s20
      %s24 = sphi 0, %s21
      %s25 = sphi 0, %s22
      %s26 = sphi 0, %s23
      %s27 = sphi 0, %s24
      %s28 = sphi 0, %s25
      %s46 = sphi 0, %s48
      %s49 = sphi 0, %s46
      %s50 = sphi 0, %s49
      %s66 = sphi 0, %s50
      %s70 = sphi 0, %s70
      %s72 = sphi 0, %s70
      %s73 = sphi 0, %s72
      %s87 = sphi 0, %s73
      %s91 = sphi 0, %s91
      %s93 = sphi 0, %s91
      %s94 = sphi 0, %s93
      %s108 = sphi 0, %s94
      %s112 = sphi 0, %s112
      %s114 = sphi 0, %s112
      %s115 = sphi 0, %s114
      %s129 = sphi 0, %s115
      %s139 = sphi 0, %s141
      %s142 = sphi 0, %s139
      %s143 = sphi 0, %s142
      %s159 = sphi 0, %s143
      %s169 = sphi 0, %s171
      %s172 = sphi 0, %s169
      %s173 = sphi 0, %s172
      %s189 = sphi 0, %s173
      %s199 = sphi 0, %s201
      %s202 = sphi 0, %s199
      %s203 = sphi 0, %s202
      %s219 = sphi 0, %s203
    $region4: #{pointgencon_forward.5} parent=1 // loop_header_branch
      %16 = sbr.rel (%p14) target = $region8
    $region5: #{pointgencon_forward.5} parent=1 // loop_body
      %s18 = ssub.s32 %s13, 1
      %s19 = ssub.s32 %s13, 2
      %s29 = sadd.s32 1, %s22
      %p30 = scmp.ge.s32.totalorder %s29, 1
      %s31 = scalar_select %p30, 0, %s29
      %s32 = sadd.s32 1, %s21
      %s33 = scalar_select %p30, %s32, %s21
      %p34 = scmp.ge.s32.totalorder %s33, 2
      %s35 = scalar_select %p34, 0, %s33
      %s36 = sadd.s32 1, %s20
      %s37 = scalar_select %p34, %s36, %s20
      %p38 = scmp.ge.s32.totalorder %s37, 2
      %s39 = scalar_select %p38, 0, %s37
      %s40 = sadd.s32 %s21, %s22
      %s41 = sadd.s32 %s35, %s31
      %s42 = ssub.s32 %s20, %s39
      %s43 = ssub.s32 %s40, %s41
      %s44 = sor.u32 %s42, %s43
      %p45 = scmp.eq.s32.totalorder %s44, 0
      %s47 = sadd.s32 %s46, 1
      %s48 = scalar_select %p45, %s46, %s47
      %p51 = pneg %p45
      %p52 = scmp.eq.s32.totalorder %s13, 3
      %p53 = por %p51, %p52
      %p54 = scmp.ne.s32.totalorder %s46, %s49
      %p55 = scmp.eq.s32.totalorder %s13, 0
      %p56 = por %p54, %p55
      %p57 = scmp.ne.s32.totalorder %s46, %s49
      %p58 = scmp.eq.s32.totalorder %s18, 3
      %p59 = por %p57, %p58
      %p60 = scmp.ne.s32.totalorder %s49, %s50
      %p61 = scmp.eq.s32.totalorder %s18, 0
      %p62 = por %p60, %p61
      %p63 = scmp.ne.s32.totalorder %s49, %s50
      %p64 = scmp.eq.s32.totalorder %s19, 3
      %p65 = por %p63, %p64
      %p67 = scmp.ne.s32.totalorder %s50, %s66
      %p68 = scmp.eq.s32.totalorder %s19, 0
      %p69 = por %p67, %p68
      %s71 = sadd.s32 %s70, 1
      %p74 = scmp.eq.s32.totalorder %s13, 3
      %p75 = scmp.ne.s32.totalorder %s70, %s72
      %p76 = scmp.eq.s32.totalorder %s13, 0
      %p77 = por %p75, %p76
      %p78 = scmp.ne.s32.totalorder %s70, %s72
      %p79 = scmp.eq.s32.totalorder %s18, 3
      %p80 = por %p78, %p79
      %p81 = scmp.ne.s32.totalorder %s72, %s73
      %p82 = scmp.eq.s32.totalorder %s18, 0
      %p83 = por %p81, %p82
      %p84 = scmp.ne.s32.totalorder %s72, %s73
      %p85 = scmp.eq.s32.totalorder %s19, 3
      %p86 = por %p84, %p85
      %p88 = scmp.ne.s32.totalorder %s73, %s87
      %p89 = scmp.eq.s32.totalorder %s19, 0
      %p90 = por %p88, %p89
      %s92 = sadd.s32 %s91, 1
      %p95 = scmp.eq.s32.totalorder %s13, 3
      %p96 = scmp.ne.s32.totalorder %s91, %s93
      %p97 = scmp.eq.s32.totalorder %s13, 0
      %p98 = por %p96, %p97
      %p99 = scmp.ne.s32.totalorder %s91, %s93
      %p100 = scmp.eq.s32.totalorder %s18, 3
      %p101 = por %p99, %p100
      %p102 = scmp.ne.s32.totalorder %s93, %s94
      %p103 = scmp.eq.s32.totalorder %s18, 0
      %p104 = por %p102, %p103
      %p105 = scmp.ne.s32.totalorder %s93, %s94
      %p106 = scmp.eq.s32.totalorder %s19, 3
      %p107 = por %p105, %p106
      %p109 = scmp.ne.s32.totalorder %s94, %s108
      %p110 = scmp.eq.s32.totalorder %s19, 0
      %p111 = por %p109, %p110
      %s113 = sadd.s32 %s112, 1
      %p116 = scmp.eq.s32.totalorder %s13, 3
      %p117 = scmp.ne.s32.totalorder %s112, %s114
      %p118 = scmp.eq.s32.totalorder %s13, 0
      %p119 = por %p117, %p118
      %p120 = scmp.ne.s32.totalorder %s112, %s114
      %p121 = scmp.eq.s32.totalorder %s18, 3
      %p122 = por %p120, %p121
      %p123 = scmp.ne.s32.totalorder %s114, %s115
      %p124 = scmp.eq.s32.totalorder %s18, 0
      %p125 = por %p123, %p124
      %p126 = scmp.ne.s32.totalorder %s114, %s115
      %p127 = scmp.eq.s32.totalorder %s19, 3
      %p128 = por %p126, %p127
      %p130 = scmp.ne.s32.totalorder %s115, %s129
      %p131 = scmp.eq.s32.totalorder %s19, 0
      %p132 = por %p130, %p131
      %s133 = sadd.s32 %s21, %s22
      %s134 = sadd.s32 %s35, %s31
      %s135 = ssub.s32 %s20, %s39
      %s136 = ssub.s32 %s133, %s134
      %s137 = sor.u32 %s135, %s136
      %p138 = scmp.eq.s32.totalorder %s137, 0
      %s140 = sadd.s32 %s139, 1
      %s141 = scalar_select %p138, %s139, %s140
      %p144 = pneg %p138
      %p145 = scmp.eq.s32.totalorder %s13, 3
      %p146 = por %p144, %p145
      %p147 = scmp.ne.s32.totalorder %s139, %s142
      %p148 = scmp.eq.s32.totalorder %s13, 0
      %p149 = por %p147, %p148
      %p150 = scmp.ne.s32.totalorder %s139, %s142
      %p151 = scmp.eq.s32.totalorder %s18, 3
      %p152 = por %p150, %p151
      %p153 = scmp.ne.s32.totalorder %s142, %s143
      %p154 = scmp.eq.s32.totalorder %s18, 0
      %p155 = por %p153, %p154
      %p156 = scmp.ne.s32.totalorder %s142, %s143
      %p157 = scmp.eq.s32.totalorder %s19, 3
      %p158 = por %p156, %p157
      %p160 = scmp.ne.s32.totalorder %s143, %s159
      %p161 = scmp.eq.s32.totalorder %s19, 0
      %p162 = por %p160, %p161
      %s163 = smul.u32 %s20, 2
      %s164 = sadd.s32 %s163, %s21
      %s165 = smul.u32 %s39, 2
      %s166 = sadd.s32 %s165, %s35
      %s167 = ssub.s32 %s164, %s166
      %p168 = scmp.eq.s32.totalorder %s167, 0
      %s170 = sadd.s32 %s169, 1
      %s171 = scalar_select %p168, %s169, %s170
      %p174 = pneg %p168
      %p175 = scmp.eq.s32.totalorder %s13, 3
      %p176 = por %p174, %p175
      %p177 = scmp.ne.s32.totalorder %s169, %s172
      %p178 = scmp.eq.s32.totalorder %s13, 0
      %p179 = por %p177, %p178
      %p180 = scmp.ne.s32.totalorder %s169, %s172
      %p181 = scmp.eq.s32.totalorder %s18, 3
      %p182 = por %p180, %p181
      %p183 = scmp.ne.s32.totalorder %s172, %s173
      %p184 = scmp.eq.s32.totalorder %s18, 0
      %p185 = por %p183, %p184
      %p186 = scmp.ne.s32.totalorder %s172, %s173
      %p187 = scmp.eq.s32.totalorder %s19, 3
      %p188 = por %p186, %p187
      %p190 = scmp.ne.s32.totalorder %s173, %s189
      %p191 = scmp.eq.s32.totalorder %s19, 0
      %p192 = por %p190, %p191
      %s193 = smul.u32 %s20, 2
      %s194 = sadd.s32 %s193, %s21
      %s195 = smul.u32 %s39, 2
      %s196 = sadd.s32 %s195, %s35
      %s197 = ssub.s32 %s194, %s196
      %p198 = scmp.eq.s32.totalorder %s197, 0
      %s200 = sadd.s32 %s199, 1
      %s201 = scalar_select %p198, %s199, %s200
      %p204 = pneg %p198
      %p205 = scmp.eq.s32.totalorder %s13, 3
      %p206 = por %p204, %p205
      %p207 = scmp.ne.s32.totalorder %s199, %s202
      %p208 = scmp.eq.s32.totalorder %s13, 0
      %p209 = por %p207, %p208
      %p210 = scmp.ne.s32.totalorder %s199, %s202
      %p211 = scmp.eq.s32.totalorder %s18, 3
      %p212 = por %p210, %p211
      %p213 = scmp.ne.s32.totalorder %s202, %s203
      %p214 = scmp.eq.s32.totalorder %s18, 0
      %p215 = por %p213, %p214
      %p216 = scmp.ne.s32.totalorder %s202, %s203
      %p217 = scmp.eq.s32.totalorder %s19, 3
      %p218 = por %p216, %p217
      %p220 = scmp.ne.s32.totalorder %s203, %s219
      %p221 = scmp.eq.s32.totalorder %s19, 0
      %p222 = por %p220, %p221
      %p223 = scmp.le.s32.totalorder 1, %s13
      %p224 = scmp.lt.s32.totalorder %s13, 5
      %p225 = pnand %p223, %p224
      %p226 = pneg %p225
      // Predicated region
      $region9: #{pointgencon_forward.5} parent=5 // pred_check
        _
      $region10: #{pointgencon_forward.5} parent=5 // pred_check_branch
        %228 = sbr.rel (%p225) target = $region12
      $region11: #{pointgencon_forward.5} parent=5 // pred_region
        %s229 = ssub.s32 %s13, 1
        // Predicated region
        $region13: #{pointgencon_forward.5} parent=11 // pred_check
          %p230 = pneg %p83
        $region14: #{pointgencon_forward.5} parent=11 // pred_check_branch
          %232 = sbr.rel (%p230) target = $region16
        $region15: #{pointgencon_forward.5} parent=11 // pred_region
          _
        $region16: #{pointgencon_forward.5} parent=11 // pred_fallthru
          _
        // Predicated region
        $region17: #{pointgencon_forward.5} parent=11 // pred_check
          %p233 = pneg %p104
        $region18: #{pointgencon_forward.5} parent=11 // pred_check_branch
          %235 = sbr.rel (%p233) target = $region20
        $region19: #{pointgencon_forward.5} parent=11 // pred_region
          _
        $region20: #{pointgencon_forward.5} parent=11 // pred_fallthru
          _
        // Predicated region
        $region21: #{pointgencon_forward.5} parent=11 // pred_check
          %p236 = pneg %p125
        $region22: #{pointgencon_forward.5} parent=11 // pred_check_branch
          %238 = sbr.rel (%p236) target = $region24
        $region23: #{pointgencon_forward.5} parent=11 // pred_region
          _
        $region24: #{pointgencon_forward.5} parent=11 // pred_fallthru
          _
      $region12: #{pointgencon_forward.5} parent=5 // pred_fallthru
        _
      %p239 = scmp.lt.s32.totalorder %s13, 4
      // Predicated region
      $region25: #{pointgencon_forward.5} parent=5 // pred_check
        %p240 = pneg %p239
      $region26: #{pointgencon_forward.5} parent=5 // pred_check_branch
        %242 = sbr.rel (%p240) target = $region28
      $region27: #{pointgencon_forward.5} parent=5 // pred_region
        // Predicated region
        $region29: #{pointgencon_forward.5} parent=27 // pred_check
          %p243 = pneg %p56
        $region30: #{pointgencon_forward.5} parent=27 // pred_check_branch
          %245 = sbr.rel (%p243) target = $region32
        $region31: #{pointgencon_forward.5} parent=27 // pred_region
          %s246 = sand.u32 %s46, 1
          %s247 = sand.u32 %s46, 1
          %s248 = smul.addr %s247, 128
          %s249 = scalar_lea.vmem [#allocation2], %s248
          %s250 = sadd.s32 %s21, %s22
          %s251 = smul.u32 4, %s250
          %s252 = smul.addr %s20, 64
          %s253 = sadd.s32 %s251, %s252
          %s254 = smul.addr %s253, 4
          %s255 = scalar_lea.vmem %s0, %s254
          // Predicated region
          $region33: #{pointgencon_forward.5} parent=31 // pred_check
            _
          $region34: #{pointgencon_forward.5} parent=31 // pred_check_branch
            %257 = sbr.rel (0) target = $region36
          $region35: #{pointgencon_forward.5} parent=31 // pred_region
            // Predicated region
            $region37: #{pointgencon_forward.5} parent=35 // pred_check
              _
            $region38: #{pointgencon_forward.5} parent=35 // pred_check_branch
              %259 = sbr.rel (0) target = $region40
            $region39: #{pointgencon_forward.5} parent=35 // pred_region
              loop: start=0, step=1, limit=1
              $region41: #{pointgencon_forward.5} parent=39 // loop_pre_header
                _
              $region42: #{pointgencon_forward.5} parent=39 // loop_header
                %s261 = sphi 0, %s265
                %p262 = scmp.ge.s32.totalorder %s261, 1
                %s266 = sphi %s255, %s255
                %s267 = sphi %s249, %s249
              $region43: #{pointgencon_forward.5} parent=39 // loop_header_branch
                %264 = sbr.rel (%p262) target = $region47
              $region44: #{pointgencon_forward.5} parent=39 // loop_body
                %v268 = vld [vmem:[%s266] sm:$0xff]
                %269 = vst [vmem:[%s267] sm:$0xff] %v268
                %v270 = vld [vmem:[%s266 + $0x8] sm:$0xff]
                %271 = vst [vmem:[%s267 + $0x8] sm:$0xff] %v270
                %v272 = vld [vmem:[%s266 + $0x20] sm:$0xff]
                %273 = vst [vmem:[%s267 + $0x10] sm:$0xff] %v272
                %v274 = vld [vmem:[%s266 + $0x28] sm:$0xff]
                %275 = vst [vmem:[%s267 + $0x18] sm:$0xff] %v274
                %v276 = vld [vmem:[%s266 + $0x40] sm:$0xff]
                %277 = vst [vmem:[%s267 + $0x20] sm:$0xff] %v276
                %v278 = vld [vmem:[%s266 + $0x48] sm:$0xff]
                %279 = vst [vmem:[%s267 + $0x28] sm:$0xff] %v278
                %v280 = vld [vmem:[%s266 + $0x60] sm:$0xff]
                %281 = vst [vmem:[%s267 + $0x30] sm:$0xff] %v280
                %v282 = vld [vmem:[%s266 + $0x68] sm:$0xff]
                %283 = vst [vmem:[%s267 + $0x38] sm:$0xff] %v282
                %v284 = vld [vmem:[%s266 + $0x80] sm:$0xff]
                %285 = vst [vmem:[%s267 + $0x40] sm:$0xff] %v284
                %v286 = vld [vmem:[%s266 + $0x88] sm:$0xff]
                %287 = vst [vmem:[%s267 + $0x48] sm:$0xff] %v286
                %v288 = vld [vmem:[%s266 + $0xa0] sm:$0xff]
                %289 = vst [vmem:[%s267 + $0x50] sm:$0xff] %v288
                %v290 = vld [vmem:[%s266 + $0xa8] sm:$0xff]
                %291 = vst [vmem:[%s267 + $0x58] sm:$0xff] %v290
                %v292 = vld [vmem:[%s266 + $0xc0] sm:$0xff]
                %293 = vst [vmem:[%s267 + $0x60] sm:$0xff] %v292
                %v294 = vld [vmem:[%s266 + $0xc8] sm:$0xff]
                %295 = vst [vmem:[%s267 + $0x68] sm:$0xff] %v294
                %v296 = vld [vmem:[%s266 + $0xe0] sm:$0xff]
                %297 = vst [vmem:[%s267 + $0x70] sm:$0xff] %v296
                %v298 = vld [vmem:[%s266 + $0xe8] sm:$0xff]
                %299 = vst [vmem:[%s267 + $0x78] sm:$0xff] %v298
              $region45: #{pointgencon_forward.5} parent=39 // loop_footer
                %s265 = sadd.s32 1, %s261
              $region46: #{pointgencon_forward.5} parent=39 // loop_footer_branch
                %260 = sbr.rel target = $region42
              $region47: #{pointgencon_forward.5} parent=39 // loop_exit
                _
            $region40: #{pointgencon_forward.5} parent=35 // pred_fallthru
              _
            // Predicated region
            $region48: #{pointgencon_forward.5} parent=35 // pred_check
              _
            $region49: #{pointgencon_forward.5} parent=35 // pred_check_branch
              %301 = sbr.rel target = $region51
            $region50: #{pointgencon_forward.5} parent=35 // pred_region
              _
            $region51: #{pointgencon_forward.5} parent=35 // pred_fallthru
              _
          $region36: #{pointgencon_forward.5} parent=31 // pred_fallthru
            _
          %302 = vnop
        $region32: #{pointgencon_forward.5} parent=27 // pred_fallthru
          _
      $region28: #{pointgencon_forward.5} parent=5 // pred_fallthru
        _
      %p303 = scmp.le.s32.totalorder 1, %s13
      %p304 = scmp.lt.s32.totalorder %s13, 5
      %p305 = pnand %p303, %p304
      %p306 = pneg %p305
      // Predicated region
      $region52: #{pointgencon_forward.5} parent=5 // pred_check
        _
      $region53: #{pointgencon_forward.5} parent=5 // pred_check_branch
        %308 = sbr.rel (%p305) target = $region55
      $region54: #{pointgencon_forward.5} parent=5 // pred_region
        %s309 = ssub.s32 %s13, 1
        %s310 = sand.u32 %s49, 1
        %s311 = sand.u32 %s49, 1
        %s312 = smul.addr %s311, 128
        %s313 = scalar_lea.vmem [#allocation2], %s312
        // Predicated region
        $region56: #{pointgencon_forward.5} parent=54 // pred_check
          %p314 = pneg %p62
        $region57: #{pointgencon_forward.5} parent=54 // pred_check_branch
          %316 = sbr.rel (%p314) target = $region59
        $region58: #{pointgencon_forward.5} parent=54 // pred_region
          _
        $region59: #{pointgencon_forward.5} parent=54 // pred_fallthru
          _
        %s317 = sand.u32 %s49, 1
        %s318 = sand.u32 %s49, 1
        %s319 = smul.addr %s318, 128
        %s320 = scalar_lea.vmem [#allocation2], %s319
        %p321 = pneg %p62
        %p322 = pneg %p59
        %p323 = pneg %p83
        %p324 = pneg %p80
        %p325 = pneg %p104
        %p326 = pneg %p101
        %p327 = pneg %p125
        %p328 = pneg %p122
        %p329 = pneg %p155
        %p330 = pneg %p152
        %s331 = sand.u32 %s142, 1
        %s332 = sand.u32 %s142, 1
        %s333 = smul.addr %s332, 64
        %s334 = scalar_lea.vmem [#allocation3], %s333
        %p335 = pneg %p185
        %p336 = pneg %p182
        %s337 = smul.u32 %s23, 2
        %s338 = sadd.s32 %s337, %s24
        %p339 = scmp.lt.s32.totalorder %s338, 3
        %s340 = scalar_select %p339, %s338, 3
        %s341 = smul.addr %s340, 4
        %s342 = smul.addr %s341, 8
        %s343 = scalar_lea.vmem %s5, %s342
        %p344 = pneg %p215
        %p345 = pneg %p212
        %s346 = smul.u32 %s23, 2
        %s347 = sadd.s32 %s346, %s24
        %p348 = scmp.lt.s32.totalorder %s347, 3
        %s349 = scalar_select %p348, %s347, 3
        %s350 = smul.addr %s349, 4
        %s351 = smul.addr %s350, 8
        %s352 = scalar_lea.vmem %s6, %s351
        %s353 = sadd.s32 %s24, %s25
        %s354 = smul.u32 4, %s353
        %s355 = sadd.s32 %s24, %s25
        %s356 = smul.u32 4, %s355
        %s357 = smul.u32 %s23, 2
        %s358 = sadd.s32 %s357, %s24
        %p359 = scmp.lt.s32.totalorder %s358, 3
        %s360 = scalar_select %p359, %s358, 3
        %s361 = smul.addr %s360, 4
        %s362 = smul.addr %s361, 8
        %s363 = scalar_lea.vmem %s5, %s362
        %s364 = smul.u32 %s23, 2
        %s365 = sadd.s32 %s364, %s24
        %s366 = smul.u32 %s23, 2
        %s367 = sadd.s32 %s366, %s24
        %p368 = scmp.lt.s32.totalorder %s367, 3
        %s369 = scalar_select %p368, %s367, 3
        %s370 = smul.addr %s369, 4
        %s371 = smul.addr %s370, 8
        %s372 = scalar_lea.vmem %s6, %s371
        %s373 = smul.u32 %s23, 2
        %s374 = sadd.s32 %s373, %s24
        %p376 = scmp.eq.s32.totalorder %s25, 0
        // Predicated region
        $region60: #{pointgencon_forward.5} parent=54 // pred_check
          %p377 = pneg %p376
        $region61: #{pointgencon_forward.5} parent=54 // pred_check_branch
          %379 = sbr.rel (%p377) target = $region63
        $region62: #{pointgencon_forward.5} parent=54 // pred_region
          %vm380 = vcmask 7168
          %381 = vst.msk [vmem:[%s363] sm:$0xff] %vm380, 0.0
          %382 = vst.msk [vmem:[%s363 + $0x8] sm:$0xff] %vm380, 0.0
          %383 = vst.msk [vmem:[%s363 + $0x10] sm:$0xff] %vm380, 0.0
          %384 = vst.msk [vmem:[%s363 + $0x18] sm:$0xff] %vm380, 0.0
          %385 = vst.msk [vmem:[%s372] sm:$0xff] %vm380, 0.0
          %386 = vst.msk [vmem:[%s372 + $0x8] sm:$0xff] %vm380, 0.0
          %387 = vst.msk [vmem:[%s372 + $0x10] sm:$0xff] %vm380, 0.0
          %388 = vst.msk [vmem:[%s372 + $0x18] sm:$0xff] %vm380, 0.0
        $region63: #{pointgencon_forward.5} parent=54 // pred_fallthru
          _
        %v389 = vld [vmem:[%s313] sm:$0xff]
        %v390 = vld [vmem:[%s313 + $0x8] sm:$0xff]
        %v391 = vld [vmem:[%s313 + $0x10] sm:$0xff]
        %v392 = vld [vmem:[%s313 + $0x18] sm:$0xff]
        %v393 = vld [vmem:[%s313 + $0x20] sm:$0xff]
        %v394 = vld [vmem:[%s313 + $0x28] sm:$0xff]
        %v395 = vld [vmem:[%s313 + $0x30] sm:$0xff]
        %v396 = vld [vmem:[%s313 + $0x38] sm:$0xff]
        %v397 = vld [vmem:[%s313 + $0x40] sm:$0xff]
        %v398 = vld [vmem:[%s313 + $0x48] sm:$0xff]
        %v399 = vld [vmem:[%s313 + $0x50] sm:$0xff]
        %v400 = vld [vmem:[%s313 + $0x58] sm:$0xff]
        %v401 = vld [vmem:[%s313 + $0x60] sm:$0xff]
        %v402 = vld [vmem:[%s313 + $0x68] sm:$0xff]
        %v403 = vld [vmem:[%s313 + $0x70] sm:$0xff]
        %v404 = vld [vmem:[%s313 + $0x78] sm:$0xff]
        %v405 = vunpack.c.l.bf16 %v389
        %v406 = vunpack.c.h.bf16 %v389
        %v407 = vunpack.c.l.bf16 %v390
        %v408 = vunpack.c.h.bf16 %v390
        %v409 = vunpack.c.l.bf16 %v391
        %v410 = vunpack.c.h.bf16 %v391
        %v411 = vunpack.c.l.bf16 %v392
        %v412 = vunpack.c.h.bf16 %v392
        %v413 = vunpack.c.l.bf16 %v393
        %v414 = vunpack.c.h.bf16 %v393
        %v415 = vunpack.c.l.bf16 %v394
        %v416 = vunpack.c.h.bf16 %v394
        %v417 = vunpack.c.l.bf16 %v395
        %v418 = vunpack.c.h.bf16 %v395
        %v419 = vunpack.c.l.bf16 %v396
        %v420 = vunpack.c.h.bf16 %v396
        %v421 = vunpack.c.l.bf16 %v397
        %v422 = vunpack.c.h.bf16 %v397
        %v423 = vunpack.c.l.bf16 %v398
        %v424 = vunpack.c.h.bf16 %v398
        %v425 = vunpack.c.l.bf16 %v399
        %v426 = vunpack.c.h.bf16 %v399
        %v427 = vunpack.c.l.bf16 %v400
        %v428 = vunpack.c.h.bf16 %v400
        %v429 = vunpack.c.l.bf16 %v401
        %v430 = vunpack.c.h.bf16 %v401
        %v431 = vunpack.c.l.bf16 %v402
        %v432 = vunpack.c.h.bf16 %v402
        %v433 = vunpack.c.l.bf16 %v403
        %v434 = vunpack.c.h.bf16 %v403
        %v435 = vunpack.c.l.bf16 %v404
        %v436 = vunpack.c.h.bf16 %v404
        %v437 = vld [vmem:[%s1] sm:$0xff]
        %v438 = vld [vmem:[%s1 + $0x8] sm:$0xff]
        %v439 = vld [vmem:[%s1 + $0x10] sm:$0xff]
        %v440 = vld [vmem:[%s1 + $0x18] sm:$0xff]
        %v441 = vld [vmem:[%s1 + $0x20] sm:$0xff]
        %v442 = vld [vmem:[%s1 + $0x28] sm:$0xff]
        %v443 = vld [vmem:[%s1 + $0x30] sm:$0xff]
        %v444 = vld [vmem:[%s1 + $0x38] sm:$0xff]
        %446 = vset.pattern.permute.xlu0 0
        %447 = vperm.xlu0 %446, %v437
        %v448 = vpop.permute.xlu0 %447
        %451 = vset.pattern.permute.xlu0 0
        %452 = vperm.xlu0 %451, %v438
        %v453 = vpop.permute.xlu0 %452
        %456 = vset.pattern.permute.xlu0 0
        %457 = vperm.xlu0 %456, %v439
        %v458 = vpop.permute.xlu0 %457
        %461 = vset.pattern.permute.xlu0 0
        %462 = vperm.xlu0 %461, %v440
        %v463 = vpop.permute.xlu0 %462
        %466 = vset.pattern.permute.xlu0 0
        %467 = vperm.xlu0 %466, %v441
        %v468 = vpop.permute.xlu0 %467
        %471 = vset.pattern.permute.xlu0 0
        %472 = vperm.xlu0 %471, %v442
        %v473 = vpop.permute.xlu0 %472
        %476 = vset.pattern.permute.xlu0 0
        %477 = vperm.xlu0 %476, %v443
        %v478 = vpop.permute.xlu0 %477
        %481 = vset.pattern.permute.xlu0 0
        %482 = vperm.xlu0 %481, %v444
        %v483 = vpop.permute.xlu0 %482
        %v485 = vmul.f32 %v405, %v448
        %v486 = vmul.f32 %v406, %v448
        %v487 = vmul.f32 %v407, %v448
        %v488 = vmul.f32 %v408, %v448
        %v489 = vmul.f32 %v409, %v453
        %v490 = vmul.f32 %v410, %v453
        %v491 = vmul.f32 %v411, %v453
        %v492 = vmul.f32 %v412, %v453
        %v493 = vmul.f32 %v413, %v458
        %v494 = vmul.f32 %v414, %v458
        %v495 = vmul.f32 %v415, %v458
        %v496 = vmul.f32 %v416, %v458
        %v497 = vmul.f32 %v417, %v463
        %v498 = vmul.f32 %v418, %v463
        %v499 = vmul.f32 %v419, %v463
        %v500 = vmul.f32 %v420, %v463
        %v501 = vmul.f32 %v421, %v468
        %v502 = vmul.f32 %v422, %v468
        %v503 = vmul.f32 %v423, %v468
        %v504 = vmul.f32 %v424, %v468
        %v505 = vmul.f32 %v425, %v473
        %v506 = vmul.f32 %v426, %v473
        %v507 = vmul.f32 %v427, %v473
        %v508 = vmul.f32 %v428, %v473
        %v509 = vmul.f32 %v429, %v478
        %v510 = vmul.f32 %v430, %v478
        %v511 = vmul.f32 %v431, %v478
        %v512 = vmul.f32 %v432, %v478
        %v513 = vmul.f32 %v433, %v483
        %v514 = vmul.f32 %v434, %v483
        %v515 = vmul.f32 %v435, %v483
        %v516 = vmul.f32 %v436, %v483
        %v517 = vld [vmem:[%s2] sm:$0xff]
        %v518 = vld [vmem:[%s2 + $0x8] sm:$0xff]
        %v519 = vld [vmem:[%s2 + $0x10] sm:$0xff]
        %v520 = vld [vmem:[%s2 + $0x18] sm:$0xff]
        %v521 = vld [vmem:[%s2 + $0x20] sm:$0xff]
        %v522 = vld [vmem:[%s2 + $0x28] sm:$0xff]
        %v523 = vld [vmem:[%s2 + $0x30] sm:$0xff]
        %v524 = vld [vmem:[%s2 + $0x38] sm:$0xff]
        %526 = vset.pattern.permute.xlu0 0
        %527 = vperm.xlu0 %526, %v517
        %v528 = vpop.permute.xlu0 %527
        %531 = vset.pattern.permute.xlu0 0
        %532 = vperm.xlu0 %531, %v518
        %v533 = vpop.permute.xlu0 %532
        %536 = vset.pattern.permute.xlu0 0
        %537 = vperm.xlu0 %536, %v519
        %v538 = vpop.permute.xlu0 %537
        %541 = vset.pattern.permute.xlu0 0
        %542 = vperm.xlu0 %541, %v520
        %v543 = vpop.permute.xlu0 %542
        %546 = vset.pattern.permute.xlu0 0
        %547 = vperm.xlu0 %546, %v521
        %v548 = vpop.permute.xlu0 %547
        %551 = vset.pattern.permute.xlu0 0
        %552 = vperm.xlu0 %551, %v522
        %v553 = vpop.permute.xlu0 %552
        %556 = vset.pattern.permute.xlu0 0
        %557 = vperm.xlu0 %556, %v523
        %v558 = vpop.permute.xlu0 %557
        %561 = vset.pattern.permute.xlu0 0
        %562 = vperm.xlu0 %561, %v524
        %v563 = vpop.permute.xlu0 %562
        %v565 = vadd.f32 %v485, %v528
        %v566 = vadd.f32 %v486, %v528
        %v567 = vadd.f32 %v487, %v528
        %v568 = vadd.f32 %v488, %v528
        %v569 = vadd.f32 %v489, %v533
        %v570 = vadd.f32 %v490, %v533
        %v571 = vadd.f32 %v491, %v533
        %v572 = vadd.f32 %v492, %v533
        %v573 = vadd.f32 %v493, %v538
        %v574 = vadd.f32 %v494, %v538
        %v575 = vadd.f32 %v495, %v538
        %v576 = vadd.f32 %v496, %v538
        %v577 = vadd.f32 %v497, %v543
        %v578 = vadd.f32 %v498, %v543
        %v579 = vadd.f32 %v499, %v543
        %v580 = vadd.f32 %v500, %v543
        %v581 = vadd.f32 %v501, %v548
        %v582 = vadd.f32 %v502, %v548
        %v583 = vadd.f32 %v503, %v548
        %v584 = vadd.f32 %v504, %v548
        %v585 = vadd.f32 %v505, %v553
        %v586 = vadd.f32 %v506, %v553
        %v587 = vadd.f32 %v507, %v553
        %v588 = vadd.f32 %v508, %v553
        %v589 = vadd.f32 %v509, %v558
        %v590 = vadd.f32 %v510, %v558
        %v591 = vadd.f32 %v511, %v558
        %v592 = vadd.f32 %v512, %v558
        %v593 = vadd.f32 %v513, %v563
        %v594 = vadd.f32 %v514, %v563
        %v595 = vadd.f32 %v515, %v563
        %v596 = vadd.f32 %v516, %v563
        %v597 = vmax.f32 %v565, 0.0
        %v598 = vmax.f32 %v566, 0.0
        %v599 = vmax.f32 %v567, 0.0
        %v600 = vmax.f32 %v568, 0.0
        %v601 = vmax.f32 %v569, 0.0
        %v602 = vmax.f32 %v570, 0.0
        %v603 = vmax.f32 %v571, 0.0
        %v604 = vmax.f32 %v572, 0.0
        %v605 = vmax.f32 %v573, 0.0
        %v606 = vmax.f32 %v574, 0.0
        %v607 = vmax.f32 %v575, 0.0
        %v608 = vmax.f32 %v576, 0.0
        %v609 = vmax.f32 %v577, 0.0
        %v610 = vmax.f32 %v578, 0.0
        %v611 = vmax.f32 %v579, 0.0
        %v612 = vmax.f32 %v580, 0.0
        %v613 = vmax.f32 %v581, 0.0
        %v614 = vmax.f32 %v582, 0.0
        %v615 = vmax.f32 %v583, 0.0
        %v616 = vmax.f32 %v584, 0.0
        %v617 = vmax.f32 %v585, 0.0
        %v618 = vmax.f32 %v586, 0.0
        %v619 = vmax.f32 %v587, 0.0
        %v620 = vmax.f32 %v588, 0.0
        %v621 = vmax.f32 %v589, 0.0
        %v622 = vmax.f32 %v590, 0.0
        %v623 = vmax.f32 %v591, 0.0
        %v624 = vmax.f32 %v592, 0.0
        %v625 = vmax.f32 %v593, 0.0
        %v626 = vmax.f32 %v594, 0.0
        %v627 = vmax.f32 %v595, 0.0
        %v628 = vmax.f32 %v596, 0.0
        %v629 = vld [vmem:[%s3] sm:$0xf]
        %v630 = vld [vmem:[%s3 + $0x4] sm:$0xf]
        %v631 = vld [vmem:[%s3 + $0x8] sm:$0xf]
        %v632 = vld [vmem:[%s3 + $0xc] sm:$0xf]
        %v633 = vpack.c.bf16 %v601, %v597
        %v634 = vpack.c.bf16 %v602, %v598
        %v635 = vpack.c.bf16 %v603, %v599
        %v636 = vpack.c.bf16 %v604, %v600
        %v637 = vpack.c.bf16 %v609, %v605
        %v638 = vpack.c.bf16 %v610, %v606
        %v639 = vpack.c.bf16 %v611, %v607
        %v640 = vpack.c.bf16 %v612, %v608
        %v641 = vpack.c.bf16 %v617, %v613
        %v642 = vpack.c.bf16 %v618, %v614
        %v643 = vpack.c.bf16 %v619, %v615
        %v644 = vpack.c.bf16 %v620, %v616
        %v645 = vpack.c.bf16 %v625, %v621
        %v646 = vpack.c.bf16 %v626, %v622
        %v647 = vpack.c.bf16 %v627, %v623
        %v648 = vpack.c.bf16 %v628, %v624
        %v653 = vunpack.c.l.b16 %v629
        %v654 = vunpack.c.l.b16 %v630
        %v655 = vunpack.c.l.b16 %v631
        %v656 = vunpack.c.l.b16 %v632
        %v657 = vpack.c.b16 %v654, %v653
        %v658 = vpack.c.b16 %v656, %v655
        %vm659 = vcmask 523264
        %v661 = vsel %vm659, %v657, 0
        %v664 = vsel %vm659, %v658, 0
        %666 = vmatprep.subr.bf16.mxu0 %v634
        %667 = vmatpush1.bf16.msra.mxu0 %v633
        %668 = vmatprep.subr.bf16.mxu0 %v638
        %669 = vmatpush1.bf16.msra.mxu0 %v637
        %670 = vmatprep.subr.bf16.mxu0 %v642
        %671 = vmatpush1.bf16.msra.mxu0 %v641
        %672 = vmatprep.subr.bf16.mxu0 %v646
        %673 = vmatpush1.bf16.msra.mxu0 %v645
        %674 = vmatprep.subr.bf16.mxu0 0
        %675 = vmatpush1.bf16.msra.mxu0 0
        %676 = vmatprep.subr.bf16.mxu0 0
        %677 = vmatpush1.bf16.msra.mxu0 0
        %678 = vmatprep.subr.bf16.mxu0 0
        %679 = vmatpush1.bf16.msra.mxu0 0
        %680 = vmatprep.subr.bf16.mxu0 0
        %681 = vmatpush1.bf16.msra.mxu0 0
        %682 = vmatprep.subr.bf16.mxu0 0
        %683 = vmatpush1.bf16.msra.mxu0 0
        %684 = vmatprep.subr.bf16.mxu0 0
        %685 = vmatpush1.bf16.msra.mxu0 0
        %686 = vmatprep.subr.bf16.mxu0 0
        %687 = vmatpush1.bf16.msra.mxu0 0
        %688 = vmatprep.subr.bf16.mxu0 0
        %689 = vmatpush1.bf16.msra.mxu0 0
        %690 = vmatprep.subr.bf16.mxu0 0
        %691 = vmatpush1.bf16.msra.mxu0 0
        %692 = vmatprep.subr.bf16.mxu0 0
        %693 = vmatpush1.bf16.msra.mxu0 0
        %694 = vmatprep.subr.bf16.mxu0 0
        %695 = vmatpush1.bf16.msra.mxu0 0
        %696 = vmatprep.subr.bf16.mxu0 0
        %697 = vmatpush1.bf16.msra.mxu0 0
        %698 = vmatprep.mubr.bf16.mxu0 0
        %699 = vmatmul.mubr.bf16.gmra.mrb[0].mxu0 %v661
        %v700 = vpop.f32.mrb[0].mxu0
        %v701 = vadd.f32 0.0, %v700
        %v702 = vpop.f32.mrb[0].mxu0
        %v703 = vadd.f32 0.0, %v702
        %v704 = vpop.f32.mrb[0].mxu0
        %v705 = vadd.f32 0.0, %v704
        %v706 = vpop.f32.mrb[0].mxu0
        %v707 = vadd.f32 0.0, %v706
        %708 = vmatprep.mubr.bf16.mxu0 0
        %709 = vmatmul.mubr.bf16.gmra.mrb[0].mxu0 %v664
        %v710 = vpop.f32.mrb[0].mxu0
        %v711 = vadd.f32 0.0, %v710
        %v712 = vpop.f32.mrb[0].mxu0
        %v713 = vadd.f32 0.0, %v712
        %v714 = vpop.f32.mrb[0].mxu0
        %v715 = vadd.f32 0.0, %v714
        %v716 = vpop.f32.mrb[0].mxu0
        %v717 = vadd.f32 0.0, %v716
        %718 = vdwg.mxu0
        %719 = vmatprep.subr.bf16.mxu0 %v636
        %720 = vmatpush1.bf16.msra.mxu0 %v635
        %721 = vmatprep.subr.bf16.mxu0 %v640
        %722 = vmatpush1.bf16.msra.mxu0 %v639
        %723 = vmatprep.subr.bf16.mxu0 %v644
        %724 = vmatpush1.bf16.msra.mxu0 %v643
        %725 = vmatprep.subr.bf16.mxu0 %v648
        %726 = vmatpush1.bf16.msra.mxu0 %v647
        %727 = vmatprep.subr.bf16.mxu0 0
        %728 = vmatpush1.bf16.msra.mxu0 0
        %729 = vmatprep.subr.bf16.mxu0 0
        %730 = vmatpush1.bf16.msra.mxu0 0
        %731 = vmatprep.subr.bf16.mxu0 0
        %732 = vmatpush1.bf16.msra.mxu0 0
        %733 = vmatprep.subr.bf16.mxu0 0
        %734 = vmatpush1.bf16.msra.mxu0 0
        %735 = vmatprep.subr.bf16.mxu0 0
        %736 = vmatpush1.bf16.msra.mxu0 0
        %737 = vmatprep.subr.bf16.mxu0 0
        %738 = vmatpush1.bf16.msra.mxu0 0
        %739 = vmatprep.subr.bf16.mxu0 0
        %740 = vmatpush1.bf16.msra.mxu0 0
        %741 = vmatprep.subr.bf16.mxu0 0
        %742 = vmatpush1.bf16.msra.mxu0 0
        %743 = vmatprep.subr.bf16.mxu0 0
        %744 = vmatpush1.bf16.msra.mxu0 0
        %745 = vmatprep.subr.bf16.mxu0 0
        %746 = vmatpush1.bf16.msra.mxu0 0
        %747 = vmatprep.subr.bf16.mxu0 0
        %748 = vmatpush1.bf16.msra.mxu0 0
        %749 = vmatprep.subr.bf16.mxu0 0
        %750 = vmatpush1.bf16.msra.mxu0 0
        %751 = vmatprep.mubr.bf16.mxu0 0
        %752 = vmatmul.mubr.bf16.gmra.mrb[0].mxu0 %v661
        %v753 = vpop.f32.mrb[0].mxu0
        %v754 = vadd.f32 0.0, %v753
        %v755 = vpop.f32.mrb[0].mxu0
        %v756 = vadd.f32 0.0, %v755
        %v757 = vpop.f32.mrb[0].mxu0
        %v758 = vadd.f32 0.0, %v757
        %v759 = vpop.f32.mrb[0].mxu0
        %v760 = vadd.f32 0.0, %v759
        %761 = vmatprep.mubr.bf16.mxu0 0
        %762 = vmatmul.mubr.bf16.gmra.mrb[0].mxu0 %v664
        %v763 = vpop.f32.mrb[0].mxu0
        %v764 = vadd.f32 0.0, %v763
        %v765 = vpop.f32.mrb[0].mxu0
        %v766 = vadd.f32 0.0, %v765
        %v767 = vpop.f32.mrb[0].mxu0
        %v768 = vadd.f32 0.0, %v767
        %v769 = vpop.f32.mrb[0].mxu0
        %v770 = vadd.f32 0.0, %v769
        %771 = vdwg.mxu0
        %v772 = vpack.c.bf16 %v705, %v701
        %v773 = vpack.c.bf16 %v707, %v703
        %v774 = vpack.c.bf16 %v758, %v754
        %v775 = vpack.c.bf16 %v760, %v756
        %v776 = vpack.c.bf16 %v715, %v711
        %v777 = vpack.c.bf16 %v717, %v713
        %v778 = vpack.c.bf16 %v768, %v764
        %v779 = vpack.c.bf16 %v770, %v766
        %v788 = vunpack.c.l.b16 %v772
        %v789 = vunpack.c.l.b16 %v773
        %v790 = vunpack.c.l.b16 %v774
        %v791 = vunpack.c.l.b16 %v775
        %v792 = vunpack.c.h.b16 %v772
        %v793 = vunpack.c.h.b16 %v773
        %v794 = vunpack.c.h.b16 %v774
        %v795 = vunpack.c.h.b16 %v775
        %v796 = vunpack.c.l.b16 %v776
        %v797 = vunpack.c.l.b16 %v777
        %v798 = vunpack.c.l.b16 %v778
        %v799 = vunpack.c.l.b16 %v779
        %v800 = vunpack.c.h.b16 %v776
        %v801 = vunpack.c.h.b16 %v777
        %v802 = vunpack.c.h.b16 %v778
        %v803 = vunpack.c.h.b16 %v779
        %v804 = vpack.c.b16 %v789, %v788
        %v805 = vpack.c.b16 %v791, %v790
        %v806 = vpack.c.b16 %v793, %v792
        %v807 = vpack.c.b16 %v795, %v794
        %v808 = vpack.c.b16 %v797, %v796
        %v809 = vpack.c.b16 %v799, %v798
        %v810 = vpack.c.b16 %v801, %v800
        %v811 = vpack.c.b16 %v803, %v802
        %820 = vst [vmem:[%s334] sm:$0xff] %v804
        %821 = vst [vmem:[%s334 + $0x8] sm:$0xff] %v805
        %822 = vst [vmem:[%s334 + $0x10] sm:$0xff] %v806
        %823 = vst [vmem:[%s334 + $0x18] sm:$0xff] %v807
        %824 = vst [vmem:[%s334 + $0x20] sm:$0xff] %v808
        %825 = vst [vmem:[%s334 + $0x28] sm:$0xff] %v809
        %826 = vst [vmem:[%s334 + $0x30] sm:$0xff] %v810
        %827 = vst [vmem:[%s334 + $0x38] sm:$0xff] %v811
        %v828 = vld [vmem:[%s363] sm:$0xff]
        %v829 = vld [vmem:[%s363 + $0x8] sm:$0xff]
        %v830 = vld [vmem:[%s363 + $0x10] sm:$0xff]
        %v831 = vld [vmem:[%s363 + $0x18] sm:$0xff]
        %v832 = vadd.f32 %v701, %v703
        %v833 = vadd.f32 %v832, %v754
        %v834 = vadd.f32 %v833, %v756
        %835 = vadd.xlane.f32.xlu0 %v834
        %v836 = vpop.xlane.xlu0 %835
        %v837 = vadd.f32 %v705, %v707
        %v838 = vadd.f32 %v837, %v758
        %v839 = vadd.f32 %v838, %v760
        %840 = vadd.xlane.f32.xlu0 %v839
        %v841 = vpop.xlane.xlu0 %840
        %v842 = vadd.f32 %v711, %v713
        %v843 = vadd.f32 %v842, %v764
        %v844 = vadd.f32 %v843, %v766
        %845 = vadd.xlane.f32.xlu0 %v844
        %v846 = vpop.xlane.xlu0 %845
        %v847 = vadd.f32 %v715, %v717
        %v848 = vadd.f32 %v847, %v768
        %v849 = vadd.f32 %v848, %v770
        %850 = vadd.xlane.f32.xlu0 %v849
        %v851 = vpop.xlane.xlu0 %850
        %v852 = vadd.f32 %v828, %v836
        %v853 = vadd.f32 %v829, %v841
        %v854 = vadd.f32 %v830, %v846
        %v855 = vadd.f32 %v831, %v851
        %vm856 = vcmask 7168
        %857 = vst.msk [vmem:[%s363] sm:$0xff] %vm856, %v852
        %858 = vst.msk [vmem:[%s363 + $0x8] sm:$0xff] %vm856, %v853
        %859 = vst.msk [vmem:[%s363 + $0x10] sm:$0xff] %vm856, %v854
        %860 = vst.msk [vmem:[%s363 + $0x18] sm:$0xff] %vm856, %v855
        %v861 = vld [vmem:[%s372] sm:$0xff]
        %v862 = vld [vmem:[%s372 + $0x8] sm:$0xff]
        %v863 = vld [vmem:[%s372 + $0x10] sm:$0xff]
        %v864 = vld [vmem:[%s372 + $0x18] sm:$0xff]
        %v865 = vmul.f32 %v701, %v701
        %v866 = vmul.f32 %v703, %v703
        %v867 = vmul.f32 %v754, %v754
        %v868 = vmul.f32 %v756, %v756
        %v869 = vmul.f32 %v705, %v705
        %v870 = vmul.f32 %v707, %v707
        %v871 = vmul.f32 %v758, %v758
        %v872 = vmul.f32 %v760, %v760
        %v873 = vmul.f32 %v711, %v711
        %v874 = vmul.f32 %v713, %v713
        %v875 = vmul.f32 %v764, %v764
        %v876 = vmul.f32 %v766, %v766
        %v877 = vmul.f32 %v715, %v715
        %v878 = vmul.f32 %v717, %v717
        %v879 = vmul.f32 %v768, %v768
        %v880 = vmul.f32 %v770, %v770
        %v881 = vadd.f32 %v865, %v866
        %v882 = vadd.f32 %v881, %v867
        %v883 = vadd.f32 %v882, %v868
        %884 = vadd.xlane.f32.xlu0 %v883
        %v885 = vpop.xlane.xlu0 %884
        %v886 = vadd.f32 %v869, %v870
        %v887 = vadd.f32 %v886, %v871
        %v888 = vadd.f32 %v887, %v872
        %889 = vadd.xlane.f32.xlu0 %v888
        %v890 = vpop.xlane.xlu0 %889
        %v891 = vadd.f32 %v873, %v874
        %v892 = vadd.f32 %v891, %v875
        %v893 = vadd.f32 %v892, %v876
        %894 = vadd.xlane.f32.xlu0 %v893
        %v895 = vpop.xlane.xlu0 %894
        %v896 = vadd.f32 %v877, %v878
        %v897 = vadd.f32 %v896, %v879
        %v898 = vadd.f32 %v897, %v880
        %899 = vadd.xlane.f32.xlu0 %v898
        %v900 = vpop.xlane.xlu0 %899
        %v901 = vadd.f32 %v861, %v885
        %v902 = vadd.f32 %v862, %v890
        %v903 = vadd.f32 %v863, %v895
        %v904 = vadd.f32 %v864, %v900
        %905 = vst.msk [vmem:[%s372] sm:$0xff] %vm856, %v901
        %906 = vst.msk [vmem:[%s372 + $0x8] sm:$0xff] %vm856, %v902
        %907 = vst.msk [vmem:[%s372 + $0x10] sm:$0xff] %vm856, %v903
        %908 = vst.msk [vmem:[%s372 + $0x18] sm:$0xff] %vm856, %v904
        %s909 = sand.u32 %s142, 1
        %s910 = sand.u32 %s142, 1
        %s911 = smul.addr %s910, 64
        %s912 = scalar_lea.vmem [#allocation3], %s911
        %s913 = smul.u32 %s23, 2
        %s914 = sadd.s32 %s913, %s24
        %p915 = scmp.lt.s32.totalorder %s914, 3
        %s916 = scalar_select %p915, %s914, 3
        %s917 = smul.addr %s916, 4
        %s918 = smul.addr %s917, 8
        %s919 = scalar_lea.vmem %s5, %s918
        %s920 = smul.u32 %s23, 2
        %s921 = sadd.s32 %s920, %s24
        %p922 = scmp.lt.s32.totalorder %s921, 3
        %s923 = scalar_select %p922, %s921, 3
        %s924 = smul.addr %s923, 4
        %s925 = smul.addr %s924, 8
        %s926 = scalar_lea.vmem %s6, %s925
        // Predicated region
        $region64: #{pointgencon_forward.5} parent=54 // pred_check
          %p927 = pneg %p152
        $region65: #{pointgencon_forward.5} parent=54 // pred_check_branch
          %929 = sbr.rel (%p927) target = $region67
        $region66: #{pointgencon_forward.5} parent=54 // pred_region
          %s930 = sadd.s32 %s24, %s25
          %s931 = smul.u32 4, %s930
          %s932 = smul.addr %s23, 32
          %s933 = sadd.s32 %s931, %s932
          %s934 = smul.addr %s933, 4
          %s935 = scalar_lea.vmem %s4, %s934
          // Predicated region
          $region68: #{pointgencon_forward.5} parent=66 // pred_check
            _
          $region69: #{pointgencon_forward.5} parent=66 // pred_check_branch
            %937 = sbr.rel (0) target = $region71
          $region70: #{pointgencon_forward.5} parent=66 // pred_region
            // Predicated region
            $region72: #{pointgencon_forward.5} parent=70 // pred_check
              _
            $region73: #{pointgencon_forward.5} parent=70 // pred_check_branch
              %939 = sbr.rel (0) target = $region75
            $region74: #{pointgencon_forward.5} parent=70 // pred_region
              loop: start=0, step=1, limit=1
              $region76: #{pointgencon_forward.5} parent=74 // loop_pre_header
                _
              $region77: #{pointgencon_forward.5} parent=74 // loop_header
                %s941 = sphi 0, %s945
                %p942 = scmp.ge.s32.totalorder %s941, 1
                %s946 = sphi %s912, %s912
                %s947 = sphi %s935, %s935
              $region78: #{pointgencon_forward.5} parent=74 // loop_header_branch
                %944 = sbr.rel (%p942) target = $region82
              $region79: #{pointgencon_forward.5} parent=74 // loop_body
                %v948 = vld [vmem:[%s946] sm:$0xff]
                %949 = vst [vmem:[%s947] sm:$0xff] %v948
                %v950 = vld [vmem:[%s946 + $0x8] sm:$0xff]
                %951 = vst [vmem:[%s947 + $0x8] sm:$0xff] %v950
                %v952 = vld [vmem:[%s946 + $0x10] sm:$0xff]
                %953 = vst [vmem:[%s947 + $0x20] sm:$0xff] %v952
                %v954 = vld [vmem:[%s946 + $0x18] sm:$0xff]
                %955 = vst [vmem:[%s947 + $0x28] sm:$0xff] %v954
                %v956 = vld [vmem:[%s946 + $0x20] sm:$0xff]
                %957 = vst [vmem:[%s947 + $0x40] sm:$0xff] %v956
                %v958 = vld [vmem:[%s946 + $0x28] sm:$0xff]
                %959 = vst [vmem:[%s947 + $0x48] sm:$0xff] %v958
                %v960 = vld [vmem:[%s946 + $0x30] sm:$0xff]
                %961 = vst [vmem:[%s947 + $0x60] sm:$0xff] %v960
                %v962 = vld [vmem:[%s946 + $0x38] sm:$0xff]
                %963 = vst [vmem:[%s947 + $0x68] sm:$0xff] %v962
              $region80: #{pointgencon_forward.5} parent=74 // loop_footer
                %s945 = sadd.s32 1, %s941
              $region81: #{pointgencon_forward.5} parent=74 // loop_footer_branch
                %940 = sbr.rel target = $region77
              $region82: #{pointgencon_forward.5} parent=74 // loop_exit
                _
            $region75: #{pointgencon_forward.5} parent=70 // pred_fallthru
              _
            // Predicated region
            $region83: #{pointgencon_forward.5} parent=70 // pred_check
              _
            $region84: #{pointgencon_forward.5} parent=70 // pred_check_branch
              %965 = sbr.rel target = $region86
            $region85: #{pointgencon_forward.5} parent=70 // pred_region
              _
            $region86: #{pointgencon_forward.5} parent=70 // pred_fallthru
              _
          $region71: #{pointgencon_forward.5} parent=66 // pred_fallthru
            _
          %966 = vnop
        $region67: #{pointgencon_forward.5} parent=54 // pred_fallthru
          _
        // Predicated region
        $region87: #{pointgencon_forward.5} parent=54 // pred_check
          %p967 = pneg %p182
        $region88: #{pointgencon_forward.5} parent=54 // pred_check_branch
          %969 = sbr.rel (%p967) target = $region90
        $region89: #{pointgencon_forward.5} parent=54 // pred_region
          %s970 = smul.u32 %s23, 2
          %s971 = sadd.s32 %s970, %s24
        $region90: #{pointgencon_forward.5} parent=54 // pred_fallthru
          _
        // Predicated region
        $region91: #{pointgencon_forward.5} parent=54 // pred_check
          %p972 = pneg %p212
        $region92: #{pointgencon_forward.5} parent=54 // pred_check_branch
          %974 = sbr.rel (%p972) target = $region94
        $region93: #{pointgencon_forward.5} parent=54 // pred_region
          %s975 = smul.u32 %s23, 2
          %s976 = sadd.s32 %s975, %s24
        $region94: #{pointgencon_forward.5} parent=54 // pred_fallthru
          _
      $region55: #{pointgencon_forward.5} parent=5 // pred_fallthru
        _
      %p977 = scmp.le.s32.totalorder 2, %s13
      // Predicated region
      $region95: #{pointgencon_forward.5} parent=5 // pred_check
        %p978 = pneg %p977
      $region96: #{pointgencon_forward.5} parent=5 // pred_check_branch
        %980 = sbr.rel (%p978) target = $region98
      $region97: #{pointgencon_forward.5} parent=5 // pred_region
        %s981 = ssub.s32 %s13, 2
        // Predicated region
        $region99: #{pointgencon_forward.5} parent=97 // pred_check
          %p982 = pneg %p158
        $region100: #{pointgencon_forward.5} parent=97 // pred_check_branch
          %984 = sbr.rel (%p982) target = $region102
        $region101: #{pointgencon_forward.5} parent=97 // pred_region
          %s985 = sand.u32 %s143, 1
          %s986 = sand.u32 %s143, 1
          %s987 = smul.addr %s986, 64
          %s988 = scalar_lea.vmem [#allocation3], %s987
        $region102: #{pointgencon_forward.5} parent=97 // pred_fallthru
          _
        // Predicated region
        $region103: #{pointgencon_forward.5} parent=97 // pred_check
          %p989 = pneg %p188
        $region104: #{pointgencon_forward.5} parent=97 // pred_check_branch
          %991 = sbr.rel (%p989) target = $region106
        $region105: #{pointgencon_forward.5} parent=97 // pred_region
          %s992 = smul.u32 %s26, 2
          %s993 = sadd.s32 %s992, %s27
          %p994 = scmp.lt.s32.totalorder %s993, 3
          %s995 = scalar_select %p994, %s993, 3
          %s996 = smul.addr %s995, 4
          %s997 = smul.addr %s996, 8
          %s998 = scalar_lea.vmem %s5, %s997
        $region106: #{pointgencon_forward.5} parent=97 // pred_fallthru
          _
        // Predicated region
        $region107: #{pointgencon_forward.5} parent=97 // pred_check
          %p999 = pneg %p218
        $region108: #{pointgencon_forward.5} parent=97 // pred_check_branch
          %1001 = sbr.rel (%p999) target = $region110
        $region109: #{pointgencon_forward.5} parent=97 // pred_region
          %s1002 = smul.u32 %s26, 2
          %s1003 = sadd.s32 %s1002, %s27
          %p1004 = scmp.lt.s32.totalorder %s1003, 3
          %s1005 = scalar_select %p1004, %s1003, 3
          %s1006 = smul.addr %s1005, 4
          %s1007 = smul.addr %s1006, 8
          %s1008 = scalar_lea.vmem %s6, %s1007
        $region110: #{pointgencon_forward.5} parent=97 // pred_fallthru
          _
      $region98: #{pointgencon_forward.5} parent=5 // pred_fallthru
        _
    $region6: #{pointgencon_forward.5} parent=1 // loop_footer
      %s17 = sadd.s32 1, %s13
    $region7: #{pointgencon_forward.5} parent=1 // loop_footer_branch
      %12 = sbr.rel target = $region3
    $region8: #{pointgencon_forward.5} parent=1 // loop_exit
      _

// kernel: pointgencon_forward.7
$region0: #{pointgencon_forward.7}
  #allocation0 [shape = 'u32[]', space=smem, size = 0x4, offset = 0x4, fixed_abs, tag = 'smem constant byte address 0x4 - core index']
  #allocation1 [shape = 'u32[144,128]{1,0:T(1,128)}', space=vmem, size = 0x12000, scoped, tag = 'internal scratch']
  %s0 = inlined_call_operand.vmem [shape: bf16[2,16,1024], index: 0, kind: input, shape index: {}]
  %s1 = inlined_call_operand.vmem [shape: f32[16,1], index: 1, kind: input, shape index: {}]
  %s2 = inlined_call_operand.vmem [shape: f32[16,1], index: 2, kind: input, shape index: {}]
  %s3 = inlined_call_operand.vmem [shape: bf16[3,16], index: 3, kind: input, shape index: {}]
  %s4 = inlined_call_operand.vmem [shape: f32[3,1], index: 4, kind: input, shape index: {}]
  %s5 = inlined_call_operand.vmem [shape: f32[2,3,1024], index: 5, kind: output, shape index: {}]
  %s6 = sld [smem:[#allocation0]]
  $region76: #{pointgencon_forward.7} parent=0
    _
  %s8 = ssub.s32 1, %s6
  %s9 = scalar_select 0, %s8, %s6
  $region1: #{pointgencon_forward.7} parent=0
    #allocation2 [shape = 'u8[32768]{0}', space=vmem, size = 0x8000, scoped, tag = 'input window, operand 0']
    loop: start=0, step=1, limit=6
    $region2: #{pointgencon_forward.7} parent=1 // loop_pre_header
      _
    $region3: #{pointgencon_forward.7} parent=1 // loop_header
      %s11 = sphi 0, %s15
      %p12 = scmp.ge.s32.totalorder %s11, 6
      %s18 = sphi 0, %s37
      %s19 = sphi 0, %s33
      %s20 = sphi 0, %s29
      %s21 = sphi 0, %s18
      %s22 = sphi 0, %s19
      %s23 = sphi 0, %s20
      %s24 = sphi 0, %s21
      %s25 = sphi 0, %s22
      %s26 = sphi 0, %s23
      %s44 = sphi 0, %s46
      %s47 = sphi 0, %s44
      %s48 = sphi 0, %s47
      %s64 = sphi 0, %s48
      %s68 = sphi 0, %s68
      %s70 = sphi 0, %s68
      %s71 = sphi 0, %s70
      %s85 = sphi 0, %s71
      %s89 = sphi 0, %s89
      %s91 = sphi 0, %s89
      %s92 = sphi 0, %s91
      %s106 = sphi 0, %s92
      %s110 = sphi 0, %s110
      %s112 = sphi 0, %s110
      %s113 = sphi 0, %s112
      %s127 = sphi 0, %s113
      %s131 = sphi 0, %s131
      %s133 = sphi 0, %s131
      %s134 = sphi 0, %s133
      %s148 = sphi 0, %s134
      %s158 = sphi 0, %s160
      %s161 = sphi 0, %s158
      %s162 = sphi 0, %s161
      %s178 = sphi 0, %s162
    $region4: #{pointgencon_forward.7} parent=1 // loop_header_branch
      %14 = sbr.rel (%p12) target = $region8
    $region5: #{pointgencon_forward.7} parent=1 // loop_body
      %s16 = ssub.s32 %s11, 1
      %s17 = ssub.s32 %s11, 2
      %s27 = sadd.s32 1, %s20
      %p28 = scmp.ge.s32.totalorder %s27, 1
      %s29 = scalar_select %p28, 0, %s27
      %s30 = sadd.s32 1, %s19
      %s31 = scalar_select %p28, %s30, %s19
      %p32 = scmp.ge.s32.totalorder %s31, 2
      %s33 = scalar_select %p32, 0, %s31
      %s34 = sadd.s32 1, %s18
      %s35 = scalar_select %p32, %s34, %s18
      %p36 = scmp.ge.s32.totalorder %s35, 2
      %s37 = scalar_select %p36, 0, %s35
      %s38 = sadd.s32 %s19, %s20
      %s39 = sadd.s32 %s33, %s29
      %s40 = ssub.s32 %s18, %s37
      %s41 = ssub.s32 %s38, %s39
      %s42 = sor.u32 %s40, %s41
      %p43 = scmp.eq.s32.totalorder %s42, 0
      %s45 = sadd.s32 %s44, 1
      %s46 = scalar_select %p43, %s44, %s45
      %p49 = pneg %p43
      %p50 = scmp.eq.s32.totalorder %s11, 3
      %p51 = por %p49, %p50
      %p52 = scmp.ne.s32.totalorder %s44, %s47
      %p53 = scmp.eq.s32.totalorder %s11, 0
      %p54 = por %p52, %p53
      %p55 = scmp.ne.s32.totalorder %s44, %s47
      %p56 = scmp.eq.s32.totalorder %s16, 3
      %p57 = por %p55, %p56
      %p58 = scmp.ne.s32.totalorder %s47, %s48
      %p59 = scmp.eq.s32.totalorder %s16, 0
      %p60 = por %p58, %p59
      %p61 = scmp.ne.s32.totalorder %s47, %s48
      %p62 = scmp.eq.s32.totalorder %s17, 3
      %p63 = por %p61, %p62
      %p65 = scmp.ne.s32.totalorder %s48, %s64
      %p66 = scmp.eq.s32.totalorder %s17, 0
      %p67 = por %p65, %p66
      %s69 = sadd.s32 %s68, 1
      %p72 = scmp.eq.s32.totalorder %s11, 3
      %p73 = scmp.ne.s32.totalorder %s68, %s70
      %p74 = scmp.eq.s32.totalorder %s11, 0
      %p75 = por %p73, %p74
      %p76 = scmp.ne.s32.totalorder %s68, %s70
      %p77 = scmp.eq.s32.totalorder %s16, 3
      %p78 = por %p76, %p77
      %p79 = scmp.ne.s32.totalorder %s70, %s71
      %p80 = scmp.eq.s32.totalorder %s16, 0
      %p81 = por %p79, %p80
      %p82 = scmp.ne.s32.totalorder %s70, %s71
      %p83 = scmp.eq.s32.totalorder %s17, 3
      %p84 = por %p82, %p83
      %p86 = scmp.ne.s32.totalorder %s71, %s85
      %p87 = scmp.eq.s32.totalorder %s17, 0
      %p88 = por %p86, %p87
      %s90 = sadd.s32 %s89, 1
      %p93 = scmp.eq.s32.totalorder %s11, 3
      %p94 = scmp.ne.s32.totalorder %s89, %s91
      %p95 = scmp.eq.s32.totalorder %s11, 0
      %p96 = por %p94, %p95
      %p97 = scmp.ne.s32.totalorder %s89, %s91
      %p98 = scmp.eq.s32.totalorder %s16, 3
      %p99 = por %p97, %p98
      %p100 = scmp.ne.s32.totalorder %s91, %s92
      %p101 = scmp.eq.s32.totalorder %s16, 0
      %p102 = por %p100, %p101
      %p103 = scmp.ne.s32.totalorder %s91, %s92
      %p104 = scmp.eq.s32.totalorder %s17, 3
      %p105 = por %p103, %p104
      %p107 = scmp.ne.s32.totalorder %s92, %s106
      %p108 = scmp.eq.s32.totalorder %s17, 0
      %p109 = por %p107, %p108
      %s111 = sadd.s32 %s110, 1
      %p114 = scmp.eq.s32.totalorder %s11, 3
      %p115 = scmp.ne.s32.totalorder %s110, %s112
      %p116 = scmp.eq.s32.totalorder %s11, 0
      %p117 = por %p115, %p116
      %p118 = scmp.ne.s32.totalorder %s110, %s112
      %p119 = scmp.eq.s32.totalorder %s16, 3
      %p120 = por %p118, %p119
      %p121 = scmp.ne.s32.totalorder %s112, %s113
      %p122 = scmp.eq.s32.totalorder %s16, 0
      %p123 = por %p121, %p122
      %p124 = scmp.ne.s32.totalorder %s112, %s113
      %p125 = scmp.eq.s32.totalorder %s17, 3
      %p126 = por %p124, %p125
      %p128 = scmp.ne.s32.totalorder %s113, %s127
      %p129 = scmp.eq.s32.totalorder %s17, 0
      %p130 = por %p128, %p129
      %s132 = sadd.s32 %s131, 1
      %p135 = scmp.eq.s32.totalorder %s11, 3
      %p136 = scmp.ne.s32.totalorder %s131, %s133
      %p137 = scmp.eq.s32.totalorder %s11, 0
      %p138 = por %p136, %p137
      %p139 = scmp.ne.s32.totalorder %s131, %s133
      %p140 = scmp.eq.s32.totalorder %s16, 3
      %p141 = por %p139, %p140
      %p142 = scmp.ne.s32.totalorder %s133, %s134
      %p143 = scmp.eq.s32.totalorder %s16, 0
      %p144 = por %p142, %p143
      %p145 = scmp.ne.s32.totalorder %s133, %s134
      %p146 = scmp.eq.s32.totalorder %s17, 3
      %p147 = por %p145, %p146
      %p149 = scmp.ne.s32.totalorder %s134, %s148
      %p150 = scmp.eq.s32.totalorder %s17, 0
      %p151 = por %p149, %p150
      %s152 = sadd.s32 %s19, %s20
      %s153 = sadd.s32 %s33, %s29
      %s154 = ssub.s32 %s18, %s37
      %s155 = ssub.s32 %s152, %s153
      %s156 = sor.u32 %s154, %s155
      %p157 = scmp.eq.s32.totalorder %s156, 0
      %s159 = sadd.s32 %s158, 1
      %s160 = scalar_select %p157, %s158, %s159
      %p163 = pneg %p157
      %p164 = scmp.eq.s32.totalorder %s11, 3
      %p165 = por %p163, %p164
      %p166 = scmp.ne.s32.totalorder %s158, %s161
      %p167 = scmp.eq.s32.totalorder %s11, 0
      %p168 = por %p166, %p167
      %p169 = scmp.ne.s32.totalorder %s158, %s161
      %p170 = scmp.eq.s32.totalorder %s16, 3
      %p171 = por %p169, %p170
      %p172 = scmp.ne.s32.totalorder %s161, %s162
      %p173 = scmp.eq.s32.totalorder %s16, 0
      %p174 = por %p172, %p173
      %p175 = scmp.ne.s32.totalorder %s161, %s162
      %p176 = scmp.eq.s32.totalorder %s17, 3
      %p177 = por %p175, %p176
      %p179 = scmp.ne.s32.totalorder %s162, %s178
      %p180 = scmp.eq.s32.totalorder %s17, 0
      %p181 = por %p179, %p180
      %p182 = scmp.le.s32.totalorder 1, %s11
      %p183 = scmp.lt.s32.totalorder %s11, 5
      %p184 = pnand %p182, %p183
      %p185 = pneg %p184
      // Predicated region
      $region9: #{pointgencon_forward.7} parent=5 // pred_check
        _
      $region10: #{pointgencon_forward.7} parent=5 // pred_check_branch
        %187 = sbr.rel (%p184) target = $region12
      $region11: #{pointgencon_forward.7} parent=5 // pred_region
        %s188 = ssub.s32 %s11, 1
        // Predicated region
        $region13: #{pointgencon_forward.7} parent=11 // pred_check
          %p189 = pneg %p81
        $region14: #{pointgencon_forward.7} parent=11 // pred_check_branch
          %191 = sbr.rel (%p189) target = $region16
        $region15: #{pointgencon_forward.7} parent=11 // pred_region
          _
        $region16: #{pointgencon_forward.7} parent=11 // pred_fallthru
          _
        // Predicated region
        $region17: #{pointgencon_forward.7} parent=11 // pred_check
          %p192 = pneg %p102
        $region18: #{pointgencon_forward.7} parent=11 // pred_check_branch
          %194 = sbr.rel (%p192) target = $region20
        $region19: #{pointgencon_forward.7} parent=11 // pred_region
          _
        $region20: #{pointgencon_forward.7} parent=11 // pred_fallthru
          _
        // Predicated region
        $region21: #{pointgencon_forward.7} parent=11 // pred_check
          %p195 = pneg %p123
        $region22: #{pointgencon_forward.7} parent=11 // pred_check_branch
          %197 = sbr.rel (%p195) target = $region24
        $region23: #{pointgencon_forward.7} parent=11 // pred_region
          _
        $region24: #{pointgencon_forward.7} parent=11 // pred_fallthru
          _
        // Predicated region
        $region25: #{pointgencon_forward.7} parent=11 // pred_check
          %p198 = pneg %p144
        $region26: #{pointgencon_forward.7} parent=11 // pred_check_branch
          %200 = sbr.rel (%p198) target = $region28
        $region27: #{pointgencon_forward.7} parent=11 // pred_region
          _
        $region28: #{pointgencon_forward.7} parent=11 // pred_fallthru
          _
      $region12: #{pointgencon_forward.7} parent=5 // pred_fallthru
        _
      %p201 = scmp.lt.s32.totalorder %s11, 4
      // Predicated region
      $region29: #{pointgencon_forward.7} parent=5 // pred_check
        %p202 = pneg %p201
      $region30: #{pointgencon_forward.7} parent=5 // pred_check_branch
        %204 = sbr.rel (%p202) target = $region32
      $region31: #{pointgencon_forward.7} parent=5 // pred_region
        // Predicated region
        $region33: #{pointgencon_forward.7} parent=31 // pred_check
          %p205 = pneg %p54
        $region34: #{pointgencon_forward.7} parent=31 // pred_check_branch
          %207 = sbr.rel (%p205) target = $region36
        $region35: #{pointgencon_forward.7} parent=31 // pred_region
          %s208 = sand.u32 %s44, 1
          %s209 = sand.u32 %s44, 1
          %s210 = smul.addr %s209, 32
          %s211 = scalar_lea.vmem [#allocation2], %s210
          %s212 = sadd.s32 %s19, %s20
          %s213 = smul.u32 4, %s212
          %s214 = smul.addr %s18, 16
          %s215 = sadd.s32 %s213, %s214
          %s216 = smul.addr %s215, 4
          %s217 = scalar_lea.vmem %s0, %s216
          // Predicated region
          $region37: #{pointgencon_forward.7} parent=35 // pred_check
            _
          $region38: #{pointgencon_forward.7} parent=35 // pred_check_branch
            %219 = sbr.rel (0) target = $region40
          $region39: #{pointgencon_forward.7} parent=35 // pred_region
            // Predicated region
            $region41: #{pointgencon_forward.7} parent=39 // pred_check
              _
            $region42: #{pointgencon_forward.7} parent=39 // pred_check_branch
              %221 = sbr.rel (0) target = $region44
            $region43: #{pointgencon_forward.7} parent=39 // pred_region
              loop: start=0, step=1, limit=1
              $region45: #{pointgencon_forward.7} parent=43 // loop_pre_header
                _
              $region46: #{pointgencon_forward.7} parent=43 // loop_header
                %s223 = sphi 0, %s227
                %p224 = scmp.ge.s32.totalorder %s223, 1
                %s228 = sphi %s217, %s217
                %s229 = sphi %s211, %s211
              $region47: #{pointgencon_forward.7} parent=43 // loop_header_branch
                %226 = sbr.rel (%p224) target = $region51
              $region48: #{pointgencon_forward.7} parent=43 // loop_body
                %v230 = vld [vmem:[%s228] sm:$0xff]
                %231 = vst [vmem:[%s229] sm:$0xff] %v230
                %v232 = vld [vmem:[%s228 + $0x8] sm:$0xff]
                %233 = vst [vmem:[%s229 + $0x8] sm:$0xff] %v232
                %v234 = vld [vmem:[%s228 + $0x20] sm:$0xff]
                %235 = vst [vmem:[%s229 + $0x10] sm:$0xff] %v234
                %v236 = vld [vmem:[%s228 + $0x28] sm:$0xff]
                %237 = vst [vmem:[%s229 + $0x18] sm:$0xff] %v236
              $region49: #{pointgencon_forward.7} parent=43 // loop_footer
                %s227 = sadd.s32 1, %s223
              $region50: #{pointgencon_forward.7} parent=43 // loop_footer_branch
                %222 = sbr.rel target = $region46
              $region51: #{pointgencon_forward.7} parent=43 // loop_exit
                _
            $region44: #{pointgencon_forward.7} parent=39 // pred_fallthru
              _
            // Predicated region
            $region52: #{pointgencon_forward.7} parent=39 // pred_check
              _
            $region53: #{pointgencon_forward.7} parent=39 // pred_check_branch
              %239 = sbr.rel target = $region55
            $region54: #{pointgencon_forward.7} parent=39 // pred_region
              _
            $region55: #{pointgencon_forward.7} parent=39 // pred_fallthru
              _
          $region40: #{pointgencon_forward.7} parent=35 // pred_fallthru
            _
          %240 = vnop
        $region36: #{pointgencon_forward.7} parent=31 // pred_fallthru
          _
      $region32: #{pointgencon_forward.7} parent=5 // pred_fallthru
        _
      %p241 = scmp.le.s32.totalorder 1, %s11
      %p242 = scmp.lt.s32.totalorder %s11, 5
      %p243 = pnand %p241, %p242
      %p244 = pneg %p243
      // Predicated region
      $region56: #{pointgencon_forward.7} parent=5 // pred_check
        _
      $region57: #{pointgencon_forward.7} parent=5 // pred_check_branch
        %246 = sbr.rel (%p243) target = $region59
      $region58: #{pointgencon_forward.7} parent=5 // pred_region
        %s247 = ssub.s32 %s11, 1
        %s248 = sand.u32 %s47, 1
        %s249 = sand.u32 %s47, 1
        %s250 = smul.addr %s249, 32
        %s251 = scalar_lea.vmem [#allocation2], %s250
        // Predicated region
        $region60: #{pointgencon_forward.7} parent=58 // pred_check
          %p252 = pneg %p60
        $region61: #{pointgencon_forward.7} parent=58 // pred_check_branch
          %254 = sbr.rel (%p252) target = $region63
        $region62: #{pointgencon_forward.7} parent=58 // pred_region
          _
        $region63: #{pointgencon_forward.7} parent=58 // pred_fallthru
          _
        %s255 = sand.u32 %s47, 1
        %s256 = sand.u32 %s47, 1
        %s257 = smul.addr %s256, 32
        %s258 = scalar_lea.vmem [#allocation2], %s257
        %p259 = pneg %p60
        %p260 = pneg %p57
        %p261 = pneg %p81
        %p262 = pneg %p78
        %p263 = pneg %p102
        %p264 = pneg %p99
        %p265 = pneg %p123
        %p266 = pneg %p120
        %p267 = pneg %p144
        %p268 = pneg %p141
        %p269 = pneg %p174
        %p270 = pneg %p171
        %s271 = sadd.s32 %s22, %s23
        %s272 = smul.u32 4, %s271
        %p273 = scmp.lt.s32.totalorder %s21, 1
        %s274 = scalar_select %p273, %s21, 1
        %p275 = scmp.lt.s32.totalorder %s272, 7
        %s276 = scalar_select %p275, %s272, 7
        %s277 = smul.addr %s274, 8
        %s278 = sadd.s32 %s276, %s277
        %s279 = smul.addr %s278, 4
        %s280 = scalar_lea.vmem %s5, %s279
        %s281 = sadd.s32 %s22, %s23
        %s282 = smul.u32 4, %s281
        %s283 = sadd.s32 %s22, %s23
        %s284 = smul.u32 4, %s283
        %p285 = scmp.lt.s32.totalorder %s21, 1
        %s286 = scalar_select %p285, %s21, 1
        %p287 = scmp.lt.s32.totalorder %s284, 7
        %s288 = scalar_select %p287, %s284, 7
        %s289 = smul.addr %s286, 8
        %s290 = sadd.s32 %s288, %s289
        %s291 = smul.addr %s290, 4
        %s292 = scalar_lea.vmem %s5, %s291
        %s293 = sadd.s32 %s22, %s23
        %s294 = smul.u32 4, %s293
        %v296 = vld [vmem:[%s251] sm:$0xff]
        %v297 = vld [vmem:[%s251 + $0x8] sm:$0xff]
        %v298 = vld [vmem:[%s251 + $0x10] sm:$0xff]
        %v299 = vld [vmem:[%s251 + $0x18] sm:$0xff]
        %v300 = vunpack.c.l.bf16 %v296
        %v301 = vunpack.c.h.bf16 %v296
        %v302 = vunpack.c.l.bf16 %v297
        %v303 = vunpack.c.h.bf16 %v297
        %v304 = vunpack.c.l.bf16 %v298
        %v305 = vunpack.c.h.bf16 %v298
        %v306 = vunpack.c.l.bf16 %v299
        %v307 = vunpack.c.h.bf16 %v299
        %v308 = vld [vmem:[%s1] sm:$0xff]
        %v309 = vld [vmem:[%s1 + $0x8] sm:$0xff]
        %311 = vset.pattern.permute.xlu0 0
        %312 = vperm.xlu0 %311, %v308
        %v313 = vpop.permute.xlu0 %312
        %316 = vset.pattern.permute.xlu0 0
        %317 = vperm.xlu0 %316, %v309
        %v318 = vpop.permute.xlu0 %317
        %v320 = vmul.f32 %v300, %v313
        %v321 = vmul.f32 %v301, %v313
        %v322 = vmul.f32 %v302, %v313
        %v323 = vmul.f32 %v303, %v313
        %v324 = vmul.f32 %v304, %v318
        %v325 = vmul.f32 %v305, %v318
        %v326 = vmul.f32 %v306, %v318
        %v327 = vmul.f32 %v307, %v318
        %v328 = vld [vmem:[%s2] sm:$0xff]
        %v329 = vld [vmem:[%s2 + $0x8] sm:$0xff]
        %331 = vset.pattern.permute.xlu0 0
        %332 = vperm.xlu0 %331, %v328
        %v333 = vpop.permute.xlu0 %332
        %336 = vset.pattern.permute.xlu0 0
        %337 = vperm.xlu0 %336, %v329
        %v338 = vpop.permute.xlu0 %337
        %v340 = vadd.f32 %v320, %v333
        %v341 = vadd.f32 %v321, %v333
        %v342 = vadd.f32 %v322, %v333
        %v343 = vadd.f32 %v323, %v333
        %v344 = vadd.f32 %v324, %v338
        %v345 = vadd.f32 %v325, %v338
        %v346 = vadd.f32 %v326, %v338
        %v347 = vadd.f32 %v327, %v338
        %v348 = vmax.f32 %v340, 0.0
        %v349 = vmax.f32 %v341, 0.0
        %v350 = vmax.f32 %v342, 0.0
        %v351 = vmax.f32 %v343, 0.0
        %v352 = vmax.f32 %v344, 0.0
        %v353 = vmax.f32 %v345, 0.0
        %v354 = vmax.f32 %v346, 0.0
        %v355 = vmax.f32 %v347, 0.0
        %v356 = vld [vmem:[%s3] sm:$0x3]
        %v357 = vpack.c.bf16 %v352, %v348
        %v358 = vpack.c.bf16 %v353, %v349
        %v359 = vpack.c.bf16 %v354, %v350
        %v360 = vpack.c.bf16 %v355, %v351
        %v361 = vld [vmem:[%s4] sm:$0x7]
        %363 = vset.pattern.permute.xlu0 0
        %364 = vperm.xlu0 %363, %v361
        %v365 = vpop.permute.xlu0 %364
        %vm367 = vcmask 130048
        %v369 = vsel %vm367, %v356, 0
        %371 = vmatprep.subr.bf16.mxu0 %v358
        %372 = vmatpush1.bf16.msra.mxu0 %v357
        %373 = vmatprep.subr.bf16.mxu0 0
        %374 = vmatpush1.bf16.msra.mxu0 0
        %375 = vmatprep.subr.bf16.mxu0 0
        %376 = vmatpush1.bf16.msra.mxu0 0
        %377 = vmatprep.subr.bf16.mxu0 0
        %378 = vmatpush1.bf16.msra.mxu0 0
        %379 = vmatprep.subr.bf16.mxu0 0
        %380 = vmatpush1.bf16.msra.mxu0 0
        %381 = vmatprep.subr.bf16.mxu0 0
        %382 = vmatpush1.bf16.msra.mxu0 0
        %383 = vmatprep.subr.bf16.mxu0 0
        %384 = vmatpush1.bf16.msra.mxu0 0
        %385 = vmatprep.subr.bf16.mxu0 0
        %386 = vmatpush1.bf16.msra.mxu0 0
        %387 = vmatprep.subr.bf16.mxu0 0
        %388 = vmatpush1.bf16.msra.mxu0 0
        %389 = vmatprep.subr.bf16.mxu0 0
        %390 = vmatpush1.bf16.msra.mxu0 0
        %391 = vmatprep.subr.bf16.mxu0 0
        %392 = vmatpush1.bf16.msra.mxu0 0
        %393 = vmatprep.subr.bf16.mxu0 0
        %394 = vmatpush1.bf16.msra.mxu0 0
        %395 = vmatprep.subr.bf16.mxu0 0
        %396 = vmatpush1.bf16.msra.mxu0 0
        %397 = vmatprep.subr.bf16.mxu0 0
        %398 = vmatpush1.bf16.msra.mxu0 0
        %399 = vmatprep.subr.bf16.mxu0 0
        %400 = vmatpush1.bf16.msra.mxu0 0
        %401 = vmatprep.subr.bf16.mxu0 0
        %402 = vmatpush1.bf16.msra.mxu0 0
        %403 = vmatprep.mubr.bf16.mxu0 0
        %404 = vmatmul.mubr.bf16.gmra.mrb[0].mxu0 %v369
        %v405 = vpop.f32.mrb[0].mxu0
        %v406 = vadd.f32 %v365, %v405
        %v407 = vpop.f32.mrb[0].mxu0
        %v408 = vadd.f32 %v365, %v407
        %v409 = vpop.f32.mrb[0].mxu0
        %v410 = vpop.f32.mrb[0].mxu0
        %411 = vdwg.mxu0
        %412 = vmatprep.subr.bf16.mxu0 %v360
        %413 = vmatpush1.bf16.msra.mxu0 %v359
        %414 = vmatprep.subr.bf16.mxu0 0
        %415 = vmatpush1.bf16.msra.mxu0 0
        %416 = vmatprep.subr.bf16.mxu0 0
        %417 = vmatpush1.bf16.msra.mxu0 0
        %418 = vmatprep.subr.bf16.mxu0 0
        %419 = vmatpush1.bf16.msra.mxu0 0
        %420 = vmatprep.subr.bf16.mxu0 0
        %421 = vmatpush1.bf16.msra.mxu0 0
        %422 = vmatprep.subr.bf16.mxu0 0
        %423 = vmatpush1.bf16.msra.mxu0 0
        %424 = vmatprep.subr.bf16.mxu0 0
        %425 = vmatpush1.bf16.msra.mxu0 0
        %426 = vmatprep.subr.bf16.mxu0 0
        %427 = vmatpush1.bf16.msra.mxu0 0
        %428 = vmatprep.subr.bf16.mxu0 0
        %429 = vmatpush1.bf16.msra.mxu0 0
        %430 = vmatprep.subr.bf16.mxu0 0
        %431 = vmatpush1.bf16.msra.mxu0 0
        %432 = vmatprep.subr.bf16.mxu0 0
        %433 = vmatpush1.bf16.msra.mxu0 0
        %434 = vmatprep.subr.bf16.mxu0 0
        %435 = vmatpush1.bf16.msra.mxu0 0
        %436 = vmatprep.subr.bf16.mxu0 0
        %437 = vmatpush1.bf16.msra.mxu0 0
        %438 = vmatprep.subr.bf16.mxu0 0
        %439 = vmatpush1.bf16.msra.mxu0 0
        %440 = vmatprep.subr.bf16.mxu0 0
        %441 = vmatpush1.bf16.msra.mxu0 0
        %442 = vmatprep.subr.bf16.mxu0 0
        %443 = vmatpush1.bf16.msra.mxu0 0
        %444 = vmatprep.mubr.bf16.mxu0 0
        %445 = vmatmul.mubr.bf16.gmra.mrb[0].mxu0 %v369
        %v446 = vpop.f32.mrb[0].mxu0
        %v447 = vadd.f32 %v365, %v446
        %v448 = vpop.f32.mrb[0].mxu0
        %v449 = vadd.f32 %v365, %v448
        %v450 = vpop.f32.mrb[0].mxu0
        %v451 = vpop.f32.mrb[0].mxu0
        %452 = vdwg.mxu0
        %v453 = vtanh.pop %v406
        %v454 = vtanh.pop %v408
        %v455 = vtanh.pop %v447
        %v456 = vtanh.pop %v449
        %v457 = vmul.f32 %v453, 2.0
        %v458 = vmul.f32 %v454, 2.0
        %v459 = vmul.f32 %v455, 2.0
        %v460 = vmul.f32 %v456, 2.0
        %v465 = vcombine.low %v457, %v458
        %v466 = vcombine.low %v459, %v460
        %469 = vst [vmem:[%s292] sm:$0x77] %v465
        %470 = vst [vmem:[%s292 + $0x8] sm:$0x77] %v466
        %s471 = sadd.s32 %s22, %s23
        %s472 = smul.u32 4, %s471
        %p473 = scmp.lt.s32.totalorder %s21, 1
        %s474 = scalar_select %p473, %s21, 1
        %p475 = scmp.lt.s32.totalorder %s472, 7
        %s476 = scalar_select %p475, %s472, 7
        %s477 = smul.addr %s474, 8
        %s478 = sadd.s32 %s476, %s477
        %s479 = smul.addr %s478, 4
        %s480 = scalar_lea.vmem %s5, %s479
        // Predicated region
        $region64: #{pointgencon_forward.7} parent=58 // pred_check
          %p481 = pneg %p171
        $region65: #{pointgencon_forward.7} parent=58 // pred_check_branch
          %483 = sbr.rel (%p481) target = $region67
        $region66: #{pointgencon_forward.7} parent=58 // pred_region
          %s484 = sadd.s32 %s22, %s23
          %s485 = smul.u32 4, %s484
        $region67: #{pointgencon_forward.7} parent=58 // pred_fallthru
          _
      $region59: #{pointgencon_forward.7} parent=5 // pred_fallthru
        _
      %p486 = scmp.le.s32.totalorder 2, %s11
      // Predicated region
      $region68: #{pointgencon_forward.7} parent=5 // pred_check
        %p487 = pneg %p486
      $region69: #{pointgencon_forward.7} parent=5 // pred_check_branch
        %489 = sbr.rel (%p487) target = $region71
      $region70: #{pointgencon_forward.7} parent=5 // pred_region
        %s490 = ssub.s32 %s11, 2
        // Predicated region
        $region72: #{pointgencon_forward.7} parent=70 // pred_check
          %p491 = pneg %p177
        $region73: #{pointgencon_forward.7} parent=70 // pred_check_branch
          %493 = sbr.rel (%p491) target = $region75
        $region74: #{pointgencon_forward.7} parent=70 // pred_region
          %s494 = sadd.s32 %s25, %s26
          %s495 = smul.u32 4, %s494
          %p496 = scmp.lt.s32.totalorder %s24, 1
          %s497 = scalar_select %p496, %s24, 1
          %p498 = scmp.lt.s32.totalorder %s495, 7
          %s499 = scalar_select %p498, %s495, 7
          %s500 = smul.addr %s497, 8
          %s501 = sadd.s32 %s499, %s500
          %s502 = smul.addr %s501, 4
          %s503 = scalar_lea.vmem %s5, %s502
        $region75: #{pointgencon_forward.7} parent=70 // pred_fallthru
          _
      $region71: #{pointgencon_forward.7} parent=5 // pred_fallthru
        _
    $region6: #{pointgencon_forward.7} parent=1 // loop_footer
      %s15 = sadd.s32 1, %s11
    $region7: #{pointgencon_forward.7} parent=1 // loop_footer_branch
      %10 = sbr.rel target = $region3
    $region8: #{pointgencon_forward.7} parent=1 // loop_exit
      _

</llo_original>
